<compile_context>
chip_gen: v6e
topology: v6e:2x2x1
jax: 0.10.0
libtpu: 0.0.40
codegen_flags: <defaults>
</compile_context>

<pallas_src>
import jax
import jax.numpy as jnp
from jax.experimental import pallas as pl
from jax.experimental.pallas import tpu as pltpu


_HALO = 6   # 3 chained 5x5 / stride-1 pools -> 13x13 receptive field -> 6-row halo
_LPAD = 16  # left column pad of the pooling scratch: keeps the interior
            # (dominant loads/stores) on a bf16 sublane-tile boundary


def _hardswish(v):
    # nn.Hardswish: x * relu6(x + 3) / 6
    return v * jnp.clip(v + 3.0, 0.0, 6.0) * (1.0 / 6.0)


def _round_up(x, m):
    return ((x + m - 1) // m) * m


def _pick_row_tile(h, n_batch, requested=None):
    """Row-tile height (a divisor of H so the grid tiles exactly).  Larger
    tiles amortize the 12-row halo recompute; when N == 1 keep >= 2 row tiles
    so both TensorCores (v7x) get work."""
    if requested is not None:
        th = max(1, min(int(requested), h))
        while h % th:
            th -= 1
        return th
    cap = 64
    if n_batch == 1:
        cap = min(cap, max(1, h // 2))
    best = 1
    for th in range(1, min(h, cap) + 1):
        if h % th == 0:
            best = th
    if best < min(8, cap) and h > best:
        # Awkward H (e.g. prime): a single full-image tile beats 13x cv1
        # recompute at TH=1.  TODO(synk): cdiv grid + masked tail for very
        # large awkward H where a full-image tile would blow the VMEM budget.
        return h
    return best


def _vmem_limit_bytes(est_bytes):
    cap = 128 * 1024 * 1024
    try:
        cap = int(pltpu.get_tpu_info().vmem_capacity_bytes)
    except Exception:
        pass
    hi = min(int(0.9 * cap), 112 * 1024 * 1024)
    return int(min(hi, max(32 * 1024 * 1024, 2 * est_bytes)))


def _sppf_kernel(x_ref, w1_ref, b1_ref, w2_ref, b2_ref, o_ref, pad_ref, acc_ref):
    # x_ref:   (1, H, W, Cin)            full image (resident across row tiles)
    # w1_ref:  (Cin, Cp)        bf16     cv1 weight (BN scale folded, zero-padded)
    # b1_ref:  (1, Cp)          f32
    # w2_ref:  (4, Cp, Coutp)   bf16     cv2 weight, split per concat group
    # b2_ref:  (1, Coutp)       f32
    # o_ref:   (1, TH, W, Coutp)         one output row tile
    # pad_ref: (WIN+4, SCR_W, Cp) bf16   pooling scratch, -inf row/col borders
    # acc_ref: (TH*W, Coutp)    f32      cv2 accumulator
    H, W, Cin = x_ref.shape[1], x_ref.shape[2], x_ref.shape[3]
    TH = o_ref.shape[1]
    Coutp = o_ref.shape[3]
    WIN = pad_ref.shape[0] - 4
    SCR_W = pad_ref.shape[1]
    Cp = pad_ref.shape[2]
    bf16 = jnp.bfloat16

    i = pl.program_id(1)
    # Clamped halo window of WIN rows around this tile's TH output rows.
    ws = jnp.clip(i * TH - _HALO, 0, H - WIN)     # window start (global row)
    out_local = i * TH - ws                       # tile's first row inside window

    # ---- -inf borders: only the cells the pool taps can actually read --------
    row_border = jnp.full((2, SCR_W, Cp), -jnp.inf, bf16)
    pad_ref[0:2, :, :] = row_border
    pad_ref[2 + WIN:4 + WIN, :, :] = row_border
    col_border = jnp.full((WIN + 4, 2, Cp), -jnp.inf, bf16)
    pad_ref[:, _LPAD - 2:_LPAD, :] = col_border
    pad_ref[:, _LPAD + W:_LPAD + W + 2, :] = col_border

    # ---- cv1: 1x1 conv (bf16 MXU, f32 accumulate) + bias + Hardswish ---------
    xw = x_ref[0, pl.ds(ws, WIN), :, :].astype(bf16)             # (WIN, W, Cin)
    a = jnp.dot(xw.reshape(WIN * W, Cin), w1_ref[...],
                preferred_element_type=jnp.float32)
    x0 = _hardswish(a + b1_ref[...]).astype(bf16).reshape(WIN, W, Cp)
    pad_ref[2:2 + WIN, _LPAD:_LPAD + W, :] = x0

    def out_lhs():
        # The TH output rows of whatever stage currently sits in the interior.
        v = pad_ref[pl.ds(2 + out_local, TH), _LPAD:_LPAD + W, :]
        return v.reshape(TH * W, Cp)

    def pool_stage(first_row, nrows):
        # 5x5 / stride-1 / pad-2 max pool of the current interior, restricted
        # to window rows [first_row, first_row + nrows).
        # W pass: 5 column-shifted loads (reads window rows first_row-2 ..
        # first_row+nrows+1, i.e. scratch rows first_row .. first_row+nrows+3;
        # -inf borders handle out-of-image rows/columns).
        t = pad_ref[pl.ds(first_row, nrows + 4), _LPAD - 2:_LPAD - 2 + W, :]
        for dx in range(1, 5):
            t = jnp.maximum(
                t, pad_ref[pl.ds(first_row, nrows + 4),
                           _LPAD - 2 + dx:_LPAD - 2 + dx + W, :])
        # H pass in registers: leading-axis slices are free (no writeback).
        u = t[0:nrows]
        for dy in range(1, 5):
            u = jnp.maximum(u, t[dy:dy + nrows])
        return u                                     # (nrows, W, Cp) bf16

    # Per-stage row ranges: only compute what later stages / the output consume.
    R1 = min(TH + 8, WIN)
    R2 = min(TH + 4, WIN)
    s1 = jnp.clip(out_local - 4, 0, WIN - R1)
    s2 = jnp.clip(out_local - 2, 0, WIN - R2)

    # ---- cv2 as four accumulated partial matmuls, interleaved with pooling ---
    acc_ref[...] = jnp.dot(out_lhs(), w2_ref[0],
                           preferred_element_type=jnp.float32)
    y1 = pool_stage(s1, R1)                          # interior rows <- y1
    pad_ref[pl.ds(2 + s1, R1), _LPAD:_LPAD + W, :] = y1
    acc_ref[...] += jnp.dot(out_lhs(), w2_ref[1],
                            preferred_element_type=jnp.float32)
    y2 = pool_stage(s2, R2)                          # interior rows <- y2
    pad_ref[pl.ds(2 + s2, R2), _LPAD:_LPAD + W, :] = y2
    acc_ref[...] += jnp.dot(out_lhs(), w2_ref[2],
                            preferred_element_type=jnp.float32)
    y3 = pool_stage(out_local, TH)                   # exactly the output rows
    acc_ref[...] += jnp.dot(y3.reshape(TH * W, Cp), w2_ref[3],
                            preferred_element_type=jnp.float32)

    res = _hardswish(acc_ref[...] + b2_ref[...])
    o_ref[0] = res.reshape(TH, W, Coutp).astype(o_ref.dtype)


def sppf_forward(x_nhwc, params, row_tile=None):
    """SPPF forward. x_nhwc: (N, H, W, Cin).  params = (w1, s1, b1, w2, s2, b2)
    with BatchNorm (eval semantics) expressed as per-channel scale/bias."""
    w1, s1, b1, w2, s2, b2 = params
    N, H, W, Cin = x_nhwc.shape
    c_ = w1.shape[1]
    Cout = w2.shape[1]
    f32, bf16 = jnp.float32, jnp.bfloat16

    # Lane-dense channel padding (multiples of 128).
    Cp = _round_up(c_, 128)
    Coutp = _round_up(Cout, 128)

    # Fold BN scales into the conv weights host-side (in f32), then hand the
    # MXU bf16 weights; only the bias adds stay f32 in-kernel.
    w1f = (w1 * jnp.reshape(s1, (1, c_))).astype(f32)            # (Cin, c_)
    w2f = (w2 * jnp.reshape(s2, (1, Cout))).astype(f32)          # (4*c_, Cout)
    w1p = jnp.zeros((Cin, Cp), f32).at[:, :c_].set(w1f).astype(bf16)
    b1p = jnp.zeros((1, Cp), f32).at[:, :c_].set(jnp.reshape(b1, (1, c_)))
    w2p = jnp.zeros((4, Cp, Coutp), f32).at[:, :c_, :Cout].set(
        w2f.reshape(4, c_, Cout)).astype(bf16)
    b2p = jnp.zeros((1, Coutp), f32).at[:, :Cout].set(jnp.reshape(b2, (1, Cout)))

    TH = _pick_row_tile(H, N, row_tile)
    WIN = min(TH + 2 * _HALO, H)
    SCR_W = _LPAD + _round_up(W + 2, 8)   # aligned interior + >=2 -inf cols right

    itemsize = x_nhwc.dtype.itemsize
    est_bytes = (2 * H * W * Cin * itemsize
                 + 2 * (Cin * Cp * 2 + Cp * 4 + 4 * Cp * Coutp * 2 + Coutp * 4)
                 + 2 * TH * W * Coutp * itemsize
                 + (WIN + 4) * SCR_W * Cp * 2
                 + TH * W * Coutp * 4)

    out_padded = pl.pallas_call(
        _sppf_kernel,
        out_shape=jax.ShapeDtypeStruct((N, H, W, Coutp), x_nhwc.dtype),
        grid=(N, H // TH),
        in_specs=[
            # TODO(synk): for very large images on v7x (64 MiB VMEM), switch the
            # input to memory_space=pl.ANY + a manual double-buffered DMA of the
            # (WIN, W, Cin) halo window instead of keeping the full image resident.
            pl.BlockSpec((1, H, W, Cin), lambda n, i: (n, 0, 0, 0)),
            pl.BlockSpec((Cin, Cp), lambda n, i: (0, 0)),
            pl.BlockSpec((1, Cp), lambda n, i: (0, 0)),
            pl.BlockSpec((4, Cp, Coutp), lambda n, i: (0, 0, 0)),
            pl.BlockSpec((1, Coutp), lambda n, i: (0, 0)),
        ],
        out_specs=pl.BlockSpec((1, TH, W, Coutp), lambda n, i: (n, i, 0, 0)),
        scratch_shapes=[
            pltpu.VMEM((WIN + 4, SCR_W, Cp), jnp.bfloat16),   # pooling scratch
            pltpu.VMEM((TH * W, Coutp), jnp.float32),         # cv2 accumulator
        ],
        compiler_params=pltpu.CompilerParams(
            dimension_semantics=("parallel", "parallel"),
            vmem_limit_bytes=_vmem_limit_bytes(est_bytes)),
    )(x_nhwc, w1p, b1p, w2p, b2p)

    return out_padded[..., :Cout]


def make_params(key, in_channels, out_channels):
    """Deterministic synthetic params; BatchNorm (eval semantics) expressed as
    per-channel scale/bias: scale = gamma / sqrt(var + eps),
    bias = beta - mean * scale."""
    c_ = in_channels // 4
    eps = 1e-5
    ks = jax.random.split(key, 10)

    w1 = 0.3 * jax.random.normal(ks[0], (in_channels, c_), jnp.float32)
    g1 = 1.0 + 0.1 * jax.random.normal(ks[1], (c_,), jnp.float32)
    beta1 = 0.1 * jax.random.normal(ks[2], (c_,), jnp.float32)
    mean1 = 0.1 * jax.random.normal(ks[3], (c_,), jnp.float32)
    var1 = 0.5 + jnp.abs(jax.random.normal(ks[4], (c_,), jnp.float32))
    s1 = (g1 / jnp.sqrt(var1 + eps)).reshape(1, c_)
    b1 = (beta1 - mean1 * (g1 / jnp.sqrt(var1 + eps))).reshape(1, c_)

    w2 = 0.3 * jax.random.normal(ks[5], (4 * c_, out_channels), jnp.float32)
    g2 = 1.0 + 0.1 * jax.random.normal(ks[6], (out_channels,), jnp.float32)
    beta2 = 0.1 * jax.random.normal(ks[7], (out_channels,), jnp.float32)
    mean2 = 0.1 * jax.random.normal(ks[8], (out_channels,), jnp.float32)
    var2 = 0.5 + jnp.abs(jax.random.normal(ks[9], (out_channels,), jnp.float32))
    s2 = (g2 / jnp.sqrt(var2 + eps)).reshape(1, out_channels)
    b2 = (beta2 - mean2 * (g2 / jnp.sqrt(var2 + eps))).reshape(1, out_channels)

    return (w1, s1, b1, w2, s2, b2)


def sppf_ref(x_nhwc, params):
    # Pure-JAX (f32) reference for sanity checking the kernel.
    w1, s1, b1, w2, s2, b2 = params

    def mp(v):
        return jax.lax.reduce_window(
            v, -jnp.inf, jax.lax.max,
            window_dimensions=(1, 5, 5, 1), window_strides=(1, 1, 1, 1),
            padding=[(0, 0), (2, 2), (2, 2), (0, 0)])

    a = jnp.einsum('nhwc,cd->nhwd', x_nhwc, w1,
                   precision=jax.lax.Precision.HIGHEST) * s1[0] + b1[0]
    x0 = _hardswish(a)
    y1 = mp(x0)
    y2 = mp(y1)
    y3 = mp(y2)
    cat = jnp.concatenate([x0, y1, y2, y3], axis=-1)
    b = jnp.einsum('nhwc,cd->nhwd', cat, w2,
                   precision=jax.lax.Precision.HIGHEST) * s2[0] + b2[0]
    return _hardswish(b)


if __name__ == "__main__":
    key = jax.random.PRNGKey(0)
    k1, k2, k3, k4 = jax.random.split(key, 4)

    cases = [
        # (N, H, W, Cin, Cout, row_tile), input key, param key
        ((2, 16, 16, 16, 16, 8), k1, k2),   # module-scale toy case, 2 row tiles
        ((1, 40, 16, 32, 24, 8), k3, k4),   # exercises clamped halo windows
    ]
    for (N, H, W, Cin, Cout, row_tile), kx, kp in cases:
        x = jax.random.normal(kx, (N, H, W, Cin), jnp.float32)   # NHWC
        params = make_params(kp, Cin, Cout)

        out = jax.block_until_ready(sppf_forward(x, params, row_tile=row_tile))
        ref = jax.block_until_ready(sppf_ref(x, params))

        assert out.shape == (N, H, W, Cout), out.shape
        max_err = float(jnp.max(jnp.abs(out - ref)))
        # bf16 MXU operands with f32 accumulation vs a HIGHEST-precision f32 ref.
        assert jnp.allclose(out, ref, atol=5e-2, rtol=5e-2), max_err

    print("KERNEL_OK")
</pallas_src>

<mosaic_0001>
module attributes {stable_mosaic.version = 11 : i64} {
  func.func @_sppf_kernel(%arg0: i32, %arg1: i32, %arg2: memref<1x16x16x16xf32, #tpu.memory_space<vmem>>, %arg3: memref<16x128xbf16, #tpu.memory_space<vmem>>, %arg4: memref<1x128xf32, #tpu.memory_space<vmem>>, %arg5: memref<4x128x128xbf16, #tpu.memory_space<vmem>>, %arg6: memref<1x128xf32, #tpu.memory_space<vmem>>, %arg7: memref<1x8x16x128xf32, #tpu.memory_space<vmem>>, %arg8: memref<20x40x128xbf16, #tpu.memory_space<vmem>>, %arg9: memref<128x128xf32, #tpu.memory_space<vmem>>) attributes {dimension_semantics = [#tpu.dimension_semantics<parallel>, #tpu.dimension_semantics<parallel>], iteration_bounds = array<i64: 2, 2>, scalar_prefetch = 0 : i64, scratch_operands = 2 : i64, tpu.core_type = #tpu.core_type<tc>, window_params = [{transform_indices = @transform_0, window_bounds = array<i64: 1, 16, 16, 16>}, {pipeline_mode = #tpu.pipeline_mode<synchronous>, transform_indices = @transform_1, window_bounds = array<i64: 16, 128>}, {pipeline_mode = #tpu.pipeline_mode<synchronous>, transform_indices = @transform_2, window_bounds = array<i64: 1, 128>}, {pipeline_mode = #tpu.pipeline_mode<synchronous>, transform_indices = @transform_3, window_bounds = array<i64: 4, 128, 128>}, {pipeline_mode = #tpu.pipeline_mode<synchronous>, transform_indices = @transform_4, window_bounds = array<i64: 1, 128>}, {transform_indices = @transform_5, window_bounds = array<i64: 1, 8, 16, 128>}]} {
    %c8_i32 = arith.constant 8 : i32
    %0 = arith.muli %arg1, %c8_i32 : i32
    %c6_i32 = arith.constant 6 : i32
    %1 = arith.subi %0, %c6_i32 : i32
    %c0_i32 = arith.constant 0 : i32
    %c0_i32_0 = arith.constant 0 : i32
    %2 = arith.maxsi %c0_i32, %1 : i32
    %3 = arith.minsi %c0_i32_0, %2 : i32
    %c8_i32_1 = arith.constant 8 : i32
    %4 = arith.muli %arg1, %c8_i32_1 : i32
    %5 = arith.subi %4, %3 : i32
    %cst = arith.constant 0xFF80 : bf16
    %6 = vector.broadcast %cst : bf16 to vector<2x40x128xbf16>
    %c0 = arith.constant 0 : index
    %c0_2 = arith.constant 0 : index
    %c0_3 = arith.constant 0 : index
    %7 = vector.load %arg8[%c0, %c0_2, %c0_3] : memref<20x40x128xbf16, #tpu.memory_space<vmem>>, vector<2x40x128xbf16>
    tpu.vector_store %arg8[%c0, %c0_2, %c0_3], %6 {strides = array<i32>} : memref<20x40x128xbf16, #tpu.memory_space<vmem>>, vector<2x40x128xbf16>,
    %c18 = arith.constant 18 : index
    %c0_4 = arith.constant 0 : index
    %c0_5 = arith.constant 0 : index
    %8 = vector.load %arg8[%c18, %c0_4, %c0_5] : memref<20x40x128xbf16, #tpu.memory_space<vmem>>, vector<2x40x128xbf16>
    tpu.vector_store %arg8[%c18, %c0_4, %c0_5], %6 {strides = array<i32>} : memref<20x40x128xbf16, #tpu.memory_space<vmem>>, vector<2x40x128xbf16>,
    %cst_6 = arith.constant 0xFF80 : bf16
    %9 = vector.broadcast %cst_6 : bf16 to vector<20x2x128xbf16>
    %c0_7 = arith.constant 0 : index
    %c14 = arith.constant 14 : index
    %c0_8 = arith.constant 0 : index
    %10 = vector.load %arg8[%c0_7, %c14, %c0_8] : memref<20x40x128xbf16, #tpu.memory_space<vmem>>, vector<20x2x128xbf16>
    tpu.vector_store %arg8[%c0_7, %c14, %c0_8], %9 {strides = array<i32>} : memref<20x40x128xbf16, #tpu.memory_space<vmem>>, vector<20x2x128xbf16>,
    %c0_9 = arith.constant 0 : index
    %c32 = arith.constant 32 : index
    %c0_10 = arith.constant 0 : index
    %11 = vector.load %arg8[%c0_9, %c32, %c0_10] : memref<20x40x128xbf16, #tpu.memory_space<vmem>>, vector<20x2x128xbf16>
    tpu.vector_store %arg8[%c0_9, %c32, %c0_10], %9 {strides = array<i32>} : memref<20x40x128xbf16, #tpu.memory_space<vmem>>, vector<20x2x128xbf16>,
    %c0_11 = arith.constant 0 : index
    %12 = arith.index_cast %3 : i32 to index
    %c0_12 = arith.constant 0 : index
    %c0_13 = arith.constant 0 : index
    %13 = vector.load %arg2[%c0_11, %12, %c0_12, %c0_13] : memref<1x16x16x16xf32, #tpu.memory_space<vmem>>, vector<1x16x16x16xf32>
    %14 = vector.shape_cast %13 : vector<1x16x16x16xf32> to vector<16x16x16xf32>
    %15 = arith.truncf %14 : vector<16x16x16xf32> to vector<16x16x16xbf16>
    %16 = vector.shape_cast %15 : vector<16x16x16xbf16> to vector<256x16xbf16>
    %c0_14 = arith.constant 0 : index
    %c0_15 = arith.constant 0 : index
    %17 = vector.load %arg3[%c0_14, %c0_15] : memref<16x128xbf16, #tpu.memory_space<vmem>>, vector<16x128xbf16>
    %cst_16 = arith.constant dense<0.000000e+00> : vector<256x128xf32>
    %18 = tpu.matmul %16, %17, %cst_16 {dimension_numbers = #tpu.dot_dimension_numbers<[1], [0], [0], [1], [0, 0, 1, 1], [], []>} : vector<256x16xbf16>, vector<16x128xbf16>, vector<256x128xf32> -> vector<256x128xf32>
    %c0_17 = arith.constant 0 : index
    %c0_18 = arith.constant 0 : index
    %19 = vector.load %arg4[%c0_17, %c0_18] : memref<1x128xf32, #tpu.memory_space<vmem>>, vector<1x128xf32>
    %20 = vector.broadcast %19 : vector<1x128xf32> to vector<256x128xf32>
    %21 = arith.addf %18, %20 : vector<256x128xf32>
    %cst_19 = arith.constant 3.000000e+00 : f32
    %22 = vector.broadcast %cst_19 : f32 to vector<256x128xf32>
    %23 = arith.addf %21, %22 : vector<256x128xf32>
    %cst_20 = arith.constant 0.000000e+00 : f32
    %cst_21 = arith.constant 6.000000e+00 : f32
    %24 = vector.broadcast %cst_20 : f32 to vector<256x128xf32>
    %25 = arith.maximumf %24, %23 : vector<256x128xf32>
    %26 = vector.broadcast %cst_21 : f32 to vector<256x128xf32>
    %27 = arith.minimumf %26, %25 : vector<256x128xf32>
    %28 = arith.mulf %21, %27 : vector<256x128xf32>
    %cst_22 = arith.constant 0.166666672 : f32
    %29 = vector.broadcast %cst_22 : f32 to vector<256x128xf32>
    %30 = arith.mulf %28, %29 : vector<256x128xf32>
    %31 = arith.truncf %30 : vector<256x128xf32> to vector<256x128xbf16>
    %32 = vector.shape_cast %31 : vector<256x128xbf16> to vector<16x16x128xbf16>
    %c2 = arith.constant 2 : index
    %c16 = arith.constant 16 : index
    %c0_23 = arith.constant 0 : index
    %33 = vector.load %arg8[%c2, %c16, %c0_23] : memref<20x40x128xbf16, #tpu.memory_space<vmem>>, vector<16x16x128xbf16>
    tpu.vector_store %arg8[%c2, %c16, %c0_23], %32 {strides = array<i32>} : memref<20x40x128xbf16, #tpu.memory_space<vmem>>, vector<16x16x128xbf16>,
    %c4_i32 = arith.constant 4 : i32
    %34 = arith.subi %5, %c4_i32 : i32
    %c0_i32_24 = arith.constant 0 : i32
    %c0_i32_25 = arith.constant 0 : i32
    %35 = arith.maxsi %c0_i32_24, %34 : i32
    %36 = arith.minsi %c0_i32_25, %35 : i32
    %c2_i32 = arith.constant 2 : i32
    %37 = arith.subi %5, %c2_i32 : i32
    %c0_i32_26 = arith.constant 0 : i32
    %c4_i32_27 = arith.constant 4 : i32
    %38 = arith.maxsi %c0_i32_26, %37 : i32
    %39 = arith.minsi %c4_i32_27, %38 : i32
    %c2_i32_28 = arith.constant 2 : i32
    %40 = arith.addi %c2_i32_28, %5 : i32
    %41 = arith.index_cast %40 : i32 to index
    %c16_29 = arith.constant 16 : index
    %c0_30 = arith.constant 0 : index
    %42 = vector.load %arg8[%41, %c16_29, %c0_30] : memref<20x40x128xbf16, #tpu.memory_space<vmem>>, vector<8x16x128xbf16>
    %43 = vector.shape_cast %42 : vector<8x16x128xbf16> to vector<128x128xbf16>
    %c0_31 = arith.constant 0 : index
    %c0_32 = arith.constant 0 : index
    %c0_33 = arith.constant 0 : index
    %44 = vector.load %arg5[%c0_31, %c0_32, %c0_33] : memref<4x128x128xbf16, #tpu.memory_space<vmem>>, vector<1x128x128xbf16>
    %45 = vector.shape_cast %44 : vector<1x128x128xbf16> to vector<128x128xbf16>
    %cst_34 = arith.constant dense<0.000000e+00> : vector<128x128xf32>
    %46 = tpu.matmul %43, %45, %cst_34 {dimension_numbers = #tpu.dot_dimension_numbers<[1], [0], [0], [1], [0, 0, 1, 1], [], []>} : vector<128x128xbf16>, vector<128x128xbf16>, vector<128x128xf32> -> vector<128x128xf32>
    %c0_35 = arith.constant 0 : index
    %c0_36 = arith.constant 0 : index
    %47 = vector.load %arg9[%c0_35, %c0_36] : memref<128x128xf32, #tpu.memory_space<vmem>>, vector<128x128xf32>
    tpu.vector_store %arg9[%c0_35, %c0_36], %46 {strides = array<i32>} : memref<128x128xf32, #tpu.memory_space<vmem>>, vector<128x128xf32>,
    %48 = arith.index_cast %36 : i32 to index
    %c14_37 = arith.constant 14 : index
    %c0_38 = arith.constant 0 : index
    %49 = vector.load %arg8[%48, %c14_37, %c0_38] : memref<20x40x128xbf16, #tpu.memory_space<vmem>>, vector<20x16x128xbf16>
    %50 = arith.index_cast %36 : i32 to index
    %c15 = arith.constant 15 : index
    %c0_39 = arith.constant 0 : index
    %51 = vector.load %arg8[%50, %c15, %c0_39] : memref<20x40x128xbf16, #tpu.memory_space<vmem>>, vector<20x16x128xbf16>
    %52 = arith.maximumf %49, %51 : vector<20x16x128xbf16>
    %53 = arith.index_cast %36 : i32 to index
    %c16_40 = arith.constant 16 : index
    %c0_41 = arith.constant 0 : index
    %54 = vector.load %arg8[%53, %c16_40, %c0_41] : memref<20x40x128xbf16, #tpu.memory_space<vmem>>, vector<20x16x128xbf16>
    %55 = arith.maximumf %52, %54 : vector<20x16x128xbf16>
    %56 = arith.index_cast %36 : i32 to index
    %c17 = arith.constant 17 : index
    %c0_42 = arith.constant 0 : index
    %57 = vector.load %arg8[%56, %c17, %c0_42] : memref<20x40x128xbf16, #tpu.memory_space<vmem>>, vector<20x16x128xbf16>
    %58 = arith.maximumf %55, %57 : vector<20x16x128xbf16>
    %59 = arith.index_cast %36 : i32 to index
    %c18_43 = arith.constant 18 : index
    %c0_44 = arith.constant 0 : index
    %60 = vector.load %arg8[%59, %c18_43, %c0_44] : memref<20x40x128xbf16, #tpu.memory_space<vmem>>, vector<20x16x128xbf16>
    %61 = arith.maximumf %58, %60 : vector<20x16x128xbf16>
    %62 = vector.extract_strided_slice %61 {offsets = [0, 0, 0], sizes = [16, 16, 128], strides = [1, 1, 1]} : vector<20x16x128xbf16> to vector<16x16x128xbf16>
    %63 = vector.extract_strided_slice %61 {offsets = [1, 0, 0], sizes = [16, 16, 128], strides = [1, 1, 1]} : vector<20x16x128xbf16> to vector<16x16x128xbf16>
    %64 = arith.maximumf %62, %63 : vector<16x16x128xbf16>
    %65 = vector.extract_strided_slice %61 {offsets = [2, 0, 0], sizes = [16, 16, 128], strides = [1, 1, 1]} : vector<20x16x128xbf16> to vector<16x16x128xbf16>
    %66 = arith.maximumf %64, %65 : vector<16x16x128xbf16>
    %67 = vector.extract_strided_slice %61 {offsets = [3, 0, 0], sizes = [16, 16, 128], strides = [1, 1, 1]} : vector<20x16x128xbf16> to vector<16x16x128xbf16>
    %68 = arith.maximumf %66, %67 : vector<16x16x128xbf16>
    %69 = vector.extract_strided_slice %61 {offsets = [4, 0, 0], sizes = [16, 16, 128], strides = [1, 1, 1]} : vector<20x16x128xbf16> to vector<16x16x128xbf16>
    %70 = arith.maximumf %68, %69 : vector<16x16x128xbf16>
    %c2_i32_45 = arith.constant 2 : i32
    %71 = arith.addi %c2_i32_45, %36 : i32
    %72 = arith.index_cast %71 : i32 to index
    %c16_46 = arith.constant 16 : index
    %c0_47 = arith.constant 0 : index
    %73 = vector.load %arg8[%72, %c16_46, %c0_47] : memref<20x40x128xbf16, #tpu.memory_space<vmem>>, vector<16x16x128xbf16>
    tpu.vector_store %arg8[%72, %c16_46, %c0_47], %70 {strides = array<i32>} : memref<20x40x128xbf16, #tpu.memory_space<vmem>>, vector<16x16x128xbf16>,
    %c0_48 = arith.constant 0 : index
    %c0_49 = arith.constant 0 : index
    %74 = vector.load %arg9[%c0_48, %c0_49] : memref<128x128xf32, #tpu.memory_space<vmem>>, vector<128x128xf32>
    %c2_i32_50 = arith.constant 2 : i32
    %75 = arith.addi %c2_i32_50, %5 : i32
    %76 = arith.index_cast %75 : i32 to index
    %c16_51 = arith.constant 16 : index
    %c0_52 = arith.constant 0 : index
    %77 = vector.load %arg8[%76, %c16_51, %c0_52] : memref<20x40x128xbf16, #tpu.memory_space<vmem>>, vector<8x16x128xbf16>
    %78 = vector.shape_cast %77 : vector<8x16x128xbf16> to vector<128x128xbf16>
    %c1 = arith.constant 1 : index
    %c0_53 = arith.constant 0 : index
    %c0_54 = arith.constant 0 : index
    %79 = vector.load %arg5[%c1, %c0_53, %c0_54] : memref<4x128x128xbf16, #tpu.memory_space<vmem>>, vector<1x128x128xbf16>
    %80 = vector.shape_cast %79 : vector<1x128x128xbf16> to vector<128x128xbf16>
    %cst_55 = arith.constant dense<0.000000e+00> : vector<128x128xf32>
    %81 = tpu.matmul %78, %80, %cst_55 {dimension_numbers = #tpu.dot_dimension_numbers<[1], [0], [0], [1], [0, 0, 1, 1], [], []>} : vector<128x128xbf16>, vector<128x128xbf16>, vector<128x128xf32> -> vector<128x128xf32>
    %82 = arith.addf %74, %81 : vector<128x128xf32>
    %c0_56 = arith.constant 0 : index
    %c0_57 = arith.constant 0 : index
    %83 = vector.load %arg9[%c0_56, %c0_57] : memref<128x128xf32, #tpu.memory_space<vmem>>, vector<128x128xf32>
    tpu.vector_store %arg9[%c0_56, %c0_57], %82 {strides = array<i32>} : memref<128x128xf32, #tpu.memory_space<vmem>>, vector<128x128xf32>,
    %84 = arith.index_cast %39 : i32 to index
    %c14_58 = arith.constant 14 : index
    %c0_59 = arith.constant 0 : index
    %85 = vector.load %arg8[%84, %c14_58, %c0_59] : memref<20x40x128xbf16, #tpu.memory_space<vmem>>, vector<16x16x128xbf16>
    %86 = arith.index_cast %39 : i32 to index
    %c15_60 = arith.constant 15 : index
    %c0_61 = arith.constant 0 : index
    %87 = vector.load %arg8[%86, %c15_60, %c0_61] : memref<20x40x128xbf16, #tpu.memory_space<vmem>>, vector<16x16x128xbf16>
    %88 = arith.maximumf %85, %87 : vector<16x16x128xbf16>
    %89 = arith.index_cast %39 : i32 to index
    %c16_62 = arith.constant 16 : index
    %c0_63 = arith.constant 0 : index
    %90 = vector.load %arg8[%89, %c16_62, %c0_63] : memref<20x40x128xbf16, #tpu.memory_space<vmem>>, vector<16x16x128xbf16>
    %91 = arith.maximumf %88, %90 : vector<16x16x128xbf16>
    %92 = arith.index_cast %39 : i32 to index
    %c17_64 = arith.constant 17 : index
    %c0_65 = arith.constant 0 : index
    %93 = vector.load %arg8[%92, %c17_64, %c0_65] : memref<20x40x128xbf16, #tpu.memory_space<vmem>>, vector<16x16x128xbf16>
    %94 = arith.maximumf %91, %93 : vector<16x16x128xbf16>
    %95 = arith.index_cast %39 : i32 to index
    %c18_66 = arith.constant 18 : index
    %c0_67 = arith.constant 0 : index
    %96 = vector.load %arg8[%95, %c18_66, %c0_67] : memref<20x40x128xbf16, #tpu.memory_space<vmem>>, vector<16x16x128xbf16>
    %97 = arith.maximumf %94, %96 : vector<16x16x128xbf16>
    %98 = vector.extract_strided_slice %97 {offsets = [0, 0, 0], sizes = [12, 16, 128], strides = [1, 1, 1]} : vector<16x16x128xbf16> to vector<12x16x128xbf16>
    %99 = vector.extract_strided_slice %97 {offsets = [1, 0, 0], sizes = [12, 16, 128], strides = [1, 1, 1]} : vector<16x16x128xbf16> to vector<12x16x128xbf16>
    %100 = arith.maximumf %98, %99 : vector<12x16x128xbf16>
    %101 = vector.extract_strided_slice %97 {offsets = [2, 0, 0], sizes = [12, 16, 128], strides = [1, 1, 1]} : vector<16x16x128xbf16> to vector<12x16x128xbf16>
    %102 = arith.maximumf %100, %101 : vector<12x16x128xbf16>
    %103 = vector.extract_strided_slice %97 {offsets = [3, 0, 0], sizes = [12, 16, 128], strides = [1, 1, 1]} : vector<16x16x128xbf16> to vector<12x16x128xbf16>
    %104 = arith.maximumf %102, %103 : vector<12x16x128xbf16>
    %105 = vector.extract_strided_slice %97 {offsets = [4, 0, 0], sizes = [12, 16, 128], strides = [1, 1, 1]} : vector<16x16x128xbf16> to vector<12x16x128xbf16>
    %106 = arith.maximumf %104, %105 : vector<12x16x128xbf16>
    %c2_i32_68 = arith.constant 2 : i32
    %107 = arith.addi %c2_i32_68, %39 : i32
    %108 = arith.index_cast %107 : i32 to index
    %c16_69 = arith.constant 16 : index
    %c0_70 = arith.constant 0 : index
    %109 = vector.load %arg8[%108, %c16_69, %c0_70] : memref<20x40x128xbf16, #tpu.memory_space<vmem>>, vector<12x16x128xbf16>
    tpu.vector_store %arg8[%108, %c16_69, %c0_70], %106 {strides = array<i32>} : memref<20x40x128xbf16, #tpu.memory_space<vmem>>, vector<12x16x128xbf16>,
    %c0_71 = arith.constant 0 : index
    %c0_72 = arith.constant 0 : index
    %110 = vector.load %arg9[%c0_71, %c0_72] : memref<128x128xf32, #tpu.memory_space<vmem>>, vector<128x128xf32>
    %c2_i32_73 = arith.constant 2 : i32
    %111 = arith.addi %c2_i32_73, %5 : i32
    %112 = arith.index_cast %111 : i32 to index
    %c16_74 = arith.constant 16 : index
    %c0_75 = arith.constant 0 : index
    %113 = vector.load %arg8[%112, %c16_74, %c0_75] : memref<20x40x128xbf16, #tpu.memory_space<vmem>>, vector<8x16x128xbf16>
    %114 = vector.shape_cast %113 : vector<8x16x128xbf16> to vector<128x128xbf16>
    %c2_76 = arith.constant 2 : index
    %c0_77 = arith.constant 0 : index
    %c0_78 = arith.constant 0 : index
    %115 = vector.load %arg5[%c2_76, %c0_77, %c0_78] : memref<4x128x128xbf16, #tpu.memory_space<vmem>>, vector<1x128x128xbf16>
    %116 = vector.shape_cast %115 : vector<1x128x128xbf16> to vector<128x128xbf16>
    %cst_79 = arith.constant dense<0.000000e+00> : vector<128x128xf32>
    %117 = tpu.matmul %114, %116, %cst_79 {dimension_numbers = #tpu.dot_dimension_numbers<[1], [0], [0], [1], [0, 0, 1, 1], [], []>} : vector<128x128xbf16>, vector<128x128xbf16>, vector<128x128xf32> -> vector<128x128xf32>
    %118 = arith.addf %110, %117 : vector<128x128xf32>
    %c0_80 = arith.constant 0 : index
    %c0_81 = arith.constant 0 : index
    %119 = vector.load %arg9[%c0_80, %c0_81] : memref<128x128xf32, #tpu.memory_space<vmem>>, vector<128x128xf32>
    tpu.vector_store %arg9[%c0_80, %c0_81], %118 {strides = array<i32>} : memref<128x128xf32, #tpu.memory_space<vmem>>, vector<128x128xf32>,
    %120 = arith.index_cast %5 : i32 to index
    %c14_82 = arith.constant 14 : index
    %c0_83 = arith.constant 0 : index
    %121 = vector.load %arg8[%120, %c14_82, %c0_83] : memref<20x40x128xbf16, #tpu.memory_space<vmem>>, vector<12x16x128xbf16>
    %122 = arith.index_cast %5 : i32 to index
    %c15_84 = arith.constant 15 : index
    %c0_85 = arith.constant 0 : index
    %123 = vector.load %arg8[%122, %c15_84, %c0_85] : memref<20x40x128xbf16, #tpu.memory_space<vmem>>, vector<12x16x128xbf16>
    %124 = arith.maximumf %121, %123 : vector<12x16x128xbf16>
    %125 = arith.index_cast %5 : i32 to index
    %c16_86 = arith.constant 16 : index
    %c0_87 = arith.constant 0 : index
    %126 = vector.load %arg8[%125, %c16_86, %c0_87] : memref<20x40x128xbf16, #tpu.memory_space<vmem>>, vector<12x16x128xbf16>
    %127 = arith.maximumf %124, %126 : vector<12x16x128xbf16>
    %128 = arith.index_cast %5 : i32 to index
    %c17_88 = arith.constant 17 : index
    %c0_89 = arith.constant 0 : index
    %129 = vector.load %arg8[%128, %c17_88, %c0_89] : memref<20x40x128xbf16, #tpu.memory_space<vmem>>, vector<12x16x128xbf16>
    %130 = arith.maximumf %127, %129 : vector<12x16x128xbf16>
    %131 = arith.index_cast %5 : i32 to index
    %c18_90 = arith.constant 18 : index
    %c0_91 = arith.constant 0 : index
    %132 = vector.load %arg8[%131, %c18_90, %c0_91] : memref<20x40x128xbf16, #tpu.memory_space<vmem>>, vector<12x16x128xbf16>
    %133 = arith.maximumf %130, %132 : vector<12x16x128xbf16>
    %134 = vector.extract_strided_slice %133 {offsets = [0, 0, 0], sizes = [8, 16, 128], strides = [1, 1, 1]} : vector<12x16x128xbf16> to vector<8x16x128xbf16>
    %135 = vector.extract_strided_slice %133 {offsets = [1, 0, 0], sizes = [8, 16, 128], strides = [1, 1, 1]} : vector<12x16x128xbf16> to vector<8x16x128xbf16>
    %136 = arith.maximumf %134, %135 : vector<8x16x128xbf16>
    %137 = vector.extract_strided_slice %133 {offsets = [2, 0, 0], sizes = [8, 16, 128], strides = [1, 1, 1]} : vector<12x16x128xbf16> to vector<8x16x128xbf16>
    %138 = arith.maximumf %136, %137 : vector<8x16x128xbf16>
    %139 = vector.extract_strided_slice %133 {offsets = [3, 0, 0], sizes = [8, 16, 128], strides = [1, 1, 1]} : vector<12x16x128xbf16> to vector<8x16x128xbf16>
    %140 = arith.maximumf %138, %139 : vector<8x16x128xbf16>
    %141 = vector.extract_strided_slice %133 {offsets = [4, 0, 0], sizes = [8, 16, 128], strides = [1, 1, 1]} : vector<12x16x128xbf16> to vector<8x16x128xbf16>
    %142 = arith.maximumf %140, %141 : vector<8x16x128xbf16>
    %c0_92 = arith.constant 0 : index
    %c0_93 = arith.constant 0 : index
    %143 = vector.load %arg9[%c0_92, %c0_93] : memref<128x128xf32, #tpu.memory_space<vmem>>, vector<128x128xf32>
    %144 = vector.shape_cast %142 : vector<8x16x128xbf16> to vector<128x128xbf16>
    %c3 = arith.constant 3 : index
    %c0_94 = arith.constant 0 : index
    %c0_95 = arith.constant 0 : index
    %145 = vector.load %arg5[%c3, %c0_94, %c0_95] : memref<4x128x128xbf16, #tpu.memory_space<vmem>>, vector<1x128x128xbf16>
    %146 = vector.shape_cast %145 : vector<1x128x128xbf16> to vector<128x128xbf16>
    %cst_96 = arith.constant dense<0.000000e+00> : vector<128x128xf32>
    %147 = tpu.matmul %144, %146, %cst_96 {dimension_numbers = #tpu.dot_dimension_numbers<[1], [0], [0], [1], [0, 0, 1, 1], [], []>} : vector<128x128xbf16>, vector<128x128xbf16>, vector<128x128xf32> -> vector<128x128xf32>
    %148 = arith.addf %143, %147 : vector<128x128xf32>
    %c0_97 = arith.constant 0 : index
    %c0_98 = arith.constant 0 : index
    %149 = vector.load %arg9[%c0_97, %c0_98] : memref<128x128xf32, #tpu.memory_space<vmem>>, vector<128x128xf32>
    tpu.vector_store %arg9[%c0_97, %c0_98], %148 {strides = array<i32>} : memref<128x128xf32, #tpu.memory_space<vmem>>, vector<128x128xf32>,
    %c0_99 = arith.constant 0 : index
    %c0_100 = arith.constant 0 : index
    %150 = vector.load %arg9[%c0_99, %c0_100] : memref<128x128xf32, #tpu.memory_space<vmem>>, vector<128x128xf32>
    %c0_101 = arith.constant 0 : index
    %c0_102 = arith.constant 0 : index
    %151 = vector.load %arg6[%c0_101, %c0_102] : memref<1x128xf32, #tpu.memory_space<vmem>>, vector<1x128xf32>
    %152 = vector.broadcast %151 : vector<1x128xf32> to vector<128x128xf32>
    %153 = arith.addf %150, %152 : vector<128x128xf32>
    %cst_103 = arith.constant 3.000000e+00 : f32
    %154 = vector.broadcast %cst_103 : f32 to vector<128x128xf32>
    %155 = arith.addf %153, %154 : vector<128x128xf32>
    %cst_104 = arith.constant 0.000000e+00 : f32
    %cst_105 = arith.constant 6.000000e+00 : f32
    %156 = vector.broadcast %cst_104 : f32 to vector<128x128xf32>
    %157 = arith.maximumf %156, %155 : vector<128x128xf32>
    %158 = vector.broadcast %cst_105 : f32 to vector<128x128xf32>
    %159 = arith.minimumf %158, %157 : vector<128x128xf32>
    %160 = arith.mulf %153, %159 : vector<128x128xf32>
    %cst_106 = arith.constant 0.166666672 : f32
    %161 = vector.broadcast %cst_106 : f32 to vector<128x128xf32>
    %162 = arith.mulf %160, %161 : vector<128x128xf32>
    %163 = vector.shape_cast %162 : vector<128x128xf32> to vector<8x16x128xf32>
    %c0_107 = arith.constant 0 : index
    %c0_108 = arith.constant 0 : index
    %c0_109 = arith.constant 0 : index
    %c0_110 = arith.constant 0 : index
    %164 = vector.load %arg7[%c0_107, %c0_108, %c0_109, %c0_110] : memref<1x8x16x128xf32, #tpu.memory_space<vmem>>, vector<1x8x16x128xf32>
    %165 = vector.shape_cast %164 : vector<1x8x16x128xf32> to vector<8x16x128xf32>
    %166 = vector.shape_cast %163 : vector<8x16x128xf32> to vector<1x8x16x128xf32>
    tpu.vector_store %arg7[%c0_107, %c0_108, %c0_109, %c0_110], %166 {strides = array<i32>} : memref<1x8x16x128xf32, #tpu.memory_space<vmem>>, vector<1x8x16x128xf32>,
    return
  }
  func.func @transform_0(%arg0: i32, %arg1: i32) -> (i32, i32, i32, i32) {
    %c0_i32 = arith.constant 0 : i32
    %c0_i32_0 = arith.constant 0 : i32
    %c0_i32_1 = arith.constant 0 : i32
    %c0_i32_2 = arith.constant 0 : i32
    return %arg0, %c0_i32, %c0_i32_0, %c0_i32_1 : i32, i32, i32, i32
  }
  func.func @transform_1(%arg0: i32, %arg1: i32) -> (i32, i32) {
    %c0_i32 = arith.constant 0 : i32
    %c0_i32_0 = arith.constant 0 : i32
    %c0_i32_1 = arith.constant 0 : i32
    return %c0_i32, %c0_i32_0 : i32, i32
  }
  func.func @transform_2(%arg0: i32, %arg1: i32) -> (i32, i32) {
    %c0_i32 = arith.constant 0 : i32
    %c0_i32_0 = arith.constant 0 : i32
    %c0_i32_1 = arith.constant 0 : i32
    return %c0_i32, %c0_i32_0 : i32, i32
  }
  func.func @transform_3(%arg0: i32, %arg1: i32) -> (i32, i32, i32) {
    %c0_i32 = arith.constant 0 : i32
    %c0_i32_0 = arith.constant 0 : i32
    %c0_i32_1 = arith.constant 0 : i32
    %c0_i32_2 = arith.constant 0 : i32
    return %c0_i32, %c0_i32_0, %c0_i32_1 : i32, i32, i32
  }
  func.func @transform_4(%arg0: i32, %arg1: i32) -> (i32, i32) {
    %c0_i32 = arith.constant 0 : i32
    %c0_i32_0 = arith.constant 0 : i32
    %c0_i32_1 = arith.constant 0 : i32
    return %c0_i32, %c0_i32_0 : i32, i32
  }
  func.func @transform_5(%arg0: i32, %arg1: i32) -> (i32, i32, i32, i32) {
    %c0_i32 = arith.constant 0 : i32
    %c0_i32_0 = arith.constant 0 : i32
    %c0_i32_1 = arith.constant 0 : i32
    return %arg0, %arg1, %c0_i32, %c0_i32_0 : i32, i32, i32, i32
  }
}

</mosaic_0001>

<llo_original>
// kernel: tpu_custom_call.1
$region0: #{tpu_custom_call.1}
  #allocation0 [shape = 'u32[]', space=smem, size = 0x4, offset = 0x4, fixed_abs, tag = 'smem constant byte address 0x4 - core index']
  #allocation1 [shape = 'u32[144,128]{1,0:T(1,128)}', space=vmem, size = 0x12000, scoped, tag = 'internal scratch']
  #allocation2 [shape = 'bf16[20,40,128]{2,1,0:T(8,128)(2,1)}', space=vmem, size = 0x32000, scoped, tag = 'scratch operand']
  #allocation3 [shape = 'f32[128,128]{1,0:T(8,128)}', space=vmem, size = 0x10000, scoped, tag = 'scratch operand']
  %s0 = inlined_call_operand.hbm [shape: f32[2,16,16,16], index: 0, kind: input, shape index: {}]
  %s1 = inlined_call_operand.hbm [shape: bf16[16,128], index: 1, kind: input, shape index: {}]
  %s2 = inlined_call_operand.vmem [shape: f32[1,128], index: 2, kind: input, shape index: {}]
  %s3 = inlined_call_operand.hbm [shape: bf16[4,128,128], index: 3, kind: input, shape index: {}]
  %s4 = inlined_call_operand.vmem [shape: f32[1,128], index: 4, kind: input, shape index: {}]
  %s5 = inlined_call_operand.hbm [shape: f32[2,16,16,128], index: 5, kind: output, shape index: {}]
  %s6 = sld [smem:[#allocation0]]
  $region65: #{tpu_custom_call.1} parent=0
    _
  %s8 = ssub.s32 1, %s6
  %s9 = scalar_select 0, %s8, %s6
  $region1: #{tpu_custom_call.1} parent=0
    #allocation4 [shape = 'u8[262144]{0}', space=vmem, size = 0x40000, scoped, tag = 'input window, operand 0']
    #allocation5 [shape = 's32[2]{0}', space=sflag, size = 0x8, scoped, tag = 'scoped memory for tpu_custom_call.1']
    #allocation6 [shape = 's32[2]{0}', space=sflag, size = 0x8, scoped, tag = 'scoped memory for tpu_custom_call.1']
    #allocation7 [shape = 'u8[4096]{0}', space=vmem, size = 0x1000, scoped, tag = 'input window, operand 1, single buffered']
    #allocation8 [shape = 's32[1]{0}', space=sflag, size = 0x4, scoped, tag = 'scoped memory for tpu_custom_call.1']
    #allocation9 [shape = 'u8[131072]{0}', space=vmem, size = 0x20000, scoped, tag = 'input window, operand 3, single buffered']
    #allocation10 [shape = 'u8[131072]{0}', space=vmem, size = 0x20000, scoped, tag = 'output window, operand 0']
    %10 = vsyncpa [#allocation5], 0
    %s11 = scalar_lea.sflag [#allocation5], 1
    %12 = vsyncpa %s11, 0
    %13 = vsyncpa [#allocation8], 0
    %14 = vsyncpa [#allocation6], 0
    %s15 = scalar_lea.sflag [#allocation6], 1
    %16 = vsyncpa %s15, 0
    loop: start=0, step=1, limit=6
    $region2: #{tpu_custom_call.1} parent=1 // loop_pre_header
      _
    $region3: #{tpu_custom_call.1} parent=1 // loop_header
      %s18 = sphi 0, %s22
      %p19 = scmp.ge.s32.totalorder %s18, 6
      %s25 = sphi 0, %s37
      %s26 = sphi 0, %s33
      %s27 = sphi 0, %s25
      %s28 = sphi 0, %s26
      %s29 = sphi 0, %s27
      %s30 = sphi 0, %s28
      %s40 = sphi 0, %s42
      %s43 = sphi 0, %s40
      %s44 = sphi 0, %s43
      %s60 = sphi 0, %s44
      %s64 = sphi 0, %s64
      %s66 = sphi 0, %s64
      %s67 = sphi 0, %s66
      %s81 = sphi 0, %s67
      %s85 = sphi 0, %s85
      %s87 = sphi 0, %s85
      %s88 = sphi 0, %s87
      %s102 = sphi 0, %s88
      %s106 = sphi 0, %s106
      %s108 = sphi 0, %s106
      %s109 = sphi 0, %s108
      %s123 = sphi 0, %s109
      %s127 = sphi 0, %s127
      %s129 = sphi 0, %s127
      %s130 = sphi 0, %s129
      %s144 = sphi 0, %s130
      %s152 = sphi 0, %s154
      %s155 = sphi 0, %s152
      %s156 = sphi 0, %s155
      %s172 = sphi 0, %s156
    $region4: #{tpu_custom_call.1} parent=1 // loop_header_branch
      %21 = sbr.rel (%p19) target = $region8
    $region5: #{tpu_custom_call.1} parent=1 // loop_body
      %s23 = ssub.s32 %s18, 1
      %s24 = ssub.s32 %s18, 2
      %s31 = sadd.s32 1, %s26
      %p32 = scmp.ge.s32.totalorder %s31, 2
      %s33 = scalar_select %p32, 0, %s31
      %s34 = sadd.s32 1, %s25
      %s35 = scalar_select %p32, %s34, %s25
      %p36 = scmp.ge.s32.totalorder %s35, 2
      %s37 = scalar_select %p36, 0, %s35
      %s38 = ssub.s32 %s25, %s37
      %p39 = scmp.eq.s32.totalorder %s38, 0
      %s41 = sadd.s32 %s40, 1
      %s42 = scalar_select %p39, %s40, %s41
      %p45 = pneg %p39
      %p46 = scmp.eq.s32.totalorder %s18, 3
      %p47 = por %p45, %p46
      %p48 = scmp.ne.s32.totalorder %s40, %s43
      %p49 = scmp.eq.s32.totalorder %s18, 0
      %p50 = por %p48, %p49
      %p51 = scmp.ne.s32.totalorder %s40, %s43
      %p52 = scmp.eq.s32.totalorder %s23, 3
      %p53 = por %p51, %p52
      %p54 = scmp.ne.s32.totalorder %s43, %s44
      %p55 = scmp.eq.s32.totalorder %s23, 0
      %p56 = por %p54, %p55
      %p57 = scmp.ne.s32.totalorder %s43, %s44
      %p58 = scmp.eq.s32.totalorder %s24, 3
      %p59 = por %p57, %p58
      %p61 = scmp.ne.s32.totalorder %s44, %s60
      %p62 = scmp.eq.s32.totalorder %s24, 0
      %p63 = por %p61, %p62
      %s65 = sadd.s32 %s64, 1
      %p68 = scmp.eq.s32.totalorder %s18, 3
      %p69 = scmp.ne.s32.totalorder %s64, %s66
      %p70 = scmp.eq.s32.totalorder %s18, 0
      %p71 = por %p69, %p70
      %p72 = scmp.ne.s32.totalorder %s64, %s66
      %p73 = scmp.eq.s32.totalorder %s23, 3
      %p74 = por %p72, %p73
      %p75 = scmp.ne.s32.totalorder %s66, %s67
      %p76 = scmp.eq.s32.totalorder %s23, 0
      %p77 = por %p75, %p76
      %p78 = scmp.ne.s32.totalorder %s66, %s67
      %p79 = scmp.eq.s32.totalorder %s24, 3
      %p80 = por %p78, %p79
      %p82 = scmp.ne.s32.totalorder %s67, %s81
      %p83 = scmp.eq.s32.totalorder %s24, 0
      %p84 = por %p82, %p83
      %s86 = sadd.s32 %s85, 1
      %p89 = scmp.eq.s32.totalorder %s18, 3
      %p90 = scmp.ne.s32.totalorder %s85, %s87
      %p91 = scmp.eq.s32.totalorder %s18, 0
      %p92 = por %p90, %p91
      %p93 = scmp.ne.s32.totalorder %s85, %s87
      %p94 = scmp.eq.s32.totalorder %s23, 3
      %p95 = por %p93, %p94
      %p96 = scmp.ne.s32.totalorder %s87, %s88
      %p97 = scmp.eq.s32.totalorder %s23, 0
      %p98 = por %p96, %p97
      %p99 = scmp.ne.s32.totalorder %s87, %s88
      %p100 = scmp.eq.s32.totalorder %s24, 3
      %p101 = por %p99, %p100
      %p103 = scmp.ne.s32.totalorder %s88, %s102
      %p104 = scmp.eq.s32.totalorder %s24, 0
      %p105 = por %p103, %p104
      %s107 = sadd.s32 %s106, 1
      %p110 = scmp.eq.s32.totalorder %s18, 3
      %p111 = scmp.ne.s32.totalorder %s106, %s108
      %p112 = scmp.eq.s32.totalorder %s18, 0
      %p113 = por %p111, %p112
      %p114 = scmp.ne.s32.totalorder %s106, %s108
      %p115 = scmp.eq.s32.totalorder %s23, 3
      %p116 = por %p114, %p115
      %p117 = scmp.ne.s32.totalorder %s108, %s109
      %p118 = scmp.eq.s32.totalorder %s23, 0
      %p119 = por %p117, %p118
      %p120 = scmp.ne.s32.totalorder %s108, %s109
      %p121 = scmp.eq.s32.totalorder %s24, 3
      %p122 = por %p120, %p121
      %p124 = scmp.ne.s32.totalorder %s109, %s123
      %p125 = scmp.eq.s32.totalorder %s24, 0
      %p126 = por %p124, %p125
      %s128 = sadd.s32 %s127, 1
      %p131 = scmp.eq.s32.totalorder %s18, 3
      %p132 = scmp.ne.s32.totalorder %s127, %s129
      %p133 = scmp.eq.s32.totalorder %s18, 0
      %p134 = por %p132, %p133
      %p135 = scmp.ne.s32.totalorder %s127, %s129
      %p136 = scmp.eq.s32.totalorder %s23, 3
      %p137 = por %p135, %p136
      %p138 = scmp.ne.s32.totalorder %s129, %s130
      %p139 = scmp.eq.s32.totalorder %s23, 0
      %p140 = por %p138, %p139
      %p141 = scmp.ne.s32.totalorder %s129, %s130
      %p142 = scmp.eq.s32.totalorder %s24, 3
      %p143 = por %p141, %p142
      %p145 = scmp.ne.s32.totalorder %s130, %s144
      %p146 = scmp.eq.s32.totalorder %s24, 0
      %p147 = por %p145, %p146
      %s148 = ssub.s32 %s25, %s37
      %s149 = ssub.s32 %s26, %s33
      %s150 = sor.u32 %s148, %s149
      %p151 = scmp.eq.s32.totalorder %s150, 0
      %s153 = sadd.s32 %s152, 1
      %s154 = scalar_select %p151, %s152, %s153
      %p157 = pneg %p151
      %p158 = scmp.eq.s32.totalorder %s18, 3
      %p159 = por %p157, %p158
      %p160 = scmp.ne.s32.totalorder %s152, %s155
      %p161 = scmp.eq.s32.totalorder %s18, 0
      %p162 = por %p160, %p161
      %p163 = scmp.ne.s32.totalorder %s152, %s155
      %p164 = scmp.eq.s32.totalorder %s23, 3
      %p165 = por %p163, %p164
      %p166 = scmp.ne.s32.totalorder %s155, %s156
      %p167 = scmp.eq.s32.totalorder %s23, 0
      %p168 = por %p166, %p167
      %p169 = scmp.ne.s32.totalorder %s155, %s156
      %p170 = scmp.eq.s32.totalorder %s24, 3
      %p171 = por %p169, %p170
      %p173 = scmp.ne.s32.totalorder %s156, %s172
      %p174 = scmp.eq.s32.totalorder %s24, 0
      %p175 = por %p173, %p174
      %p176 = scmp.le.s32.totalorder 1, %s18
      %p177 = scmp.lt.s32.totalorder %s18, 5
      %p178 = pnand %p176, %p177
      %p179 = pneg %p178
      // Predicated region
      $region9: #{tpu_custom_call.1} parent=5 // pred_check
        _
      $region10: #{tpu_custom_call.1} parent=5 // pred_check_branch
        %181 = sbr.rel (%p178) target = $region12
      $region11: #{tpu_custom_call.1} parent=5 // pred_region
        %s182 = ssub.s32 %s18, 1
        // Predicated region
        $region13: #{tpu_custom_call.1} parent=11 // pred_check
          %p183 = pneg %p77
        $region14: #{tpu_custom_call.1} parent=11 // pred_check_branch
          %185 = sbr.rel (%p183) target = $region16
        $region15: #{tpu_custom_call.1} parent=11 // pred_region
          %s187 = ssub.s32 128, 128
          %188 = vsyncadd [#allocation8], %s187
          %s189 = sshll.u32 [#allocation7], 4
          %s190 = int_to_ptr.vmem [resolvable:$true] %s189
          %195 = dma.hbm_to_vmem [thread:$0]  %s1, 128, %s190, [#allocation8], 64, 64, 4
        $region16: #{tpu_custom_call.1} parent=11 // pred_fallthru
          _
        // Predicated region
        $region17: #{tpu_custom_call.1} parent=11 // pred_check
          %p196 = pneg %p98
        $region18: #{tpu_custom_call.1} parent=11 // pred_check_branch
          %198 = sbr.rel (%p196) target = $region20
        $region19: #{tpu_custom_call.1} parent=11 // pred_region
          _
        $region20: #{tpu_custom_call.1} parent=11 // pred_fallthru
          _
        // Predicated region
        $region21: #{tpu_custom_call.1} parent=11 // pred_check
          %p199 = pneg %p119
        $region22: #{tpu_custom_call.1} parent=11 // pred_check_branch
          %201 = sbr.rel (%p199) target = $region24
        $region23: #{tpu_custom_call.1} parent=11 // pred_region
          %s203 = ssub.s32 4096, 4096
          %204 = vsyncadd [#allocation8], %s203
          %s205 = sshll.u32 [#allocation9], 4
          %s206 = int_to_ptr.vmem [resolvable:$true] %s205
          %211 = dma.hbm_to_vmem [thread:$0]  %s3, 4096, %s206, [#allocation8], 64, 64, 4
        $region24: #{tpu_custom_call.1} parent=11 // pred_fallthru
          _
        // Predicated region
        $region25: #{tpu_custom_call.1} parent=11 // pred_check
          %p212 = pneg %p140
        $region26: #{tpu_custom_call.1} parent=11 // pred_check_branch
          %214 = sbr.rel (%p212) target = $region28
        $region27: #{tpu_custom_call.1} parent=11 // pred_region
          _
        $region28: #{tpu_custom_call.1} parent=11 // pred_fallthru
          _
      $region12: #{tpu_custom_call.1} parent=5 // pred_fallthru
        _
      %p215 = scmp.lt.s32.totalorder %s18, 4
      // Predicated region
      $region29: #{tpu_custom_call.1} parent=5 // pred_check
        %p216 = pneg %p215
      $region30: #{tpu_custom_call.1} parent=5 // pred_check_branch
        %218 = sbr.rel (%p216) target = $region32
      $region31: #{tpu_custom_call.1} parent=5 // pred_region
        // Predicated region
        $region33: #{tpu_custom_call.1} parent=31 // pred_check
          %p219 = pneg %p50
        $region34: #{tpu_custom_call.1} parent=31 // pred_check_branch
          %221 = sbr.rel (%p219) target = $region36
        $region35: #{tpu_custom_call.1} parent=31 // pred_region
          %s222 = sand.u32 %s40, 1
          %s223 = scalar_lea.sflag [#allocation5], %s222
          %s224 = sand.u32 %s40, 1
          %s225 = smul.addr %s224, 256
          %s226 = scalar_lea.vmem [#allocation4], %s225
          %s228 = ssub.s32 4096, 4096
          %229 = vsyncadd %s223, %s228
          %s230 = smul.addr %s25, 32
          %s231 = smul.addr %s230, 128
          %s232 = scalar_lea.hbm %s0, %s231
          %s233 = sshll.u32 %s226, 4
          %s234 = int_to_ptr.vmem [resolvable:$true] %s233
          %239 = dma.hbm_to_vmem [thread:$0]  %s232, 4096, %s234, %s223, 128, 128, 8
        $region36: #{tpu_custom_call.1} parent=31 // pred_fallthru
          _
      $region32: #{tpu_custom_call.1} parent=5 // pred_fallthru
        _
      %p240 = scmp.le.s32.totalorder 1, %s18
      %p241 = scmp.lt.s32.totalorder %s18, 5
      %p242 = pnand %p240, %p241
      %p243 = pneg %p242
      // Predicated region
      $region37: #{tpu_custom_call.1} parent=5 // pred_check
        _
      $region38: #{tpu_custom_call.1} parent=5 // pred_check_branch
        %245 = sbr.rel (%p242) target = $region40
      $region39: #{tpu_custom_call.1} parent=5 // pred_region
        %s246 = ssub.s32 %s18, 1
        %s247 = sand.u32 %s43, 1
        %s248 = scalar_lea.sflag [#allocation5], %s247
        %s249 = sand.u32 %s43, 1
        %s250 = smul.addr %s249, 256
        %s251 = scalar_lea.vmem [#allocation4], %s250
        // Predicated region
        $region41: #{tpu_custom_call.1} parent=39 // pred_check
          %p252 = pneg %p56
        $region42: #{tpu_custom_call.1} parent=39 // pred_check_branch
          %254 = sbr.rel (%p252) target = $region44
        $region43: #{tpu_custom_call.1} parent=39 // pred_region
          %255 = dma.done %s248, 4096
        $region44: #{tpu_custom_call.1} parent=39 // pred_fallthru
          _
        // Predicated region
        $region45: #{tpu_custom_call.1} parent=39 // pred_check
          %p256 = pneg %p77
        $region46: #{tpu_custom_call.1} parent=39 // pred_check_branch
          %258 = sbr.rel (%p256) target = $region48
        $region47: #{tpu_custom_call.1} parent=39 // pred_region
          %259 = dma.done [#allocation8], 128
        $region48: #{tpu_custom_call.1} parent=39 // pred_fallthru
          _
        // Predicated region
        $region49: #{tpu_custom_call.1} parent=39 // pred_check
          %p260 = pneg %p119
        $region50: #{tpu_custom_call.1} parent=39 // pred_check_branch
          %262 = sbr.rel (%p260) target = $region52
        $region51: #{tpu_custom_call.1} parent=39 // pred_region
          %263 = dma.done [#allocation8], 4096
        $region52: #{tpu_custom_call.1} parent=39 // pred_fallthru
          _
        %s264 = sand.u32 %s43, 1
        %s265 = scalar_lea.sflag [#allocation5], %s264
        %s266 = sand.u32 %s43, 1
        %s267 = smul.addr %s266, 256
        %s268 = scalar_lea.vmem [#allocation4], %s267
        %p269 = pneg %p56
        %p270 = pneg %p53
        %p271 = pneg %p77
        %p272 = pneg %p74
        %p273 = pneg %p98
        %p274 = pneg %p95
        %p275 = pneg %p119
        %p276 = pneg %p116
        %p277 = pneg %p140
        %p278 = pneg %p137
        %p279 = pneg %p168
        %p280 = pneg %p165
        %s281 = sand.u32 %s155, 1
        %s282 = scalar_lea.sflag [#allocation6], %s281
        %s283 = sand.u32 %s155, 1
        %s284 = smul.addr %s283, 128
        %s285 = scalar_lea.vmem [#allocation10], %s284
        %s286 = smul.u32 8, %s28
        %s289 = smul.u32 %s28, 8
        %s290 = ssub.s32 %s289, 6
        %p291 = scmp.gt.s32.totalorder %s290, 0
        %s292 = scalar_select %p291, %s290, 0
        %p293 = scmp.lt.s32.totalorder %s292, 0
        %s294 = scalar_select %p293, %s292, 0
        %s295 = ssub.s32 %s289, %s294
        %296 = vst [vmem:[#allocation2] sm:$0xf] 4286644096
        %297 = vst [vmem:[#allocation2 + $0x4] sm:$0xf] 4286644096
        %298 = vst [vmem:[#allocation2 + $0x8] sm:$0xf] 4286644096
        %299 = vst [vmem:[#allocation2 + $0xc] sm:$0xf] 4286644096
        %300 = vst [vmem:[#allocation2 + $0x10] sm:$0xf] 4286644096
        %301 = vst [vmem:[#allocation2 + $0x14] sm:$0xf] 4286644096
        %302 = vst [vmem:[#allocation2 + $0x18] sm:$0xf] 4286644096
        %303 = vst [vmem:[#allocation2 + $0x1c] sm:$0xf] 4286644096
        %304 = vst [vmem:[#allocation2 + $0x20] sm:$0xf] 4286644096
        %305 = vst [vmem:[#allocation2 + $0x24] sm:$0xf] 4286644096
        %s306 = scalar_lea.vmem [#allocation2], 360
        %307 = vst [vmem:[%s306] sm:$0xf] 4286644096
        %308 = vst [vmem:[%s306 + $0x4] sm:$0xf] 4286644096
        %309 = vst [vmem:[%s306 + $0x8] sm:$0xf] 4286644096
        %310 = vst [vmem:[%s306 + $0xc] sm:$0xf] 4286644096
        %311 = vst [vmem:[%s306 + $0x10] sm:$0xf] 4286644096
        %312 = vst [vmem:[%s306 + $0x14] sm:$0xf] 4286644096
        %313 = vst [vmem:[%s306 + $0x18] sm:$0xf] 4286644096
        %314 = vst [vmem:[%s306 + $0x1c] sm:$0xf] 4286644096
        %315 = vst [vmem:[%s306 + $0x20] sm:$0xf] 4286644096
        %316 = vst [vmem:[%s306 + $0x24] sm:$0xf] 4286644096
        %317 = vst [vmem:[#allocation2 + $0x4] sm:$0x8] 4286644096
        %318 = vst [vmem:[#allocation2 + $0x18] sm:$0x8] 4286644096
        %319 = vst [vmem:[#allocation2 + $0x2c] sm:$0x8] 4286644096
        %320 = vst [vmem:[#allocation2 + $0x40] sm:$0x8] 4286644096
        %321 = vst [vmem:[#allocation2 + $0x54] sm:$0x8] 4286644096
        %322 = vst [vmem:[#allocation2 + $0x68] sm:$0x8] 4286644096
        %323 = vst [vmem:[#allocation2 + $0x7c] sm:$0x8] 4286644096
        %324 = vst [vmem:[#allocation2 + $0x90] sm:$0x8] 4286644096
        %325 = vst [vmem:[#allocation2 + $0xa4] sm:$0x8] 4286644096
        %326 = vst [vmem:[#allocation2 + $0xb8] sm:$0x8] 4286644096
        %327 = vst [vmem:[#allocation2 + $0xcc] sm:$0x8] 4286644096
        %328 = vst [vmem:[#allocation2 + $0xe0] sm:$0x8] 4286644096
        %329 = vst [vmem:[#allocation2 + $0xf4] sm:$0x8] 4286644096
        %330 = vst [vmem:[#allocation2 + $0x108] sm:$0x8] 4286644096
        %331 = vst [vmem:[#allocation2 + $0x11c] sm:$0x8] 4286644096
        %332 = vst [vmem:[#allocation2 + $0x130] sm:$0x8] 4286644096
        %333 = vst [vmem:[#allocation2 + $0x144] sm:$0x8] 4286644096
        %334 = vst [vmem:[#allocation2 + $0x158] sm:$0x8] 4286644096
        %335 = vst [vmem:[#allocation2 + $0x16c] sm:$0x8] 4286644096
        %336 = vst [vmem:[#allocation2 + $0x180] sm:$0x8] 4286644096
        %337 = vst [vmem:[#allocation2 + $0x10] sm:$0x1] 4286644096
        %338 = vst [vmem:[#allocation2 + $0x24] sm:$0x1] 4286644096
        %339 = vst [vmem:[#allocation2 + $0x38] sm:$0x1] 4286644096
        %340 = vst [vmem:[#allocation2 + $0x4c] sm:$0x1] 4286644096
        %341 = vst [vmem:[#allocation2 + $0x60] sm:$0x1] 4286644096
        %342 = vst [vmem:[#allocation2 + $0x74] sm:$0x1] 4286644096
        %343 = vst [vmem:[#allocation2 + $0x88] sm:$0x1] 4286644096
        %344 = vst [vmem:[#allocation2 + $0x9c] sm:$0x1] 4286644096
        %345 = vst [vmem:[#allocation2 + $0xb0] sm:$0x1] 4286644096
        %346 = vst [vmem:[#allocation2 + $0xc4] sm:$0x1] 4286644096
        %347 = vst [vmem:[#allocation2 + $0xd8] sm:$0x1] 4286644096
        %348 = vst [vmem:[#allocation2 + $0xec] sm:$0x1] 4286644096
        %349 = vst [vmem:[#allocation2 + $0x100] sm:$0x1] 4286644096
        %350 = vst [vmem:[#allocation2 + $0x114] sm:$0x1] 4286644096
        %351 = vst [vmem:[#allocation2 + $0x128] sm:$0x1] 4286644096
        %352 = vst [vmem:[#allocation2 + $0x13c] sm:$0x1] 4286644096
        %353 = vst [vmem:[#allocation2 + $0x150] sm:$0x1] 4286644096
        %354 = vst [vmem:[#allocation2 + $0x164] sm:$0x1] 4286644096
        %355 = vst [vmem:[#allocation2 + $0x178] sm:$0x1] 4286644096
        %356 = vst [vmem:[#allocation2 + $0x18c] sm:$0x1] 4286644096
        %s357 = smul.u32 %s294, 16
        %s358 = scalar_lea.vmem %s251, %s357 [#allocation4]
        %v359 = vld [vmem:[%s358] sm:$0xff]
        %v360 = vld [vmem:[%s358 + $0x8] sm:$0xff]
        %v361 = vld [vmem:[%s358 + $0x10] sm:$0xff]
        %v362 = vld [vmem:[%s358 + $0x18] sm:$0xff]
        %v363 = vld [vmem:[%s358 + $0x20] sm:$0xff]
        %v364 = vld [vmem:[%s358 + $0x28] sm:$0xff]
        %v365 = vld [vmem:[%s358 + $0x30] sm:$0xff]
        %v366 = vld [vmem:[%s358 + $0x38] sm:$0xff]
        %v367 = vld [vmem:[%s358 + $0x40] sm:$0xff]
        %v368 = vld [vmem:[%s358 + $0x48] sm:$0xff]
        %v369 = vld [vmem:[%s358 + $0x50] sm:$0xff]
        %v370 = vld [vmem:[%s358 + $0x58] sm:$0xff]
        %v371 = vld [vmem:[%s358 + $0x60] sm:$0xff]
        %v372 = vld [vmem:[%s358 + $0x68] sm:$0xff]
        %v373 = vld [vmem:[%s358 + $0x70] sm:$0xff]
        %v374 = vld [vmem:[%s358 + $0x78] sm:$0xff]
        %v375 = vld [vmem:[%s358 + $0x80] sm:$0xff]
        %v376 = vld [vmem:[%s358 + $0x88] sm:$0xff]
        %v377 = vld [vmem:[%s358 + $0x90] sm:$0xff]
        %v378 = vld [vmem:[%s358 + $0x98] sm:$0xff]
        %v379 = vld [vmem:[%s358 + $0xa0] sm:$0xff]
        %v380 = vld [vmem:[%s358 + $0xa8] sm:$0xff]
        %v381 = vld [vmem:[%s358 + $0xb0] sm:$0xff]
        %v382 = vld [vmem:[%s358 + $0xb8] sm:$0xff]
        %v383 = vld [vmem:[%s358 + $0xc0] sm:$0xff]
        %v384 = vld [vmem:[%s358 + $0xc8] sm:$0xff]
        %v385 = vld [vmem:[%s358 + $0xd0] sm:$0xff]
        %v386 = vld [vmem:[%s358 + $0xd8] sm:$0xff]
        %v387 = vld [vmem:[%s358 + $0xe0] sm:$0xff]
        %v388 = vld [vmem:[%s358 + $0xe8] sm:$0xff]
        %v389 = vld [vmem:[%s358 + $0xf0] sm:$0xff]
        %v390 = vld [vmem:[%s358 + $0xf8] sm:$0xff]
        %v391 = vpack.c.bf16 %v360, %v359
        %v392 = vpack.c.bf16 %v362, %v361
        %v393 = vpack.c.bf16 %v364, %v363
        %v394 = vpack.c.bf16 %v366, %v365
        %v395 = vpack.c.bf16 %v368, %v367
        %v396 = vpack.c.bf16 %v370, %v369
        %v397 = vpack.c.bf16 %v372, %v371
        %v398 = vpack.c.bf16 %v374, %v373
        %v399 = vpack.c.bf16 %v376, %v375
        %v400 = vpack.c.bf16 %v378, %v377
        %v401 = vpack.c.bf16 %v380, %v379
        %v402 = vpack.c.bf16 %v382, %v381
        %v403 = vpack.c.bf16 %v384, %v383
        %v404 = vpack.c.bf16 %v386, %v385
        %v405 = vpack.c.bf16 %v388, %v387
        %v406 = vpack.c.bf16 %v390, %v389
        %v407 = vld [vmem:[#allocation7] sm:$0xf]
        %v408 = vld [vmem:[#allocation7 + $0x4] sm:$0xf]
        %v409 = vld [vmem:[%s2] sm:$0x1]
        %v411 = vlaneseq
        %v412 = vshrl.u32 %v411, 7
        %v413 = vsub.s32 0, %v412
        %v414 = vrot.slane %v409, %v413
        %v418 = vunpack.c.l.b16 %v407
        %v419 = vunpack.c.l.b16 %v408
        %v420 = vpack.c.b16 %v419, %v418
        %vm422 = vcmask 130048
        %v424 = vsel %vm422, %v391, 0
        %v427 = vsel %vm422, %v392, 0
        %v430 = vsel %vm422, %v393, 0
        %v433 = vsel %vm422, %v394, 0
        %v436 = vsel %vm422, %v395, 0
        %v439 = vsel %vm422, %v396, 0
        %v442 = vsel %vm422, %v397, 0
        %v445 = vsel %vm422, %v398, 0
        %v448 = vsel %vm422, %v399, 0
        %v451 = vsel %vm422, %v400, 0
        %v454 = vsel %vm422, %v401, 0
        %v457 = vsel %vm422, %v402, 0
        %v460 = vsel %vm422, %v403, 0
        %v463 = vsel %vm422, %v404, 0
        %v466 = vsel %vm422, %v405, 0
        %v469 = vsel %vm422, %v406, 0
        %471 = vmatprep.subr.bf16.mxu0 0
        %472 = vmatpush1.bf16.msra.mxu0 0
        %473 = vmatprep.subr.bf16.mxu0 0
        %474 = vmatpush1.bf16.msra.mxu0 0
        %475 = vmatprep.subr.bf16.mxu0 0
        %476 = vmatpush1.bf16.msra.mxu0 0
        %477 = vmatprep.subr.bf16.mxu0 0
        %478 = vmatpush1.bf16.msra.mxu0 0
        %479 = vmatprep.subr.bf16.mxu0 0
        %480 = vmatpush1.bf16.msra.mxu0 0
        %481 = vmatprep.subr.bf16.mxu0 0
        %482 = vmatpush1.bf16.msra.mxu0 0
        %483 = vmatprep.subr.bf16.mxu0 0
        %484 = vmatpush1.bf16.msra.mxu0 0
        %485 = vmatprep.subr.bf16.mxu0 0
        %486 = vmatpush1.bf16.msra.mxu0 %v420
        %487 = vmatprep.subr.bf16.mxu0 0
        %488 = vmatpush2.bf16.msra.mxu0 0
        %489 = vmatprep.subr.bf16.mxu0 0
        %490 = vmatpush2.bf16.msra.mxu0 0
        %491 = vmatprep.subr.bf16.mxu0 0
        %492 = vmatpush2.bf16.msra.mxu0 0
        %493 = vmatprep.subr.bf16.mxu0 0
        %494 = vmatpush2.bf16.msra.mxu0 0
        %495 = vmatprep.subr.bf16.mxu0 0
        %496 = vmatpush2.bf16.msra.mxu0 0
        %497 = vmatprep.subr.bf16.mxu0 0
        %498 = vmatpush2.bf16.msra.mxu0 0
        %499 = vmatprep.subr.bf16.mxu0 0
        %500 = vmatpush2.bf16.msra.mxu0 0
        %501 = vmatprep.subr.bf16.mxu0 0
        %502 = vmatpush2.bf16.msra.mxu0 0
        %503 = vmatprep.mubr.bf16.mxu0 0
        %504 = vmatmul.mubr.bf16.gmra.mxu0 %v424
        %v505 = vpop.f32.mrf.mxu0
        %v506 = vadd.f32 %v414, %v505
        %v507 = vpop.f32.mrf.mxu0
        %v508 = vpop.f32.mrf.mxu0
        %v509 = vadd.f32 %v414, %v508
        %v510 = vpop.f32.mrf.mxu0
        %511 = vmatprep.mubr.bf16.mxu0 0
        %512 = vmatmul.mubr.bf16.gmra.mxu0 %v427
        %v513 = vpop.f32.mrf.mxu0
        %v514 = vadd.f32 %v414, %v513
        %v515 = vpop.f32.mrf.mxu0
        %v516 = vpop.f32.mrf.mxu0
        %v517 = vadd.f32 %v414, %v516
        %v518 = vpop.f32.mrf.mxu0
        %519 = vmatprep.mubr.bf16.mxu0 0
        %520 = vmatmul.mubr.bf16.gmra.mxu0 %v430
        %v521 = vpop.f32.mrf.mxu0
        %v522 = vadd.f32 %v414, %v521
        %v523 = vpop.f32.mrf.mxu0
        %v524 = vpop.f32.mrf.mxu0
        %v525 = vadd.f32 %v414, %v524
        %v526 = vpop.f32.mrf.mxu0
        %527 = vmatprep.mubr.bf16.mxu0 0
        %528 = vmatmul.mubr.bf16.gmra.mxu0 %v433
        %v529 = vpop.f32.mrf.mxu0
        %v530 = vadd.f32 %v414, %v529
        %v531 = vpop.f32.mrf.mxu0
        %v532 = vpop.f32.mrf.mxu0
        %v533 = vadd.f32 %v414, %v532
        %v534 = vpop.f32.mrf.mxu0
        %535 = vmatprep.mubr.bf16.mxu0 0
        %536 = vmatmul.mubr.bf16.gmra.mxu0 %v436
        %v537 = vpop.f32.mrf.mxu0
        %v538 = vadd.f32 %v414, %v537
        %v539 = vpop.f32.mrf.mxu0
        %v540 = vpop.f32.mrf.mxu0
        %v541 = vadd.f32 %v414, %v540
        %v542 = vpop.f32.mrf.mxu0
        %543 = vmatprep.mubr.bf16.mxu0 0
        %544 = vmatmul.mubr.bf16.gmra.mxu0 %v439
        %v545 = vpop.f32.mrf.mxu0
        %v546 = vadd.f32 %v414, %v545
        %v547 = vpop.f32.mrf.mxu0
        %v548 = vpop.f32.mrf.mxu0
        %v549 = vadd.f32 %v414, %v548
        %v550 = vpop.f32.mrf.mxu0
        %551 = vmatprep.mubr.bf16.mxu0 0
        %552 = vmatmul.mubr.bf16.gmra.mxu0 %v442
        %v553 = vpop.f32.mrf.mxu0
        %v554 = vadd.f32 %v414, %v553
        %v555 = vpop.f32.mrf.mxu0
        %v556 = vpop.f32.mrf.mxu0
        %v557 = vadd.f32 %v414, %v556
        %v558 = vpop.f32.mrf.mxu0
        %559 = vmatprep.mubr.bf16.mxu0 0
        %560 = vmatmul.mubr.bf16.gmra.mxu0 %v445
        %v561 = vpop.f32.mrf.mxu0
        %v562 = vadd.f32 %v414, %v561
        %v563 = vpop.f32.mrf.mxu0
        %v564 = vpop.f32.mrf.mxu0
        %v565 = vadd.f32 %v414, %v564
        %v566 = vpop.f32.mrf.mxu0
        %567 = vmatprep.mubr.bf16.mxu0 0
        %568 = vmatmul.mubr.bf16.gmra.mxu0 %v448
        %v569 = vpop.f32.mrf.mxu0
        %v570 = vadd.f32 %v414, %v569
        %v571 = vpop.f32.mrf.mxu0
        %v572 = vpop.f32.mrf.mxu0
        %v573 = vadd.f32 %v414, %v572
        %v574 = vpop.f32.mrf.mxu0
        %575 = vmatprep.mubr.bf16.mxu0 0
        %576 = vmatmul.mubr.bf16.gmra.mxu0 %v451
        %v577 = vpop.f32.mrf.mxu0
        %v578 = vadd.f32 %v414, %v577
        %v579 = vpop.f32.mrf.mxu0
        %v580 = vpop.f32.mrf.mxu0
        %v581 = vadd.f32 %v414, %v580
        %v582 = vpop.f32.mrf.mxu0
        %583 = vmatprep.mubr.bf16.mxu0 0
        %584 = vmatmul.mubr.bf16.gmra.mxu0 %v454
        %v585 = vpop.f32.mrf.mxu0
        %v586 = vadd.f32 %v414, %v585
        %v587 = vpop.f32.mrf.mxu0
        %v588 = vpop.f32.mrf.mxu0
        %v589 = vadd.f32 %v414, %v588
        %v590 = vpop.f32.mrf.mxu0
        %591 = vmatprep.mubr.bf16.mxu0 0
        %592 = vmatmul.mubr.bf16.gmra.mxu0 %v457
        %v593 = vpop.f32.mrf.mxu0
        %v594 = vadd.f32 %v414, %v593
        %v595 = vpop.f32.mrf.mxu0
        %v596 = vpop.f32.mrf.mxu0
        %v597 = vadd.f32 %v414, %v596
        %v598 = vpop.f32.mrf.mxu0
        %599 = vmatprep.mubr.bf16.mxu0 0
        %600 = vmatmul.mubr.bf16.gmra.mxu0 %v460
        %v601 = vpop.f32.mrf.mxu0
        %v602 = vadd.f32 %v414, %v601
        %v603 = vpop.f32.mrf.mxu0
        %v604 = vpop.f32.mrf.mxu0
        %v605 = vadd.f32 %v414, %v604
        %v606 = vpop.f32.mrf.mxu0
        %607 = vmatprep.mubr.bf16.mxu0 0
        %608 = vmatmul.mubr.bf16.gmra.mxu0 %v463
        %v609 = vpop.f32.mrf.mxu0
        %v610 = vadd.f32 %v414, %v609
        %v611 = vpop.f32.mrf.mxu0
        %v612 = vpop.f32.mrf.mxu0
        %v613 = vadd.f32 %v414, %v612
        %v614 = vpop.f32.mrf.mxu0
        %615 = vmatprep.mubr.bf16.mxu0 0
        %616 = vmatmul.mubr.bf16.gmra.mxu0 %v466
        %v617 = vpop.f32.mrf.mxu0
        %v618 = vadd.f32 %v414, %v617
        %v619 = vpop.f32.mrf.mxu0
        %v620 = vpop.f32.mrf.mxu0
        %v621 = vadd.f32 %v414, %v620
        %v622 = vpop.f32.mrf.mxu0
        %623 = vmatprep.mubr.bf16.mxu0 0
        %624 = vmatmul.mubr.bf16.gmra.mxu0 %v469
        %v625 = vpop.f32.mrf.mxu0
        %v626 = vadd.f32 %v414, %v625
        %v627 = vpop.f32.mrf.mxu0
        %v628 = vpop.f32.mrf.mxu0
        %v629 = vadd.f32 %v414, %v628
        %v630 = vpop.f32.mrf.mxu0
        %631 = vdwg.mxu0
        %v632 = vadd.f32 %v506, 3.0
        %v633 = vadd.f32 %v509, 3.0
        %v634 = vadd.f32 %v514, 3.0
        %v635 = vadd.f32 %v517, 3.0
        %v636 = vadd.f32 %v522, 3.0
        %v637 = vadd.f32 %v525, 3.0
        %v638 = vadd.f32 %v530, 3.0
        %v639 = vadd.f32 %v533, 3.0
        %v640 = vadd.f32 %v538, 3.0
        %v641 = vadd.f32 %v541, 3.0
        %v642 = vadd.f32 %v546, 3.0
        %v643 = vadd.f32 %v549, 3.0
        %v644 = vadd.f32 %v554, 3.0
        %v645 = vadd.f32 %v557, 3.0
        %v646 = vadd.f32 %v562, 3.0
        %v647 = vadd.f32 %v565, 3.0
        %v648 = vadd.f32 %v570, 3.0
        %v649 = vadd.f32 %v573, 3.0
        %v650 = vadd.f32 %v578, 3.0
        %v651 = vadd.f32 %v581, 3.0
        %v652 = vadd.f32 %v586, 3.0
        %v653 = vadd.f32 %v589, 3.0
        %v654 = vadd.f32 %v594, 3.0
        %v655 = vadd.f32 %v597, 3.0
        %v656 = vadd.f32 %v602, 3.0
        %v657 = vadd.f32 %v605, 3.0
        %v658 = vadd.f32 %v610, 3.0
        %v659 = vadd.f32 %v613, 3.0
        %v660 = vadd.f32 %v618, 3.0
        %v661 = vadd.f32 %v621, 3.0
        %v662 = vadd.f32 %v626, 3.0
        %v663 = vadd.f32 %v629, 3.0
        %v664 = vmax.f32 %v632, 0.0
        %v665 = vmax.f32 %v633, 0.0
        %v666 = vmax.f32 %v634, 0.0
        %v667 = vmax.f32 %v635, 0.0
        %v668 = vmax.f32 %v636, 0.0
        %v669 = vmax.f32 %v637, 0.0
        %v670 = vmax.f32 %v638, 0.0
        %v671 = vmax.f32 %v639, 0.0
        %v672 = vmax.f32 %v640, 0.0
        %v673 = vmax.f32 %v641, 0.0
        %v674 = vmax.f32 %v642, 0.0
        %v675 = vmax.f32 %v643, 0.0
        %v676 = vmax.f32 %v644, 0.0
        %v677 = vmax.f32 %v645, 0.0
        %v678 = vmax.f32 %v646, 0.0
        %v679 = vmax.f32 %v647, 0.0
        %v680 = vmax.f32 %v648, 0.0
        %v681 = vmax.f32 %v649, 0.0
        %v682 = vmax.f32 %v650, 0.0
        %v683 = vmax.f32 %v651, 0.0
        %v684 = vmax.f32 %v652, 0.0
        %v685 = vmax.f32 %v653, 0.0
        %v686 = vmax.f32 %v654, 0.0
        %v687 = vmax.f32 %v655, 0.0
        %v688 = vmax.f32 %v656, 0.0
        %v689 = vmax.f32 %v657, 0.0
        %v690 = vmax.f32 %v658, 0.0
        %v691 = vmax.f32 %v659, 0.0
        %v692 = vmax.f32 %v660, 0.0
        %v693 = vmax.f32 %v661, 0.0
        %v694 = vmax.f32 %v662, 0.0
        %v695 = vmax.f32 %v663, 0.0
        %v696 = vmin.f32 %v664, 6.0
        %v697 = vmin.f32 %v665, 6.0
        %v698 = vmin.f32 %v666, 6.0
        %v699 = vmin.f32 %v667, 6.0
        %v700 = vmin.f32 %v668, 6.0
        %v701 = vmin.f32 %v669, 6.0
        %v702 = vmin.f32 %v670, 6.0
        %v703 = vmin.f32 %v671, 6.0
        %v704 = vmin.f32 %v672, 6.0
        %v705 = vmin.f32 %v673, 6.0
        %v706 = vmin.f32 %v674, 6.0
        %v707 = vmin.f32 %v675, 6.0
        %v708 = vmin.f32 %v676, 6.0
        %v709 = vmin.f32 %v677, 6.0
        %v710 = vmin.f32 %v678, 6.0
        %v711 = vmin.f32 %v679, 6.0
        %v712 = vmin.f32 %v680, 6.0
        %v713 = vmin.f32 %v681, 6.0
        %v714 = vmin.f32 %v682, 6.0
        %v715 = vmin.f32 %v683, 6.0
        %v716 = vmin.f32 %v684, 6.0
        %v717 = vmin.f32 %v685, 6.0
        %v718 = vmin.f32 %v686, 6.0
        %v719 = vmin.f32 %v687, 6.0
        %v720 = vmin.f32 %v688, 6.0
        %v721 = vmin.f32 %v689, 6.0
        %v722 = vmin.f32 %v690, 6.0
        %v723 = vmin.f32 %v691, 6.0
        %v724 = vmin.f32 %v692, 6.0
        %v725 = vmin.f32 %v693, 6.0
        %v726 = vmin.f32 %v694, 6.0
        %v727 = vmin.f32 %v695, 6.0
        %v728 = vmul.f32 %v506, %v696
        %v729 = vmul.f32 %v509, %v697
        %v730 = vmul.f32 %v514, %v698
        %v731 = vmul.f32 %v517, %v699
        %v732 = vmul.f32 %v522, %v700
        %v733 = vmul.f32 %v525, %v701
        %v734 = vmul.f32 %v530, %v702
        %v735 = vmul.f32 %v533, %v703
        %v736 = vmul.f32 %v538, %v704
        %v737 = vmul.f32 %v541, %v705
        %v738 = vmul.f32 %v546, %v706
        %v739 = vmul.f32 %v549, %v707
        %v740 = vmul.f32 %v554, %v708
        %v741 = vmul.f32 %v557, %v709
        %v742 = vmul.f32 %v562, %v710
        %v743 = vmul.f32 %v565, %v711
        %v744 = vmul.f32 %v570, %v712
        %v745 = vmul.f32 %v573, %v713
        %v746 = vmul.f32 %v578, %v714
        %v747 = vmul.f32 %v581, %v715
        %v748 = vmul.f32 %v586, %v716
        %v749 = vmul.f32 %v589, %v717
        %v750 = vmul.f32 %v594, %v718
        %v751 = vmul.f32 %v597, %v719
        %v752 = vmul.f32 %v602, %v720
        %v753 = vmul.f32 %v605, %v721
        %v754 = vmul.f32 %v610, %v722
        %v755 = vmul.f32 %v613, %v723
        %v756 = vmul.f32 %v618, %v724
        %v757 = vmul.f32 %v621, %v725
        %v758 = vmul.f32 %v626, %v726
        %v759 = vmul.f32 %v629, %v727
        %v760 = vmul.f32 %v728, 0.16666667
        %v761 = vmul.f32 %v729, 0.16666667
        %v762 = vmul.f32 %v730, 0.16666667
        %v763 = vmul.f32 %v731, 0.16666667
        %v764 = vmul.f32 %v732, 0.16666667
        %v765 = vmul.f32 %v733, 0.16666667
        %v766 = vmul.f32 %v734, 0.16666667
        %v767 = vmul.f32 %v735, 0.16666667
        %v768 = vmul.f32 %v736, 0.16666667
        %v769 = vmul.f32 %v737, 0.16666667
        %v770 = vmul.f32 %v738, 0.16666667
        %v771 = vmul.f32 %v739, 0.16666667
        %v772 = vmul.f32 %v740, 0.16666667
        %v773 = vmul.f32 %v741, 0.16666667
        %v774 = vmul.f32 %v742, 0.16666667
        %v775 = vmul.f32 %v743, 0.16666667
        %v776 = vmul.f32 %v744, 0.16666667
        %v777 = vmul.f32 %v745, 0.16666667
        %v778 = vmul.f32 %v746, 0.16666667
        %v779 = vmul.f32 %v747, 0.16666667
        %v780 = vmul.f32 %v748, 0.16666667
        %v781 = vmul.f32 %v749, 0.16666667
        %v782 = vmul.f32 %v750, 0.16666667
        %v783 = vmul.f32 %v751, 0.16666667
        %v784 = vmul.f32 %v752, 0.16666667
        %v785 = vmul.f32 %v753, 0.16666667
        %v786 = vmul.f32 %v754, 0.16666667
        %v787 = vmul.f32 %v755, 0.16666667
        %v788 = vmul.f32 %v756, 0.16666667
        %v789 = vmul.f32 %v757, 0.16666667
        %v790 = vmul.f32 %v758, 0.16666667
        %v791 = vmul.f32 %v759, 0.16666667
        %v792 = vpack.c.bf16 %v761, %v760
        %v793 = vpack.c.bf16 %v763, %v762
        %v794 = vpack.c.bf16 %v765, %v764
        %v795 = vpack.c.bf16 %v767, %v766
        %v796 = vpack.c.bf16 %v769, %v768
        %v797 = vpack.c.bf16 %v771, %v770
        %v798 = vpack.c.bf16 %v773, %v772
        %v799 = vpack.c.bf16 %v775, %v774
        %v800 = vpack.c.bf16 %v777, %v776
        %v801 = vpack.c.bf16 %v779, %v778
        %v802 = vpack.c.bf16 %v781, %v780
        %v803 = vpack.c.bf16 %v783, %v782
        %v804 = vpack.c.bf16 %v785, %v784
        %v805 = vpack.c.bf16 %v787, %v786
        %v806 = vpack.c.bf16 %v789, %v788
        %v807 = vpack.c.bf16 %v791, %v790
        %v824 = vunpack.c.l.b16 %v792
        %v825 = vunpack.c.h.b16 %v792
        %v826 = vunpack.c.l.b16 %v793
        %v827 = vunpack.c.h.b16 %v793
        %v828 = vunpack.c.l.b16 %v794
        %v829 = vunpack.c.h.b16 %v794
        %v830 = vunpack.c.l.b16 %v795
        %v831 = vunpack.c.h.b16 %v795
        %v832 = vunpack.c.l.b16 %v796
        %v833 = vunpack.c.h.b16 %v796
        %v834 = vunpack.c.l.b16 %v797
        %v835 = vunpack.c.h.b16 %v797
        %v836 = vunpack.c.l.b16 %v798
        %v837 = vunpack.c.h.b16 %v798
        %v838 = vunpack.c.l.b16 %v799
        %v839 = vunpack.c.h.b16 %v799
        %v840 = vunpack.c.l.b16 %v800
        %v841 = vunpack.c.h.b16 %v800
        %v842 = vunpack.c.l.b16 %v801
        %v843 = vunpack.c.h.b16 %v801
        %v844 = vunpack.c.l.b16 %v802
        %v845 = vunpack.c.h.b16 %v802
        %v846 = vunpack.c.l.b16 %v803
        %v847 = vunpack.c.h.b16 %v803
        %v848 = vunpack.c.l.b16 %v804
        %v849 = vunpack.c.h.b16 %v804
        %v850 = vunpack.c.l.b16 %v805
        %v851 = vunpack.c.h.b16 %v805
        %v852 = vunpack.c.l.b16 %v806
        %v853 = vunpack.c.h.b16 %v806
        %v854 = vunpack.c.l.b16 %v807
        %v855 = vunpack.c.h.b16 %v807
        %v856 = vpack.c.b16 %v824, %v824
        %v857 = vpack.c.b16 %v825, %v825
        %v858 = vpack.c.b16 %v826, %v826
        %v859 = vpack.c.b16 %v827, %v827
        %v860 = vpack.c.b16 %v828, %v828
        %v861 = vpack.c.b16 %v829, %v829
        %v862 = vpack.c.b16 %v830, %v830
        %v863 = vpack.c.b16 %v831, %v831
        %v864 = vpack.c.b16 %v832, %v832
        %v865 = vpack.c.b16 %v833, %v833
        %v866 = vpack.c.b16 %v834, %v834
        %v867 = vpack.c.b16 %v835, %v835
        %v868 = vpack.c.b16 %v836, %v836
        %v869 = vpack.c.b16 %v837, %v837
        %v870 = vpack.c.b16 %v838, %v838
        %v871 = vpack.c.b16 %v839, %v839
        %v872 = vpack.c.b16 %v840, %v840
        %v873 = vpack.c.b16 %v841, %v841
        %v874 = vpack.c.b16 %v842, %v842
        %v875 = vpack.c.b16 %v843, %v843
        %v876 = vpack.c.b16 %v844, %v844
        %v877 = vpack.c.b16 %v845, %v845
        %v878 = vpack.c.b16 %v846, %v846
        %v879 = vpack.c.b16 %v847, %v847
        %v880 = vpack.c.b16 %v848, %v848
        %v881 = vpack.c.b16 %v849, %v849
        %v882 = vpack.c.b16 %v850, %v850
        %v883 = vpack.c.b16 %v851, %v851
        %v884 = vpack.c.b16 %v852, %v852
        %v885 = vpack.c.b16 %v853, %v853
        %v886 = vpack.c.b16 %v854, %v854
        %v887 = vpack.c.b16 %v855, %v855
        %s920 = scalar_lea.vmem [#allocation2], 40
        %921 = vst [vmem:[%s920 + $0x8] sm:$0xf] %v856
        %922 = vst [vmem:[%s920 + $0xc] sm:$0xf] %v857
        %923 = vst [vmem:[%s920 + $0x1c] sm:$0xf] %v858
        %924 = vst [vmem:[%s920 + $0x20] sm:$0xf] %v859
        %925 = vst [vmem:[%s920 + $0x30] sm:$0xf] %v860
        %926 = vst [vmem:[%s920 + $0x34] sm:$0xf] %v861
        %927 = vst [vmem:[%s920 + $0x44] sm:$0xf] %v862
        %928 = vst [vmem:[%s920 + $0x48] sm:$0xf] %v863
        %929 = vst [vmem:[%s920 + $0x58] sm:$0xf] %v864
        %930 = vst [vmem:[%s920 + $0x5c] sm:$0xf] %v865
        %931 = vst [vmem:[%s920 + $0x6c] sm:$0xf] %v866
        %932 = vst [vmem:[%s920 + $0x70] sm:$0xf] %v867
        %933 = vst [vmem:[%s920 + $0x80] sm:$0xf] %v868
        %934 = vst [vmem:[%s920 + $0x84] sm:$0xf] %v869
        %935 = vst [vmem:[%s920 + $0x94] sm:$0xf] %v870
        %936 = vst [vmem:[%s920 + $0x98] sm:$0xf] %v871
        %937 = vst [vmem:[%s920 + $0xa8] sm:$0xf] %v872
        %938 = vst [vmem:[%s920 + $0xac] sm:$0xf] %v873
        %939 = vst [vmem:[%s920 + $0xbc] sm:$0xf] %v874
        %940 = vst [vmem:[%s920 + $0xc0] sm:$0xf] %v875
        %941 = vst [vmem:[%s920 + $0xd0] sm:$0xf] %v876
        %942 = vst [vmem:[%s920 + $0xd4] sm:$0xf] %v877
        %943 = vst [vmem:[%s920 + $0xe4] sm:$0xf] %v878
        %944 = vst [vmem:[%s920 + $0xe8] sm:$0xf] %v879
        %945 = vst [vmem:[%s920 + $0xf8] sm:$0xf] %v880
        %946 = vst [vmem:[%s920 + $0xfc] sm:$0xf] %v881
        %947 = vst [vmem:[%s920 + $0x10c] sm:$0xf] %v882
        %948 = vst [vmem:[%s920 + $0x110] sm:$0xf] %v883
        %949 = vst [vmem:[%s920 + $0x120] sm:$0xf] %v884
        %950 = vst [vmem:[%s920 + $0x124] sm:$0xf] %v885
        %951 = vst [vmem:[%s920 + $0x134] sm:$0xf] %v886
        %952 = vst [vmem:[%s920 + $0x138] sm:$0xf] %v887
        %s953 = ssub.s32 %s295, 4
        %p954 = scmp.gt.s32.totalorder %s953, 0
        %s955 = scalar_select %p954, %s953, 0
        %p956 = scmp.lt.s32.totalorder %s955, 0
        %s957 = scalar_select %p956, %s955, 0
        %s958 = ssub.s32 %s295, 2
        %p959 = scmp.gt.s32.totalorder %s958, 0
        %s960 = scalar_select %p959, %s958, 0
        %p961 = scmp.lt.s32.totalorder %s960, 4
        %s962 = scalar_select %p961, %s960, 4
        %s963 = sadd.s32 %s295, 2
        %s964 = smul.u32 %s963, 5
        %s965 = smul.addr %s964, 4
        %s966 = scalar_lea.vmem [#allocation2], %s965
        %v967 = vld [vmem:[%s966 + $0x8] sm:$0xf]
        %v968 = vld [vmem:[%s966 + $0xc] sm:$0xf]
        %v969 = vld [vmem:[%s966 + $0x1c] sm:$0xf]
        %v970 = vld [vmem:[%s966 + $0x20] sm:$0xf]
        %v971 = vld [vmem:[%s966 + $0x30] sm:$0xf]
        %v972 = vld [vmem:[%s966 + $0x34] sm:$0xf]
        %v973 = vld [vmem:[%s966 + $0x44] sm:$0xf]
        %v974 = vld [vmem:[%s966 + $0x48] sm:$0xf]
        %v975 = vld [vmem:[%s966 + $0x58] sm:$0xf]
        %v976 = vld [vmem:[%s966 + $0x5c] sm:$0xf]
        %v977 = vld [vmem:[%s966 + $0x6c] sm:$0xf]
        %v978 = vld [vmem:[%s966 + $0x70] sm:$0xf]
        %v979 = vld [vmem:[%s966 + $0x80] sm:$0xf]
        %v980 = vld [vmem:[%s966 + $0x84] sm:$0xf]
        %v981 = vld [vmem:[%s966 + $0x94] sm:$0xf]
        %v982 = vld [vmem:[%s966 + $0x98] sm:$0xf]
        %v983 = vld [vmem:[#allocation9] sm:$0xf]
        %v984 = vld [vmem:[#allocation9 + $0x4] sm:$0xf]
        %v985 = vld [vmem:[#allocation9 + $0x8] sm:$0xf]
        %v986 = vld [vmem:[#allocation9 + $0xc] sm:$0xf]
        %v987 = vld [vmem:[#allocation9 + $0x10] sm:$0xf]
        %v988 = vld [vmem:[#allocation9 + $0x14] sm:$0xf]
        %v989 = vld [vmem:[#allocation9 + $0x18] sm:$0xf]
        %v990 = vld [vmem:[#allocation9 + $0x1c] sm:$0xf]
        %v991 = vld [vmem:[#allocation9 + $0x20] sm:$0xf]
        %v992 = vld [vmem:[#allocation9 + $0x24] sm:$0xf]
        %v993 = vld [vmem:[#allocation9 + $0x28] sm:$0xf]
        %v994 = vld [vmem:[#allocation9 + $0x2c] sm:$0xf]
        %v995 = vld [vmem:[#allocation9 + $0x30] sm:$0xf]
        %v996 = vld [vmem:[#allocation9 + $0x34] sm:$0xf]
        %v997 = vld [vmem:[#allocation9 + $0x38] sm:$0xf]
        %v998 = vld [vmem:[#allocation9 + $0x3c] sm:$0xf]
        %v1015 = vunpack.c.l.b16 %v967
        %v1016 = vunpack.c.l.b16 %v968
        %v1017 = vunpack.c.l.b16 %v969
        %v1018 = vunpack.c.l.b16 %v970
        %v1019 = vunpack.c.l.b16 %v971
        %v1020 = vunpack.c.l.b16 %v972
        %v1021 = vunpack.c.l.b16 %v973
        %v1022 = vunpack.c.l.b16 %v974
        %v1023 = vunpack.c.l.b16 %v975
        %v1024 = vunpack.c.l.b16 %v976
        %v1025 = vunpack.c.l.b16 %v977
        %v1026 = vunpack.c.l.b16 %v978
        %v1027 = vunpack.c.l.b16 %v979
        %v1028 = vunpack.c.l.b16 %v980
        %v1029 = vunpack.c.l.b16 %v981
        %v1030 = vunpack.c.l.b16 %v982
        %v1031 = vpack.c.b16 %v1016, %v1015
        %v1032 = vpack.c.b16 %v1018, %v1017
        %v1033 = vpack.c.b16 %v1020, %v1019
        %v1034 = vpack.c.b16 %v1022, %v1021
        %v1035 = vpack.c.b16 %v1024, %v1023
        %v1036 = vpack.c.b16 %v1026, %v1025
        %v1037 = vpack.c.b16 %v1028, %v1027
        %v1038 = vpack.c.b16 %v1030, %v1029
        %v1063 = vunpack.c.l.b16 %v983
        %v1064 = vunpack.c.l.b16 %v984
        %v1065 = vunpack.c.l.b16 %v985
        %v1066 = vunpack.c.l.b16 %v986
        %v1067 = vunpack.c.l.b16 %v987
        %v1068 = vunpack.c.l.b16 %v988
        %v1069 = vunpack.c.l.b16 %v989
        %v1070 = vunpack.c.l.b16 %v990
        %v1071 = vunpack.c.l.b16 %v991
        %v1072 = vunpack.c.l.b16 %v992
        %v1073 = vunpack.c.l.b16 %v993
        %v1074 = vunpack.c.l.b16 %v994
        %v1075 = vunpack.c.l.b16 %v995
        %v1076 = vunpack.c.l.b16 %v996
        %v1077 = vunpack.c.l.b16 %v997
        %v1078 = vunpack.c.l.b16 %v998
        %v1079 = vpack.c.b16 %v1064, %v1063
        %v1080 = vpack.c.b16 %v1066, %v1065
        %v1081 = vpack.c.b16 %v1068, %v1067
        %v1082 = vpack.c.b16 %v1070, %v1069
        %v1083 = vpack.c.b16 %v1072, %v1071
        %v1084 = vpack.c.b16 %v1074, %v1073
        %v1085 = vpack.c.b16 %v1076, %v1075
        %v1086 = vpack.c.b16 %v1078, %v1077
        %1095 = vmatprep.subr.bf16.mxu0 0
        %1096 = vmatpush1.bf16.msra.mxu0 %v1086
        %1097 = vmatprep.subr.bf16.mxu0 0
        %1098 = vmatpush1.bf16.msra.mxu0 %v1085
        %1099 = vmatprep.subr.bf16.mxu0 0
        %1100 = vmatpush1.bf16.msra.mxu0 %v1084
        %1101 = vmatprep.subr.bf16.mxu0 0
        %1102 = vmatpush1.bf16.msra.mxu0 %v1083
        %1103 = vmatprep.subr.bf16.mxu0 0
        %1104 = vmatpush1.bf16.msra.mxu0 %v1082
        %1105 = vmatprep.subr.bf16.mxu0 0
        %1106 = vmatpush1.bf16.msra.mxu0 %v1081
        %1107 = vmatprep.subr.bf16.mxu0 0
        %1108 = vmatpush1.bf16.msra.mxu0 %v1080
        %1109 = vmatprep.subr.bf16.mxu0 0
        %1110 = vmatpush1.bf16.msra.mxu0 %v1079
        %1111 = vmatprep.subr.bf16.mxu0 0
        %1112 = vmatpush2.bf16.msra.mxu0 0
        %1113 = vmatprep.subr.bf16.mxu0 0
        %1114 = vmatpush2.bf16.msra.mxu0 0
        %1115 = vmatprep.subr.bf16.mxu0 0
        %1116 = vmatpush2.bf16.msra.mxu0 0
        %1117 = vmatprep.subr.bf16.mxu0 0
        %1118 = vmatpush2.bf16.msra.mxu0 0
        %1119 = vmatprep.subr.bf16.mxu0 0
        %1120 = vmatpush2.bf16.msra.mxu0 0
        %1121 = vmatprep.subr.bf16.mxu0 0
        %1122 = vmatpush2.bf16.msra.mxu0 0
        %1123 = vmatprep.subr.bf16.mxu0 0
        %1124 = vmatpush2.bf16.msra.mxu0 0
        %1125 = vmatprep.subr.bf16.mxu0 0
        %1126 = vmatpush2.bf16.msra.mxu0 0
        %1127 = vmatprep.mubr.bf16.mxu0 0
        %1128 = vmatmul.mubr.bf16.gmra.mxu0 %v1031
        %v1129 = vpop.f32.mrf.mxu0
        %v1130 = vadd.f32 0.0, %v1129
        %v1131 = vpop.f32.mrf.mxu0
        %v1132 = vpop.f32.mrf.mxu0
        %v1133 = vadd.f32 0.0, %v1132
        %v1134 = vpop.f32.mrf.mxu0
        %1135 = vmatprep.mubr.bf16.mxu0 0
        %1136 = vmatmul.mubr.bf16.gmra.mxu0 %v1032
        %v1137 = vpop.f32.mrf.mxu0
        %v1138 = vadd.f32 0.0, %v1137
        %v1139 = vpop.f32.mrf.mxu0
        %v1140 = vpop.f32.mrf.mxu0
        %v1141 = vadd.f32 0.0, %v1140
        %v1142 = vpop.f32.mrf.mxu0
        %1143 = vmatprep.mubr.bf16.mxu0 0
        %1144 = vmatmul.mubr.bf16.gmra.mxu0 %v1033
        %v1145 = vpop.f32.mrf.mxu0
        %v1146 = vadd.f32 0.0, %v1145
        %v1147 = vpop.f32.mrf.mxu0
        %v1148 = vpop.f32.mrf.mxu0
        %v1149 = vadd.f32 0.0, %v1148
        %v1150 = vpop.f32.mrf.mxu0
        %1151 = vmatprep.mubr.bf16.mxu0 0
        %1152 = vmatmul.mubr.bf16.gmra.mxu0 %v1034
        %v1153 = vpop.f32.mrf.mxu0
        %v1154 = vadd.f32 0.0, %v1153
        %v1155 = vpop.f32.mrf.mxu0
        %v1156 = vpop.f32.mrf.mxu0
        %v1157 = vadd.f32 0.0, %v1156
        %v1158 = vpop.f32.mrf.mxu0
        %1159 = vmatprep.mubr.bf16.mxu0 0
        %1160 = vmatmul.mubr.bf16.gmra.mxu0 %v1035
        %v1161 = vpop.f32.mrf.mxu0
        %v1162 = vadd.f32 0.0, %v1161
        %v1163 = vpop.f32.mrf.mxu0
        %v1164 = vpop.f32.mrf.mxu0
        %v1165 = vadd.f32 0.0, %v1164
        %v1166 = vpop.f32.mrf.mxu0
        %1167 = vmatprep.mubr.bf16.mxu0 0
        %1168 = vmatmul.mubr.bf16.gmra.mxu0 %v1036
        %v1169 = vpop.f32.mrf.mxu0
        %v1170 = vadd.f32 0.0, %v1169
        %v1171 = vpop.f32.mrf.mxu0
        %v1172 = vpop.f32.mrf.mxu0
        %v1173 = vadd.f32 0.0, %v1172
        %v1174 = vpop.f32.mrf.mxu0
        %1175 = vmatprep.mubr.bf16.mxu0 0
        %1176 = vmatmul.mubr.bf16.gmra.mxu0 %v1037
        %v1177 = vpop.f32.mrf.mxu0
        %v1178 = vadd.f32 0.0, %v1177
        %v1179 = vpop.f32.mrf.mxu0
        %v1180 = vpop.f32.mrf.mxu0
        %v1181 = vadd.f32 0.0, %v1180
        %v1182 = vpop.f32.mrf.mxu0
        %1183 = vmatprep.mubr.bf16.mxu0 0
        %1184 = vmatmul.mubr.bf16.gmra.mxu0 %v1038
        %v1185 = vpop.f32.mrf.mxu0
        %v1186 = vadd.f32 0.0, %v1185
        %v1187 = vpop.f32.mrf.mxu0
        %v1188 = vpop.f32.mrf.mxu0
        %v1189 = vadd.f32 0.0, %v1188
        %v1190 = vpop.f32.mrf.mxu0
        %1191 = vdwg.mxu0
        %1192 = vst [vmem:[#allocation3] sm:$0xff] %v1130
        %1193 = vst [vmem:[#allocation3 + $0x8] sm:$0xff] %v1133
        %1194 = vst [vmem:[#allocation3 + $0x10] sm:$0xff] %v1138
        %1195 = vst [vmem:[#allocation3 + $0x18] sm:$0xff] %v1141
        %1196 = vst [vmem:[#allocation3 + $0x20] sm:$0xff] %v1146
        %1197 = vst [vmem:[#allocation3 + $0x28] sm:$0xff] %v1149
        %1198 = vst [vmem:[#allocation3 + $0x30] sm:$0xff] %v1154
        %1199 = vst [vmem:[#allocation3 + $0x38] sm:$0xff] %v1157
        %1200 = vst [vmem:[#allocation3 + $0x40] sm:$0xff] %v1162
        %1201 = vst [vmem:[#allocation3 + $0x48] sm:$0xff] %v1165
        %1202 = vst [vmem:[#allocation3 + $0x50] sm:$0xff] %v1170
        %1203 = vst [vmem:[#allocation3 + $0x58] sm:$0xff] %v1173
        %1204 = vst [vmem:[#allocation3 + $0x60] sm:$0xff] %v1178
        %1205 = vst [vmem:[#allocation3 + $0x68] sm:$0xff] %v1181
        %1206 = vst [vmem:[#allocation3 + $0x70] sm:$0xff] %v1186
        %1207 = vst [vmem:[#allocation3 + $0x78] sm:$0xff] %v1189
        %s1208 = smul.u32 %s957, 5
        %s1209 = smul.addr %s1208, 4
        %s1210 = scalar_lea.vmem [#allocation2], %s1209
        %v1211 = vld [vmem:[%s1210 + $0x4] sm:$0x8]
        %v1212 = vld [vmem:[%s1210 + $0x8] sm:$0xf]
        %v1213 = vld [vmem:[%s1210 + $0xc] sm:$0x7]
        %v1214 = vld [vmem:[%s1210 + $0x18] sm:$0x8]
        %v1215 = vld [vmem:[%s1210 + $0x1c] sm:$0xf]
        %v1216 = vld [vmem:[%s1210 + $0x20] sm:$0x7]
        %v1217 = vld [vmem:[%s1210 + $0x2c] sm:$0x8]
        %v1218 = vld [vmem:[%s1210 + $0x30] sm:$0xf]
        %v1219 = vld [vmem:[%s1210 + $0x34] sm:$0x7]
        %v1220 = vld [vmem:[%s1210 + $0x40] sm:$0x8]
        %v1221 = vld [vmem:[%s1210 + $0x44] sm:$0xf]
        %v1222 = vld [vmem:[%s1210 + $0x48] sm:$0x7]
        %v1223 = vld [vmem:[%s1210 + $0x54] sm:$0x8]
        %v1224 = vld [vmem:[%s1210 + $0x58] sm:$0xf]
        %v1225 = vld [vmem:[%s1210 + $0x5c] sm:$0x7]
        %v1226 = vld [vmem:[%s1210 + $0x68] sm:$0x8]
        %v1227 = vld [vmem:[%s1210 + $0x6c] sm:$0xf]
        %v1228 = vld [vmem:[%s1210 + $0x70] sm:$0x7]
        %v1229 = vld [vmem:[%s1210 + $0x7c] sm:$0x8]
        %v1230 = vld [vmem:[%s1210 + $0x80] sm:$0xf]
        %v1231 = vld [vmem:[%s1210 + $0x84] sm:$0x7]
        %v1232 = vld [vmem:[%s1210 + $0x90] sm:$0x8]
        %v1233 = vld [vmem:[%s1210 + $0x94] sm:$0xf]
        %v1234 = vld [vmem:[%s1210 + $0x98] sm:$0x7]
        %v1235 = vld [vmem:[%s1210 + $0xa4] sm:$0x8]
        %v1236 = vld [vmem:[%s1210 + $0xa8] sm:$0xf]
        %v1237 = vld [vmem:[%s1210 + $0xac] sm:$0x7]
        %v1238 = vld [vmem:[%s1210 + $0xb8] sm:$0x8]
        %v1239 = vld [vmem:[%s1210 + $0xbc] sm:$0xf]
        %v1240 = vld [vmem:[%s1210 + $0xc0] sm:$0x7]
        %v1241 = vld [vmem:[%s1210 + $0xcc] sm:$0x8]
        %v1242 = vld [vmem:[%s1210 + $0xd0] sm:$0xf]
        %v1243 = vld [vmem:[%s1210 + $0xd4] sm:$0x7]
        %v1244 = vld [vmem:[%s1210 + $0xe0] sm:$0x8]
        %v1245 = vld [vmem:[%s1210 + $0xe4] sm:$0xf]
        %v1246 = vld [vmem:[%s1210 + $0xe8] sm:$0x7]
        %v1247 = vld [vmem:[%s1210 + $0xf4] sm:$0x8]
        %v1248 = vld [vmem:[%s1210 + $0xf8] sm:$0xf]
        %v1249 = vld [vmem:[%s1210 + $0xfc] sm:$0x7]
        %v1250 = vld [vmem:[%s1210 + $0x108] sm:$0x8]
        %v1251 = vld [vmem:[%s1210 + $0x10c] sm:$0xf]
        %v1252 = vld [vmem:[%s1210 + $0x110] sm:$0x7]
        %v1253 = vld [vmem:[%s1210 + $0x11c] sm:$0x8]
        %v1254 = vld [vmem:[%s1210 + $0x120] sm:$0xf]
        %v1255 = vld [vmem:[%s1210 + $0x124] sm:$0x7]
        %v1256 = vld [vmem:[%s1210 + $0x130] sm:$0x8]
        %v1257 = vld [vmem:[%s1210 + $0x134] sm:$0xf]
        %v1258 = vld [vmem:[%s1210 + $0x138] sm:$0x7]
        %v1259 = vld [vmem:[%s1210 + $0x144] sm:$0x8]
        %v1260 = vld [vmem:[%s1210 + $0x148] sm:$0xf]
        %v1261 = vld [vmem:[%s1210 + $0x14c] sm:$0x7]
        %v1262 = vld [vmem:[%s1210 + $0x158] sm:$0x8]
        %v1263 = vld [vmem:[%s1210 + $0x15c] sm:$0xf]
        %v1264 = vld [vmem:[%s1210 + $0x160] sm:$0x7]
        %v1265 = vld [vmem:[%s1210 + $0x16c] sm:$0x8]
        %v1266 = vld [vmem:[%s1210 + $0x170] sm:$0xf]
        %v1267 = vld [vmem:[%s1210 + $0x174] sm:$0x7]
        %v1268 = vld [vmem:[%s1210 + $0x180] sm:$0x8]
        %v1269 = vld [vmem:[%s1210 + $0x184] sm:$0xf]
        %v1270 = vld [vmem:[%s1210 + $0x188] sm:$0x7]
        %v1271 = vld [vmem:[%s1210 + $0xc] sm:$0xf]
        %v1272 = vld [vmem:[%s1210 + $0x20] sm:$0xf]
        %v1273 = vld [vmem:[%s1210 + $0x34] sm:$0xf]
        %v1274 = vld [vmem:[%s1210 + $0x48] sm:$0xf]
        %v1275 = vld [vmem:[%s1210 + $0x5c] sm:$0xf]
        %v1276 = vld [vmem:[%s1210 + $0x70] sm:$0xf]
        %v1277 = vld [vmem:[%s1210 + $0x84] sm:$0xf]
        %v1278 = vld [vmem:[%s1210 + $0x98] sm:$0xf]
        %v1279 = vld [vmem:[%s1210 + $0xac] sm:$0xf]
        %v1280 = vld [vmem:[%s1210 + $0xc0] sm:$0xf]
        %v1281 = vld [vmem:[%s1210 + $0xd4] sm:$0xf]
        %v1282 = vld [vmem:[%s1210 + $0xe8] sm:$0xf]
        %v1283 = vld [vmem:[%s1210 + $0xfc] sm:$0xf]
        %v1284 = vld [vmem:[%s1210 + $0x110] sm:$0xf]
        %v1285 = vld [vmem:[%s1210 + $0x124] sm:$0xf]
        %v1286 = vld [vmem:[%s1210 + $0x138] sm:$0xf]
        %v1287 = vld [vmem:[%s1210 + $0x14c] sm:$0xf]
        %v1288 = vld [vmem:[%s1210 + $0x160] sm:$0xf]
        %v1289 = vld [vmem:[%s1210 + $0x174] sm:$0xf]
        %v1290 = vld [vmem:[%s1210 + $0x188] sm:$0xf]
        %vm1291 = vsmask.f32 3328
        %vm1292 = vsmask.f32 7440
        %vm1293 = vmor %vm1291, %vm1292
        %v1295 = vshrl.u32 %v1211, 16
        %v1297 = vrot.slane %v1295, 4
        %v1298 = vrot.slane %v1297, 4
        %v1300 = vshll.u32 %v1212, 16
        %v1302 = vrot.slane %v1300, 5
        %v1303 = vsel %vm1293, %v1298, %v1302
        %v1304 = vshrl.u32 %v1212, 16
        %v1306 = vrot.slane %v1304, 4
        %v1307 = vor.u32 %v1306, %v1302
        %v1308 = vrot.slane %v1307, 4
        %v1310 = vshll.u32 %v1271, 16
        %v1312 = vrot.slane %v1310, 5
        %v1313 = vsel %vm1293, %v1308, %v1312
        %v1314 = vshrl.u32 %v1271, 16
        %v1316 = vrot.slane %v1314, 4
        %v1317 = vor.u32 %v1316, %v1312
        %v1318 = vrot.slane %v1317, 4
        %v1320 = vshrl.u32 %v1214, 16
        %v1322 = vrot.slane %v1320, 4
        %v1323 = vrot.slane %v1322, 4
        %v1325 = vshll.u32 %v1215, 16
        %v1327 = vrot.slane %v1325, 5
        %v1328 = vsel %vm1293, %v1323, %v1327
        %v1329 = vshrl.u32 %v1215, 16
        %v1331 = vrot.slane %v1329, 4
        %v1332 = vor.u32 %v1331, %v1327
        %v1333 = vrot.slane %v1332, 4
        %v1335 = vshll.u32 %v1272, 16
        %v1337 = vrot.slane %v1335, 5
        %v1338 = vsel %vm1293, %v1333, %v1337
        %v1339 = vshrl.u32 %v1272, 16
        %v1341 = vrot.slane %v1339, 4
        %v1342 = vor.u32 %v1341, %v1337
        %v1343 = vrot.slane %v1342, 4
        %v1345 = vshrl.u32 %v1217, 16
        %v1347 = vrot.slane %v1345, 4
        %v1348 = vrot.slane %v1347, 4
        %v1350 = vshll.u32 %v1218, 16
        %v1352 = vrot.slane %v1350, 5
        %v1353 = vsel %vm1293, %v1348, %v1352
        %v1354 = vshrl.u32 %v1218, 16
        %v1356 = vrot.slane %v1354, 4
        %v1357 = vor.u32 %v1356, %v1352
        %v1358 = vrot.slane %v1357, 4
        %v1360 = vshll.u32 %v1273, 16
        %v1362 = vrot.slane %v1360, 5
        %v1363 = vsel %vm1293, %v1358, %v1362
        %v1364 = vshrl.u32 %v1273, 16
        %v1366 = vrot.slane %v1364, 4
        %v1367 = vor.u32 %v1366, %v1362
        %v1368 = vrot.slane %v1367, 4
        %v1370 = vshrl.u32 %v1220, 16
        %v1372 = vrot.slane %v1370, 4
        %v1373 = vrot.slane %v1372, 4
        %v1375 = vshll.u32 %v1221, 16
        %v1377 = vrot.slane %v1375, 5
        %v1378 = vsel %vm1293, %v1373, %v1377
        %v1379 = vshrl.u32 %v1221, 16
        %v1381 = vrot.slane %v1379, 4
        %v1382 = vor.u32 %v1381, %v1377
        %v1383 = vrot.slane %v1382, 4
        %v1385 = vshll.u32 %v1274, 16
        %v1387 = vrot.slane %v1385, 5
        %v1388 = vsel %vm1293, %v1383, %v1387
        %v1389 = vshrl.u32 %v1274, 16
        %v1391 = vrot.slane %v1389, 4
        %v1392 = vor.u32 %v1391, %v1387
        %v1393 = vrot.slane %v1392, 4
        %v1395 = vshrl.u32 %v1223, 16
        %v1397 = vrot.slane %v1395, 4
        %v1398 = vrot.slane %v1397, 4
        %v1400 = vshll.u32 %v1224, 16
        %v1402 = vrot.slane %v1400, 5
        %v1403 = vsel %vm1293, %v1398, %v1402
        %v1404 = vshrl.u32 %v1224, 16
        %v1406 = vrot.slane %v1404, 4
        %v1407 = vor.u32 %v1406, %v1402
        %v1408 = vrot.slane %v1407, 4
        %v1410 = vshll.u32 %v1275, 16
        %v1412 = vrot.slane %v1410, 5
        %v1413 = vsel %vm1293, %v1408, %v1412
        %v1414 = vshrl.u32 %v1275, 16
        %v1416 = vrot.slane %v1414, 4
        %v1417 = vor.u32 %v1416, %v1412
        %v1418 = vrot.slane %v1417, 4
        %v1420 = vshrl.u32 %v1226, 16
        %v1422 = vrot.slane %v1420, 4
        %v1423 = vrot.slane %v1422, 4
        %v1425 = vshll.u32 %v1227, 16
        %v1427 = vrot.slane %v1425, 5
        %v1428 = vsel %vm1293, %v1423, %v1427
        %v1429 = vshrl.u32 %v1227, 16
        %v1431 = vrot.slane %v1429, 4
        %v1432 = vor.u32 %v1431, %v1427
        %v1433 = vrot.slane %v1432, 4
        %v1435 = vshll.u32 %v1276, 16
        %v1437 = vrot.slane %v1435, 5
        %v1438 = vsel %vm1293, %v1433, %v1437
        %v1439 = vshrl.u32 %v1276, 16
        %v1441 = vrot.slane %v1439, 4
        %v1442 = vor.u32 %v1441, %v1437
        %v1443 = vrot.slane %v1442, 4
        %v1445 = vshrl.u32 %v1229, 16
        %v1447 = vrot.slane %v1445, 4
        %v1448 = vrot.slane %v1447, 4
        %v1450 = vshll.u32 %v1230, 16
        %v1452 = vrot.slane %v1450, 5
        %v1453 = vsel %vm1293, %v1448, %v1452
        %v1454 = vshrl.u32 %v1230, 16
        %v1456 = vrot.slane %v1454, 4
        %v1457 = vor.u32 %v1456, %v1452
        %v1458 = vrot.slane %v1457, 4
        %v1460 = vshll.u32 %v1277, 16
        %v1462 = vrot.slane %v1460, 5
        %v1463 = vsel %vm1293, %v1458, %v1462
        %v1464 = vshrl.u32 %v1277, 16
        %v1466 = vrot.slane %v1464, 4
        %v1467 = vor.u32 %v1466, %v1462
        %v1468 = vrot.slane %v1467, 4
        %v1470 = vshrl.u32 %v1232, 16
        %v1472 = vrot.slane %v1470, 4
        %v1473 = vrot.slane %v1472, 4
        %v1475 = vshll.u32 %v1233, 16
        %v1477 = vrot.slane %v1475, 5
        %v1478 = vsel %vm1293, %v1473, %v1477
        %v1479 = vshrl.u32 %v1233, 16
        %v1481 = vrot.slane %v1479, 4
        %v1482 = vor.u32 %v1481, %v1477
        %v1483 = vrot.slane %v1482, 4
        %v1485 = vshll.u32 %v1278, 16
        %v1487 = vrot.slane %v1485, 5
        %v1488 = vsel %vm1293, %v1483, %v1487
        %v1489 = vshrl.u32 %v1278, 16
        %v1491 = vrot.slane %v1489, 4
        %v1492 = vor.u32 %v1491, %v1487
        %v1493 = vrot.slane %v1492, 4
        %v1495 = vshrl.u32 %v1235, 16
        %v1497 = vrot.slane %v1495, 4
        %v1498 = vrot.slane %v1497, 4
        %v1500 = vshll.u32 %v1236, 16
        %v1502 = vrot.slane %v1500, 5
        %v1503 = vsel %vm1293, %v1498, %v1502
        %v1504 = vshrl.u32 %v1236, 16
        %v1506 = vrot.slane %v1504, 4
        %v1507 = vor.u32 %v1506, %v1502
        %v1508 = vrot.slane %v1507, 4
        %v1510 = vshll.u32 %v1279, 16
        %v1512 = vrot.slane %v1510, 5
        %v1513 = vsel %vm1293, %v1508, %v1512
        %v1514 = vshrl.u32 %v1279, 16
        %v1516 = vrot.slane %v1514, 4
        %v1517 = vor.u32 %v1516, %v1512
        %v1518 = vrot.slane %v1517, 4
        %v1520 = vshrl.u32 %v1238, 16
        %v1522 = vrot.slane %v1520, 4
        %v1523 = vrot.slane %v1522, 4
        %v1525 = vshll.u32 %v1239, 16
        %v1527 = vrot.slane %v1525, 5
        %v1528 = vsel %vm1293, %v1523, %v1527
        %v1529 = vshrl.u32 %v1239, 16
        %v1531 = vrot.slane %v1529, 4
        %v1532 = vor.u32 %v1531, %v1527
        %v1533 = vrot.slane %v1532, 4
        %v1535 = vshll.u32 %v1280, 16
        %v1537 = vrot.slane %v1535, 5
        %v1538 = vsel %vm1293, %v1533, %v1537
        %v1539 = vshrl.u32 %v1280, 16
        %v1541 = vrot.slane %v1539, 4
        %v1542 = vor.u32 %v1541, %v1537
        %v1543 = vrot.slane %v1542, 4
        %v1545 = vshrl.u32 %v1241, 16
        %v1547 = vrot.slane %v1545, 4
        %v1548 = vrot.slane %v1547, 4
        %v1550 = vshll.u32 %v1242, 16
        %v1552 = vrot.slane %v1550, 5
        %v1553 = vsel %vm1293, %v1548, %v1552
        %v1554 = vshrl.u32 %v1242, 16
        %v1556 = vrot.slane %v1554, 4
        %v1557 = vor.u32 %v1556, %v1552
        %v1558 = vrot.slane %v1557, 4
        %v1560 = vshll.u32 %v1281, 16
        %v1562 = vrot.slane %v1560, 5
        %v1563 = vsel %vm1293, %v1558, %v1562
        %v1564 = vshrl.u32 %v1281, 16
        %v1566 = vrot.slane %v1564, 4
        %v1567 = vor.u32 %v1566, %v1562
        %v1568 = vrot.slane %v1567, 4
        %v1570 = vshrl.u32 %v1244, 16
        %v1572 = vrot.slane %v1570, 4
        %v1573 = vrot.slane %v1572, 4
        %v1575 = vshll.u32 %v1245, 16
        %v1577 = vrot.slane %v1575, 5
        %v1578 = vsel %vm1293, %v1573, %v1577
        %v1579 = vshrl.u32 %v1245, 16
        %v1581 = vrot.slane %v1579, 4
        %v1582 = vor.u32 %v1581, %v1577
        %v1583 = vrot.slane %v1582, 4
        %v1585 = vshll.u32 %v1282, 16
        %v1587 = vrot.slane %v1585, 5
        %v1588 = vsel %vm1293, %v1583, %v1587
        %v1589 = vshrl.u32 %v1282, 16
        %v1591 = vrot.slane %v1589, 4
        %v1592 = vor.u32 %v1591, %v1587
        %v1593 = vrot.slane %v1592, 4
        %v1595 = vshrl.u32 %v1247, 16
        %v1597 = vrot.slane %v1595, 4
        %v1598 = vrot.slane %v1597, 4
        %v1600 = vshll.u32 %v1248, 16
        %v1602 = vrot.slane %v1600, 5
        %v1603 = vsel %vm1293, %v1598, %v1602
        %v1604 = vshrl.u32 %v1248, 16
        %v1606 = vrot.slane %v1604, 4
        %v1607 = vor.u32 %v1606, %v1602
        %v1608 = vrot.slane %v1607, 4
        %v1610 = vshll.u32 %v1283, 16
        %v1612 = vrot.slane %v1610, 5
        %v1613 = vsel %vm1293, %v1608, %v1612
        %v1614 = vshrl.u32 %v1283, 16
        %v1616 = vrot.slane %v1614, 4
        %v1617 = vor.u32 %v1616, %v1612
        %v1618 = vrot.slane %v1617, 4
        %v1620 = vshrl.u32 %v1250, 16
        %v1622 = vrot.slane %v1620, 4
        %v1623 = vrot.slane %v1622, 4
        %v1625 = vshll.u32 %v1251, 16
        %v1627 = vrot.slane %v1625, 5
        %v1628 = vsel %vm1293, %v1623, %v1627
        %v1629 = vshrl.u32 %v1251, 16
        %v1631 = vrot.slane %v1629, 4
        %v1632 = vor.u32 %v1631, %v1627
        %v1633 = vrot.slane %v1632, 4
        %v1635 = vshll.u32 %v1284, 16
        %v1637 = vrot.slane %v1635, 5
        %v1638 = vsel %vm1293, %v1633, %v1637
        %v1639 = vshrl.u32 %v1284, 16
        %v1641 = vrot.slane %v1639, 4
        %v1642 = vor.u32 %v1641, %v1637
        %v1643 = vrot.slane %v1642, 4
        %v1645 = vshrl.u32 %v1253, 16
        %v1647 = vrot.slane %v1645, 4
        %v1648 = vrot.slane %v1647, 4
        %v1650 = vshll.u32 %v1254, 16
        %v1652 = vrot.slane %v1650, 5
        %v1653 = vsel %vm1293, %v1648, %v1652
        %v1654 = vshrl.u32 %v1254, 16
        %v1656 = vrot.slane %v1654, 4
        %v1657 = vor.u32 %v1656, %v1652
        %v1658 = vrot.slane %v1657, 4
        %v1660 = vshll.u32 %v1285, 16
        %v1662 = vrot.slane %v1660, 5
        %v1663 = vsel %vm1293, %v1658, %v1662
        %v1664 = vshrl.u32 %v1285, 16
        %v1666 = vrot.slane %v1664, 4
        %v1667 = vor.u32 %v1666, %v1662
        %v1668 = vrot.slane %v1667, 4
        %v1670 = vshrl.u32 %v1256, 16
        %v1672 = vrot.slane %v1670, 4
        %v1673 = vrot.slane %v1672, 4
        %v1675 = vshll.u32 %v1257, 16
        %v1677 = vrot.slane %v1675, 5
        %v1678 = vsel %vm1293, %v1673, %v1677
        %v1679 = vshrl.u32 %v1257, 16
        %v1681 = vrot.slane %v1679, 4
        %v1682 = vor.u32 %v1681, %v1677
        %v1683 = vrot.slane %v1682, 4
        %v1685 = vshll.u32 %v1286, 16
        %v1687 = vrot.slane %v1685, 5
        %v1688 = vsel %vm1293, %v1683, %v1687
        %v1689 = vshrl.u32 %v1286, 16
        %v1691 = vrot.slane %v1689, 4
        %v1692 = vor.u32 %v1691, %v1687
        %v1693 = vrot.slane %v1692, 4
        %v1695 = vshrl.u32 %v1259, 16
        %v1697 = vrot.slane %v1695, 4
        %v1698 = vrot.slane %v1697, 4
        %v1700 = vshll.u32 %v1260, 16
        %v1702 = vrot.slane %v1700, 5
        %v1703 = vsel %vm1293, %v1698, %v1702
        %v1704 = vshrl.u32 %v1260, 16
        %v1706 = vrot.slane %v1704, 4
        %v1707 = vor.u32 %v1706, %v1702
        %v1708 = vrot.slane %v1707, 4
        %v1710 = vshll.u32 %v1287, 16
        %v1712 = vrot.slane %v1710, 5
        %v1713 = vsel %vm1293, %v1708, %v1712
        %v1714 = vshrl.u32 %v1287, 16
        %v1716 = vrot.slane %v1714, 4
        %v1717 = vor.u32 %v1716, %v1712
        %v1718 = vrot.slane %v1717, 4
        %v1720 = vshrl.u32 %v1262, 16
        %v1722 = vrot.slane %v1720, 4
        %v1723 = vrot.slane %v1722, 4
        %v1725 = vshll.u32 %v1263, 16
        %v1727 = vrot.slane %v1725, 5
        %v1728 = vsel %vm1293, %v1723, %v1727
        %v1729 = vshrl.u32 %v1263, 16
        %v1731 = vrot.slane %v1729, 4
        %v1732 = vor.u32 %v1731, %v1727
        %v1733 = vrot.slane %v1732, 4
        %v1735 = vshll.u32 %v1288, 16
        %v1737 = vrot.slane %v1735, 5
        %v1738 = vsel %vm1293, %v1733, %v1737
        %v1739 = vshrl.u32 %v1288, 16
        %v1741 = vrot.slane %v1739, 4
        %v1742 = vor.u32 %v1741, %v1737
        %v1743 = vrot.slane %v1742, 4
        %v1745 = vshrl.u32 %v1265, 16
        %v1747 = vrot.slane %v1745, 4
        %v1748 = vrot.slane %v1747, 4
        %v1750 = vshll.u32 %v1266, 16
        %v1752 = vrot.slane %v1750, 5
        %v1753 = vsel %vm1293, %v1748, %v1752
        %v1754 = vshrl.u32 %v1266, 16
        %v1756 = vrot.slane %v1754, 4
        %v1757 = vor.u32 %v1756, %v1752
        %v1758 = vrot.slane %v1757, 4
        %v1760 = vshll.u32 %v1289, 16
        %v1762 = vrot.slane %v1760, 5
        %v1763 = vsel %vm1293, %v1758, %v1762
        %v1764 = vshrl.u32 %v1289, 16
        %v1766 = vrot.slane %v1764, 4
        %v1767 = vor.u32 %v1766, %v1762
        %v1768 = vrot.slane %v1767, 4
        %v1770 = vshrl.u32 %v1268, 16
        %v1772 = vrot.slane %v1770, 4
        %v1773 = vrot.slane %v1772, 4
        %v1775 = vshll.u32 %v1269, 16
        %v1777 = vrot.slane %v1775, 5
        %v1778 = vsel %vm1293, %v1773, %v1777
        %v1779 = vshrl.u32 %v1269, 16
        %v1781 = vrot.slane %v1779, 4
        %v1782 = vor.u32 %v1781, %v1777
        %v1783 = vrot.slane %v1782, 4
        %v1785 = vshll.u32 %v1290, 16
        %v1787 = vrot.slane %v1785, 5
        %v1788 = vsel %vm1293, %v1783, %v1787
        %v1789 = vshrl.u32 %v1290, 16
        %v1791 = vrot.slane %v1789, 4
        %v1792 = vor.u32 %v1791, %v1787
        %v1793 = vrot.slane %v1792, 4
        %v1854 = vmax.bf16 %v1211, %v1303
        %v1855 = vmax.bf16 %v1212, %v1313
        %v1856 = vmax.bf16 %v1213, %v1318
        %v1857 = vmax.bf16 %v1214, %v1328
        %v1858 = vmax.bf16 %v1215, %v1338
        %v1859 = vmax.bf16 %v1216, %v1343
        %v1860 = vmax.bf16 %v1217, %v1353
        %v1861 = vmax.bf16 %v1218, %v1363
        %v1862 = vmax.bf16 %v1219, %v1368
        %v1863 = vmax.bf16 %v1220, %v1378
        %v1864 = vmax.bf16 %v1221, %v1388
        %v1865 = vmax.bf16 %v1222, %v1393
        %v1866 = vmax.bf16 %v1223, %v1403
        %v1867 = vmax.bf16 %v1224, %v1413
        %v1868 = vmax.bf16 %v1225, %v1418
        %v1869 = vmax.bf16 %v1226, %v1428
        %v1870 = vmax.bf16 %v1227, %v1438
        %v1871 = vmax.bf16 %v1228, %v1443
        %v1872 = vmax.bf16 %v1229, %v1453
        %v1873 = vmax.bf16 %v1230, %v1463
        %v1874 = vmax.bf16 %v1231, %v1468
        %v1875 = vmax.bf16 %v1232, %v1478
        %v1876 = vmax.bf16 %v1233, %v1488
        %v1877 = vmax.bf16 %v1234, %v1493
        %v1878 = vmax.bf16 %v1235, %v1503
        %v1879 = vmax.bf16 %v1236, %v1513
        %v1880 = vmax.bf16 %v1237, %v1518
        %v1881 = vmax.bf16 %v1238, %v1528
        %v1882 = vmax.bf16 %v1239, %v1538
        %v1883 = vmax.bf16 %v1240, %v1543
        %v1884 = vmax.bf16 %v1241, %v1553
        %v1885 = vmax.bf16 %v1242, %v1563
        %v1886 = vmax.bf16 %v1243, %v1568
        %v1887 = vmax.bf16 %v1244, %v1578
        %v1888 = vmax.bf16 %v1245, %v1588
        %v1889 = vmax.bf16 %v1246, %v1593
        %v1890 = vmax.bf16 %v1247, %v1603
        %v1891 = vmax.bf16 %v1248, %v1613
        %v1892 = vmax.bf16 %v1249, %v1618
        %v1893 = vmax.bf16 %v1250, %v1628
        %v1894 = vmax.bf16 %v1251, %v1638
        %v1895 = vmax.bf16 %v1252, %v1643
        %v1896 = vmax.bf16 %v1253, %v1653
        %v1897 = vmax.bf16 %v1254, %v1663
        %v1898 = vmax.bf16 %v1255, %v1668
        %v1899 = vmax.bf16 %v1256, %v1678
        %v1900 = vmax.bf16 %v1257, %v1688
        %v1901 = vmax.bf16 %v1258, %v1693
        %v1902 = vmax.bf16 %v1259, %v1703
        %v1903 = vmax.bf16 %v1260, %v1713
        %v1904 = vmax.bf16 %v1261, %v1718
        %v1905 = vmax.bf16 %v1262, %v1728
        %v1906 = vmax.bf16 %v1263, %v1738
        %v1907 = vmax.bf16 %v1264, %v1743
        %v1908 = vmax.bf16 %v1265, %v1753
        %v1909 = vmax.bf16 %v1266, %v1763
        %v1910 = vmax.bf16 %v1267, %v1768
        %v1911 = vmax.bf16 %v1268, %v1778
        %v1912 = vmax.bf16 %v1269, %v1788
        %v1913 = vmax.bf16 %v1270, %v1793
        %vm1954 = vcmask 1042432
        %vm1955 = vcmask 1046532
        %vm1956 = vmor %vm1954, %vm1955
        %v1957 = vrot.slane %v1212, 5
        %v1958 = vrot.slane %v1957, 4
        %v1959 = vrot.slane %v1271, 5
        %v1960 = vsel %vm1956, %v1958, %v1959
        %v1961 = vrot.slane %v1959, 4
        %v1962 = vrot.slane %v1215, 5
        %v1963 = vrot.slane %v1962, 4
        %v1964 = vrot.slane %v1272, 5
        %v1965 = vsel %vm1956, %v1963, %v1964
        %v1966 = vrot.slane %v1964, 4
        %v1967 = vrot.slane %v1218, 5
        %v1968 = vrot.slane %v1967, 4
        %v1969 = vrot.slane %v1273, 5
        %v1970 = vsel %vm1956, %v1968, %v1969
        %v1971 = vrot.slane %v1969, 4
        %v1972 = vrot.slane %v1221, 5
        %v1973 = vrot.slane %v1972, 4
        %v1974 = vrot.slane %v1274, 5
        %v1975 = vsel %vm1956, %v1973, %v1974
        %v1976 = vrot.slane %v1974, 4
        %v1977 = vrot.slane %v1224, 5
        %v1978 = vrot.slane %v1977, 4
        %v1979 = vrot.slane %v1275, 5
        %v1980 = vsel %vm1956, %v1978, %v1979
        %v1981 = vrot.slane %v1979, 4
        %v1982 = vrot.slane %v1227, 5
        %v1983 = vrot.slane %v1982, 4
        %v1984 = vrot.slane %v1276, 5
        %v1985 = vsel %vm1956, %v1983, %v1984
        %v1986 = vrot.slane %v1984, 4
        %v1987 = vrot.slane %v1230, 5
        %v1988 = vrot.slane %v1987, 4
        %v1989 = vrot.slane %v1277, 5
        %v1990 = vsel %vm1956, %v1988, %v1989
        %v1991 = vrot.slane %v1989, 4
        %v1992 = vrot.slane %v1233, 5
        %v1993 = vrot.slane %v1992, 4
        %v1994 = vrot.slane %v1278, 5
        %v1995 = vsel %vm1956, %v1993, %v1994
        %v1996 = vrot.slane %v1994, 4
        %v1997 = vrot.slane %v1236, 5
        %v1998 = vrot.slane %v1997, 4
        %v1999 = vrot.slane %v1279, 5
        %v2000 = vsel %vm1956, %v1998, %v1999
        %v2001 = vrot.slane %v1999, 4
        %v2002 = vrot.slane %v1239, 5
        %v2003 = vrot.slane %v2002, 4
        %v2004 = vrot.slane %v1280, 5
        %v2005 = vsel %vm1956, %v2003, %v2004
        %v2006 = vrot.slane %v2004, 4
        %v2007 = vrot.slane %v1242, 5
        %v2008 = vrot.slane %v2007, 4
        %v2009 = vrot.slane %v1281, 5
        %v2010 = vsel %vm1956, %v2008, %v2009
        %v2011 = vrot.slane %v2009, 4
        %v2012 = vrot.slane %v1245, 5
        %v2013 = vrot.slane %v2012, 4
        %v2014 = vrot.slane %v1282, 5
        %v2015 = vsel %vm1956, %v2013, %v2014
        %v2016 = vrot.slane %v2014, 4
        %v2017 = vrot.slane %v1248, 5
        %v2018 = vrot.slane %v2017, 4
        %v2019 = vrot.slane %v1283, 5
        %v2020 = vsel %vm1956, %v2018, %v2019
        %v2021 = vrot.slane %v2019, 4
        %v2022 = vrot.slane %v1251, 5
        %v2023 = vrot.slane %v2022, 4
        %v2024 = vrot.slane %v1284, 5
        %v2025 = vsel %vm1956, %v2023, %v2024
        %v2026 = vrot.slane %v2024, 4
        %v2027 = vrot.slane %v1254, 5
        %v2028 = vrot.slane %v2027, 4
        %v2029 = vrot.slane %v1285, 5
        %v2030 = vsel %vm1956, %v2028, %v2029
        %v2031 = vrot.slane %v2029, 4
        %v2032 = vrot.slane %v1257, 5
        %v2033 = vrot.slane %v2032, 4
        %v2034 = vrot.slane %v1286, 5
        %v2035 = vsel %vm1956, %v2033, %v2034
        %v2036 = vrot.slane %v2034, 4
        %v2037 = vrot.slane %v1260, 5
        %v2038 = vrot.slane %v2037, 4
        %v2039 = vrot.slane %v1287, 5
        %v2040 = vsel %vm1956, %v2038, %v2039
        %v2041 = vrot.slane %v2039, 4
        %v2042 = vrot.slane %v1263, 5
        %v2043 = vrot.slane %v2042, 4
        %v2044 = vrot.slane %v1288, 5
        %v2045 = vsel %vm1956, %v2043, %v2044
        %v2046 = vrot.slane %v2044, 4
        %v2047 = vrot.slane %v1266, 5
        %v2048 = vrot.slane %v2047, 4
        %v2049 = vrot.slane %v1289, 5
        %v2050 = vsel %vm1956, %v2048, %v2049
        %v2051 = vrot.slane %v2049, 4
        %v2052 = vrot.slane %v1269, 5
        %v2053 = vrot.slane %v2052, 4
        %v2054 = vrot.slane %v1290, 5
        %v2055 = vsel %vm1956, %v2053, %v2054
        %v2056 = vrot.slane %v2054, 4
        %v2117 = vmax.bf16 %v1854, %v1957
        %v2118 = vmax.bf16 %v1855, %v1960
        %v2119 = vmax.bf16 %v1856, %v1961
        %v2120 = vmax.bf16 %v1857, %v1962
        %v2121 = vmax.bf16 %v1858, %v1965
        %v2122 = vmax.bf16 %v1859, %v1966
        %v2123 = vmax.bf16 %v1860, %v1967
        %v2124 = vmax.bf16 %v1861, %v1970
        %v2125 = vmax.bf16 %v1862, %v1971
        %v2126 = vmax.bf16 %v1863, %v1972
        %v2127 = vmax.bf16 %v1864, %v1975
        %v2128 = vmax.bf16 %v1865, %v1976
        %v2129 = vmax.bf16 %v1866, %v1977
        %v2130 = vmax.bf16 %v1867, %v1980
        %v2131 = vmax.bf16 %v1868, %v1981
        %v2132 = vmax.bf16 %v1869, %v1982
        %v2133 = vmax.bf16 %v1870, %v1985
        %v2134 = vmax.bf16 %v1871, %v1986
        %v2135 = vmax.bf16 %v1872, %v1987
        %v2136 = vmax.bf16 %v1873, %v1990
        %v2137 = vmax.bf16 %v1874, %v1991
        %v2138 = vmax.bf16 %v1875, %v1992
        %v2139 = vmax.bf16 %v1876, %v1995
        %v2140 = vmax.bf16 %v1877, %v1996
        %v2141 = vmax.bf16 %v1878, %v1997
        %v2142 = vmax.bf16 %v1879, %v2000
        %v2143 = vmax.bf16 %v1880, %v2001
        %v2144 = vmax.bf16 %v1881, %v2002
        %v2145 = vmax.bf16 %v1882, %v2005
        %v2146 = vmax.bf16 %v1883, %v2006
        %v2147 = vmax.bf16 %v1884, %v2007
        %v2148 = vmax.bf16 %v1885, %v2010
        %v2149 = vmax.bf16 %v1886, %v2011
        %v2150 = vmax.bf16 %v1887, %v2012
        %v2151 = vmax.bf16 %v1888, %v2015
        %v2152 = vmax.bf16 %v1889, %v2016
        %v2153 = vmax.bf16 %v1890, %v2017
        %v2154 = vmax.bf16 %v1891, %v2020
        %v2155 = vmax.bf16 %v1892, %v2021
        %v2156 = vmax.bf16 %v1893, %v2022
        %v2157 = vmax.bf16 %v1894, %v2025
        %v2158 = vmax.bf16 %v1895, %v2026
        %v2159 = vmax.bf16 %v1896, %v2027
        %v2160 = vmax.bf16 %v1897, %v2030
        %v2161 = vmax.bf16 %v1898, %v2031
        %v2162 = vmax.bf16 %v1899, %v2032
        %v2163 = vmax.bf16 %v1900, %v2035
        %v2164 = vmax.bf16 %v1901, %v2036
        %v2165 = vmax.bf16 %v1902, %v2037
        %v2166 = vmax.bf16 %v1903, %v2040
        %v2167 = vmax.bf16 %v1904, %v2041
        %v2168 = vmax.bf16 %v1905, %v2042
        %v2169 = vmax.bf16 %v1906, %v2045
        %v2170 = vmax.bf16 %v1907, %v2046
        %v2171 = vmax.bf16 %v1908, %v2047
        %v2172 = vmax.bf16 %v1909, %v2050
        %v2173 = vmax.bf16 %v1910, %v2051
        %v2174 = vmax.bf16 %v1911, %v2052
        %v2175 = vmax.bf16 %v1912, %v2055
        %v2176 = vmax.bf16 %v1913, %v2056
        %v2177 = vld [vmem:[%s1210 + $0x10] sm:$0x1]
        %v2178 = vld [vmem:[%s1210 + $0x24] sm:$0x1]
        %v2179 = vld [vmem:[%s1210 + $0x38] sm:$0x1]
        %v2180 = vld [vmem:[%s1210 + $0x4c] sm:$0x1]
        %v2181 = vld [vmem:[%s1210 + $0x60] sm:$0x1]
        %v2182 = vld [vmem:[%s1210 + $0x74] sm:$0x1]
        %v2183 = vld [vmem:[%s1210 + $0x88] sm:$0x1]
        %v2184 = vld [vmem:[%s1210 + $0x9c] sm:$0x1]
        %v2185 = vld [vmem:[%s1210 + $0xb0] sm:$0x1]
        %v2186 = vld [vmem:[%s1210 + $0xc4] sm:$0x1]
        %v2187 = vld [vmem:[%s1210 + $0xd8] sm:$0x1]
        %v2188 = vld [vmem:[%s1210 + $0xec] sm:$0x1]
        %v2189 = vld [vmem:[%s1210 + $0x100] sm:$0x1]
        %v2190 = vld [vmem:[%s1210 + $0x114] sm:$0x1]
        %v2191 = vld [vmem:[%s1210 + $0x128] sm:$0x1]
        %v2192 = vld [vmem:[%s1210 + $0x13c] sm:$0x1]
        %v2193 = vld [vmem:[%s1210 + $0x150] sm:$0x1]
        %v2194 = vld [vmem:[%s1210 + $0x164] sm:$0x1]
        %v2195 = vld [vmem:[%s1210 + $0x178] sm:$0x1]
        %v2196 = vld [vmem:[%s1210 + $0x18c] sm:$0x1]
        %vm2197 = vsmask.f32 2304
        %vm2198 = vsmask.f32 6416
        %vm2199 = vmor %vm2197, %vm2198
        %v2200 = vrot.slane %v1304, 5
        %v2201 = vrot.slane %v1300, 6
        %v2202 = vor.u32 %v2200, %v2201
        %v2203 = vrot.slane %v2202, 4
        %v2204 = vrot.slane %v1314, 5
        %v2205 = vrot.slane %v1310, 6
        %v2206 = vor.u32 %v2204, %v2205
        %v2207 = vsel %vm2199, %v2203, %v2206
        %v2208 = vrot.slane %v2206, 4
        %v2210 = vshll.u32 %v2177, 16
        %v2212 = vrot.slane %v2210, 6
        %v2213 = vsel %vm2199, %v2208, %v2212
        %v2214 = vrot.slane %v1329, 5
        %v2215 = vrot.slane %v1325, 6
        %v2216 = vor.u32 %v2214, %v2215
        %v2217 = vrot.slane %v2216, 4
        %v2218 = vrot.slane %v1339, 5
        %v2219 = vrot.slane %v1335, 6
        %v2220 = vor.u32 %v2218, %v2219
        %v2221 = vsel %vm2199, %v2217, %v2220
        %v2222 = vrot.slane %v2220, 4
        %v2224 = vshll.u32 %v2178, 16
        %v2226 = vrot.slane %v2224, 6
        %v2227 = vsel %vm2199, %v2222, %v2226
        %v2228 = vrot.slane %v1354, 5
        %v2229 = vrot.slane %v1350, 6
        %v2230 = vor.u32 %v2228, %v2229
        %v2231 = vrot.slane %v2230, 4
        %v2232 = vrot.slane %v1364, 5
        %v2233 = vrot.slane %v1360, 6
        %v2234 = vor.u32 %v2232, %v2233
        %v2235 = vsel %vm2199, %v2231, %v2234
        %v2236 = vrot.slane %v2234, 4
        %v2238 = vshll.u32 %v2179, 16
        %v2240 = vrot.slane %v2238, 6
        %v2241 = vsel %vm2199, %v2236, %v2240
        %v2242 = vrot.slane %v1379, 5
        %v2243 = vrot.slane %v1375, 6
        %v2244 = vor.u32 %v2242, %v2243
        %v2245 = vrot.slane %v2244, 4
        %v2246 = vrot.slane %v1389, 5
        %v2247 = vrot.slane %v1385, 6
        %v2248 = vor.u32 %v2246, %v2247
        %v2249 = vsel %vm2199, %v2245, %v2248
        %v2250 = vrot.slane %v2248, 4
        %v2252 = vshll.u32 %v2180, 16
        %v2254 = vrot.slane %v2252, 6
        %v2255 = vsel %vm2199, %v2250, %v2254
        %v2256 = vrot.slane %v1404, 5
        %v2257 = vrot.slane %v1400, 6
        %v2258 = vor.u32 %v2256, %v2257
        %v2259 = vrot.slane %v2258, 4
        %v2260 = vrot.slane %v1414, 5
        %v2261 = vrot.slane %v1410, 6
        %v2262 = vor.u32 %v2260, %v2261
        %v2263 = vsel %vm2199, %v2259, %v2262
        %v2264 = vrot.slane %v2262, 4
        %v2266 = vshll.u32 %v2181, 16
        %v2268 = vrot.slane %v2266, 6
        %v2269 = vsel %vm2199, %v2264, %v2268
        %v2270 = vrot.slane %v1429, 5
        %v2271 = vrot.slane %v1425, 6
        %v2272 = vor.u32 %v2270, %v2271
        %v2273 = vrot.slane %v2272, 4
        %v2274 = vrot.slane %v1439, 5
        %v2275 = vrot.slane %v1435, 6
        %v2276 = vor.u32 %v2274, %v2275
        %v2277 = vsel %vm2199, %v2273, %v2276
        %v2278 = vrot.slane %v2276, 4
        %v2280 = vshll.u32 %v2182, 16
        %v2282 = vrot.slane %v2280, 6
        %v2283 = vsel %vm2199, %v2278, %v2282
        %v2284 = vrot.slane %v1454, 5
        %v2285 = vrot.slane %v1450, 6
        %v2286 = vor.u32 %v2284, %v2285
        %v2287 = vrot.slane %v2286, 4
        %v2288 = vrot.slane %v1464, 5
        %v2289 = vrot.slane %v1460, 6
        %v2290 = vor.u32 %v2288, %v2289
        %v2291 = vsel %vm2199, %v2287, %v2290
        %v2292 = vrot.slane %v2290, 4
        %v2294 = vshll.u32 %v2183, 16
        %v2296 = vrot.slane %v2294, 6
        %v2297 = vsel %vm2199, %v2292, %v2296
        %v2298 = vrot.slane %v1479, 5
        %v2299 = vrot.slane %v1475, 6
        %v2300 = vor.u32 %v2298, %v2299
        %v2301 = vrot.slane %v2300, 4
        %v2302 = vrot.slane %v1489, 5
        %v2303 = vrot.slane %v1485, 6
        %v2304 = vor.u32 %v2302, %v2303
        %v2305 = vsel %vm2199, %v2301, %v2304
        %v2306 = vrot.slane %v2304, 4
        %v2308 = vshll.u32 %v2184, 16
        %v2310 = vrot.slane %v2308, 6
        %v2311 = vsel %vm2199, %v2306, %v2310
        %v2312 = vrot.slane %v1504, 5
        %v2313 = vrot.slane %v1500, 6
        %v2314 = vor.u32 %v2312, %v2313
        %v2315 = vrot.slane %v2314, 4
        %v2316 = vrot.slane %v1514, 5
        %v2317 = vrot.slane %v1510, 6
        %v2318 = vor.u32 %v2316, %v2317
        %v2319 = vsel %vm2199, %v2315, %v2318
        %v2320 = vrot.slane %v2318, 4
        %v2322 = vshll.u32 %v2185, 16
        %v2324 = vrot.slane %v2322, 6
        %v2325 = vsel %vm2199, %v2320, %v2324
        %v2326 = vrot.slane %v1529, 5
        %v2327 = vrot.slane %v1525, 6
        %v2328 = vor.u32 %v2326, %v2327
        %v2329 = vrot.slane %v2328, 4
        %v2330 = vrot.slane %v1539, 5
        %v2331 = vrot.slane %v1535, 6
        %v2332 = vor.u32 %v2330, %v2331
        %v2333 = vsel %vm2199, %v2329, %v2332
        %v2334 = vrot.slane %v2332, 4
        %v2336 = vshll.u32 %v2186, 16
        %v2338 = vrot.slane %v2336, 6
        %v2339 = vsel %vm2199, %v2334, %v2338
        %v2340 = vrot.slane %v1554, 5
        %v2341 = vrot.slane %v1550, 6
        %v2342 = vor.u32 %v2340, %v2341
        %v2343 = vrot.slane %v2342, 4
        %v2344 = vrot.slane %v1564, 5
        %v2345 = vrot.slane %v1560, 6
        %v2346 = vor.u32 %v2344, %v2345
        %v2347 = vsel %vm2199, %v2343, %v2346
        %v2348 = vrot.slane %v2346, 4
        %v2350 = vshll.u32 %v2187, 16
        %v2352 = vrot.slane %v2350, 6
        %v2353 = vsel %vm2199, %v2348, %v2352
        %v2354 = vrot.slane %v1579, 5
        %v2355 = vrot.slane %v1575, 6
        %v2356 = vor.u32 %v2354, %v2355
        %v2357 = vrot.slane %v2356, 4
        %v2358 = vrot.slane %v1589, 5
        %v2359 = vrot.slane %v1585, 6
        %v2360 = vor.u32 %v2358, %v2359
        %v2361 = vsel %vm2199, %v2357, %v2360
        %v2362 = vrot.slane %v2360, 4
        %v2364 = vshll.u32 %v2188, 16
        %v2366 = vrot.slane %v2364, 6
        %v2367 = vsel %vm2199, %v2362, %v2366
        %v2368 = vrot.slane %v1604, 5
        %v2369 = vrot.slane %v1600, 6
        %v2370 = vor.u32 %v2368, %v2369
        %v2371 = vrot.slane %v2370, 4
        %v2372 = vrot.slane %v1614, 5
        %v2373 = vrot.slane %v1610, 6
        %v2374 = vor.u32 %v2372, %v2373
        %v2375 = vsel %vm2199, %v2371, %v2374
        %v2376 = vrot.slane %v2374, 4
        %v2378 = vshll.u32 %v2189, 16
        %v2380 = vrot.slane %v2378, 6
        %v2381 = vsel %vm2199, %v2376, %v2380
        %v2382 = vrot.slane %v1629, 5
        %v2383 = vrot.slane %v1625, 6
        %v2384 = vor.u32 %v2382, %v2383
        %v2385 = vrot.slane %v2384, 4
        %v2386 = vrot.slane %v1639, 5
        %v2387 = vrot.slane %v1635, 6
        %v2388 = vor.u32 %v2386, %v2387
        %v2389 = vsel %vm2199, %v2385, %v2388
        %v2390 = vrot.slane %v2388, 4
        %v2392 = vshll.u32 %v2190, 16
        %v2394 = vrot.slane %v2392, 6
        %v2395 = vsel %vm2199, %v2390, %v2394
        %v2396 = vrot.slane %v1654, 5
        %v2397 = vrot.slane %v1650, 6
        %v2398 = vor.u32 %v2396, %v2397
        %v2399 = vrot.slane %v2398, 4
        %v2400 = vrot.slane %v1664, 5
        %v2401 = vrot.slane %v1660, 6
        %v2402 = vor.u32 %v2400, %v2401
        %v2403 = vsel %vm2199, %v2399, %v2402
        %v2404 = vrot.slane %v2402, 4
        %v2406 = vshll.u32 %v2191, 16
        %v2408 = vrot.slane %v2406, 6
        %v2409 = vsel %vm2199, %v2404, %v2408
        %v2410 = vrot.slane %v1679, 5
        %v2411 = vrot.slane %v1675, 6
        %v2412 = vor.u32 %v2410, %v2411
        %v2413 = vrot.slane %v2412, 4
        %v2414 = vrot.slane %v1689, 5
        %v2415 = vrot.slane %v1685, 6
        %v2416 = vor.u32 %v2414, %v2415
        %v2417 = vsel %vm2199, %v2413, %v2416
        %v2418 = vrot.slane %v2416, 4
        %v2420 = vshll.u32 %v2192, 16
        %v2422 = vrot.slane %v2420, 6
        %v2423 = vsel %vm2199, %v2418, %v2422
        %v2424 = vrot.slane %v1704, 5
        %v2425 = vrot.slane %v1700, 6
        %v2426 = vor.u32 %v2424, %v2425
        %v2427 = vrot.slane %v2426, 4
        %v2428 = vrot.slane %v1714, 5
        %v2429 = vrot.slane %v1710, 6
        %v2430 = vor.u32 %v2428, %v2429
        %v2431 = vsel %vm2199, %v2427, %v2430
        %v2432 = vrot.slane %v2430, 4
        %v2434 = vshll.u32 %v2193, 16
        %v2436 = vrot.slane %v2434, 6
        %v2437 = vsel %vm2199, %v2432, %v2436
        %v2438 = vrot.slane %v1729, 5
        %v2439 = vrot.slane %v1725, 6
        %v2440 = vor.u32 %v2438, %v2439
        %v2441 = vrot.slane %v2440, 4
        %v2442 = vrot.slane %v1739, 5
        %v2443 = vrot.slane %v1735, 6
        %v2444 = vor.u32 %v2442, %v2443
        %v2445 = vsel %vm2199, %v2441, %v2444
        %v2446 = vrot.slane %v2444, 4
        %v2448 = vshll.u32 %v2194, 16
        %v2450 = vrot.slane %v2448, 6
        %v2451 = vsel %vm2199, %v2446, %v2450
        %v2452 = vrot.slane %v1754, 5
        %v2453 = vrot.slane %v1750, 6
        %v2454 = vor.u32 %v2452, %v2453
        %v2455 = vrot.slane %v2454, 4
        %v2456 = vrot.slane %v1764, 5
        %v2457 = vrot.slane %v1760, 6
        %v2458 = vor.u32 %v2456, %v2457
        %v2459 = vsel %vm2199, %v2455, %v2458
        %v2460 = vrot.slane %v2458, 4
        %v2462 = vshll.u32 %v2195, 16
        %v2464 = vrot.slane %v2462, 6
        %v2465 = vsel %vm2199, %v2460, %v2464
        %v2466 = vrot.slane %v1779, 5
        %v2467 = vrot.slane %v1775, 6
        %v2468 = vor.u32 %v2466, %v2467
        %v2469 = vrot.slane %v2468, 4
        %v2470 = vrot.slane %v1789, 5
        %v2471 = vrot.slane %v1785, 6
        %v2472 = vor.u32 %v2470, %v2471
        %v2473 = vsel %vm2199, %v2469, %v2472
        %v2474 = vrot.slane %v2472, 4
        %v2476 = vshll.u32 %v2196, 16
        %v2478 = vrot.slane %v2476, 6
        %v2479 = vsel %vm2199, %v2474, %v2478
        %v2540 = vmax.bf16 %v2117, %v2202
        %v2541 = vmax.bf16 %v2118, %v2207
        %v2542 = vmax.bf16 %v2119, %v2213
        %v2543 = vmax.bf16 %v2120, %v2216
        %v2544 = vmax.bf16 %v2121, %v2221
        %v2545 = vmax.bf16 %v2122, %v2227
        %v2546 = vmax.bf16 %v2123, %v2230
        %v2547 = vmax.bf16 %v2124, %v2235
        %v2548 = vmax.bf16 %v2125, %v2241
        %v2549 = vmax.bf16 %v2126, %v2244
        %v2550 = vmax.bf16 %v2127, %v2249
        %v2551 = vmax.bf16 %v2128, %v2255
        %v2552 = vmax.bf16 %v2129, %v2258
        %v2553 = vmax.bf16 %v2130, %v2263
        %v2554 = vmax.bf16 %v2131, %v2269
        %v2555 = vmax.bf16 %v2132, %v2272
        %v2556 = vmax.bf16 %v2133, %v2277
        %v2557 = vmax.bf16 %v2134, %v2283
        %v2558 = vmax.bf16 %v2135, %v2286
        %v2559 = vmax.bf16 %v2136, %v2291
        %v2560 = vmax.bf16 %v2137, %v2297
        %v2561 = vmax.bf16 %v2138, %v2300
        %v2562 = vmax.bf16 %v2139, %v2305
        %v2563 = vmax.bf16 %v2140, %v2311
        %v2564 = vmax.bf16 %v2141, %v2314
        %v2565 = vmax.bf16 %v2142, %v2319
        %v2566 = vmax.bf16 %v2143, %v2325
        %v2567 = vmax.bf16 %v2144, %v2328
        %v2568 = vmax.bf16 %v2145, %v2333
        %v2569 = vmax.bf16 %v2146, %v2339
        %v2570 = vmax.bf16 %v2147, %v2342
        %v2571 = vmax.bf16 %v2148, %v2347
        %v2572 = vmax.bf16 %v2149, %v2353
        %v2573 = vmax.bf16 %v2150, %v2356
        %v2574 = vmax.bf16 %v2151, %v2361
        %v2575 = vmax.bf16 %v2152, %v2367
        %v2576 = vmax.bf16 %v2153, %v2370
        %v2577 = vmax.bf16 %v2154, %v2375
        %v2578 = vmax.bf16 %v2155, %v2381
        %v2579 = vmax.bf16 %v2156, %v2384
        %v2580 = vmax.bf16 %v2157, %v2389
        %v2581 = vmax.bf16 %v2158, %v2395
        %v2582 = vmax.bf16 %v2159, %v2398
        %v2583 = vmax.bf16 %v2160, %v2403
        %v2584 = vmax.bf16 %v2161, %v2409
        %v2585 = vmax.bf16 %v2162, %v2412
        %v2586 = vmax.bf16 %v2163, %v2417
        %v2587 = vmax.bf16 %v2164, %v2423
        %v2588 = vmax.bf16 %v2165, %v2426
        %v2589 = vmax.bf16 %v2166, %v2431
        %v2590 = vmax.bf16 %v2167, %v2437
        %v2591 = vmax.bf16 %v2168, %v2440
        %v2592 = vmax.bf16 %v2169, %v2445
        %v2593 = vmax.bf16 %v2170, %v2451
        %v2594 = vmax.bf16 %v2171, %v2454
        %v2595 = vmax.bf16 %v2172, %v2459
        %v2596 = vmax.bf16 %v2173, %v2465
        %v2597 = vmax.bf16 %v2174, %v2468
        %v2598 = vmax.bf16 %v2175, %v2473
        %v2599 = vmax.bf16 %v2176, %v2479
        %v2600 = vld [vmem:[%s1210 + $0x8] sm:$0xe]
        %v2601 = vld [vmem:[%s1210 + $0x1c] sm:$0xe]
        %v2602 = vld [vmem:[%s1210 + $0x30] sm:$0xe]
        %v2603 = vld [vmem:[%s1210 + $0x44] sm:$0xe]
        %v2604 = vld [vmem:[%s1210 + $0x58] sm:$0xe]
        %v2605 = vld [vmem:[%s1210 + $0x6c] sm:$0xe]
        %v2606 = vld [vmem:[%s1210 + $0x80] sm:$0xe]
        %v2607 = vld [vmem:[%s1210 + $0x94] sm:$0xe]
        %v2608 = vld [vmem:[%s1210 + $0xa8] sm:$0xe]
        %v2609 = vld [vmem:[%s1210 + $0xbc] sm:$0xe]
        %v2610 = vld [vmem:[%s1210 + $0xd0] sm:$0xe]
        %v2611 = vld [vmem:[%s1210 + $0xe4] sm:$0xe]
        %v2612 = vld [vmem:[%s1210 + $0xf8] sm:$0xe]
        %v2613 = vld [vmem:[%s1210 + $0x10c] sm:$0xe]
        %v2614 = vld [vmem:[%s1210 + $0x120] sm:$0xe]
        %v2615 = vld [vmem:[%s1210 + $0x134] sm:$0xe]
        %v2616 = vld [vmem:[%s1210 + $0x148] sm:$0xe]
        %v2617 = vld [vmem:[%s1210 + $0x15c] sm:$0xe]
        %v2618 = vld [vmem:[%s1210 + $0x170] sm:$0xe]
        %v2619 = vld [vmem:[%s1210 + $0x184] sm:$0xe]
        %vm2660 = vcmask 1041408
        %vm2661 = vcmask 1045508
        %vm2662 = vmor %vm2660, %vm2661
        %v2663 = vrot.slane %v2600, 6
        %v2664 = vrot.slane %v2663, 4
        %v2665 = vrot.slane %v1271, 6
        %v2666 = vsel %vm2662, %v2664, %v2665
        %v2667 = vrot.slane %v2665, 4
        %v2668 = vrot.slane %v2177, 6
        %v2669 = vsel %vm2662, %v2667, %v2668
        %v2670 = vrot.slane %v2601, 6
        %v2671 = vrot.slane %v2670, 4
        %v2672 = vrot.slane %v1272, 6
        %v2673 = vsel %vm2662, %v2671, %v2672
        %v2674 = vrot.slane %v2672, 4
        %v2675 = vrot.slane %v2178, 6
        %v2676 = vsel %vm2662, %v2674, %v2675
        %v2677 = vrot.slane %v2602, 6
        %v2678 = vrot.slane %v2677, 4
        %v2679 = vrot.slane %v1273, 6
        %v2680 = vsel %vm2662, %v2678, %v2679
        %v2681 = vrot.slane %v2679, 4
        %v2682 = vrot.slane %v2179, 6
        %v2683 = vsel %vm2662, %v2681, %v2682
        %v2684 = vrot.slane %v2603, 6
        %v2685 = vrot.slane %v2684, 4
        %v2686 = vrot.slane %v1274, 6
        %v2687 = vsel %vm2662, %v2685, %v2686
        %v2688 = vrot.slane %v2686, 4
        %v2689 = vrot.slane %v2180, 6
        %v2690 = vsel %vm2662, %v2688, %v2689
        %v2691 = vrot.slane %v2604, 6
        %v2692 = vrot.slane %v2691, 4
        %v2693 = vrot.slane %v1275, 6
        %v2694 = vsel %vm2662, %v2692, %v2693
        %v2695 = vrot.slane %v2693, 4
        %v2696 = vrot.slane %v2181, 6
        %v2697 = vsel %vm2662, %v2695, %v2696
        %v2698 = vrot.slane %v2605, 6
        %v2699 = vrot.slane %v2698, 4
        %v2700 = vrot.slane %v1276, 6
        %v2701 = vsel %vm2662, %v2699, %v2700
        %v2702 = vrot.slane %v2700, 4
        %v2703 = vrot.slane %v2182, 6
        %v2704 = vsel %vm2662, %v2702, %v2703
        %v2705 = vrot.slane %v2606, 6
        %v2706 = vrot.slane %v2705, 4
        %v2707 = vrot.slane %v1277, 6
        %v2708 = vsel %vm2662, %v2706, %v2707
        %v2709 = vrot.slane %v2707, 4
        %v2710 = vrot.slane %v2183, 6
        %v2711 = vsel %vm2662, %v2709, %v2710
        %v2712 = vrot.slane %v2607, 6
        %v2713 = vrot.slane %v2712, 4
        %v2714 = vrot.slane %v1278, 6
        %v2715 = vsel %vm2662, %v2713, %v2714
        %v2716 = vrot.slane %v2714, 4
        %v2717 = vrot.slane %v2184, 6
        %v2718 = vsel %vm2662, %v2716, %v2717
        %v2719 = vrot.slane %v2608, 6
        %v2720 = vrot.slane %v2719, 4
        %v2721 = vrot.slane %v1279, 6
        %v2722 = vsel %vm2662, %v2720, %v2721
        %v2723 = vrot.slane %v2721, 4
        %v2724 = vrot.slane %v2185, 6
        %v2725 = vsel %vm2662, %v2723, %v2724
        %v2726 = vrot.slane %v2609, 6
        %v2727 = vrot.slane %v2726, 4
        %v2728 = vrot.slane %v1280, 6
        %v2729 = vsel %vm2662, %v2727, %v2728
        %v2730 = vrot.slane %v2728, 4
        %v2731 = vrot.slane %v2186, 6
        %v2732 = vsel %vm2662, %v2730, %v2731
        %v2733 = vrot.slane %v2610, 6
        %v2734 = vrot.slane %v2733, 4
        %v2735 = vrot.slane %v1281, 6
        %v2736 = vsel %vm2662, %v2734, %v2735
        %v2737 = vrot.slane %v2735, 4
        %v2738 = vrot.slane %v2187, 6
        %v2739 = vsel %vm2662, %v2737, %v2738
        %v2740 = vrot.slane %v2611, 6
        %v2741 = vrot.slane %v2740, 4
        %v2742 = vrot.slane %v1282, 6
        %v2743 = vsel %vm2662, %v2741, %v2742
        %v2744 = vrot.slane %v2742, 4
        %v2745 = vrot.slane %v2188, 6
        %v2746 = vsel %vm2662, %v2744, %v2745
        %v2747 = vrot.slane %v2612, 6
        %v2748 = vrot.slane %v2747, 4
        %v2749 = vrot.slane %v1283, 6
        %v2750 = vsel %vm2662, %v2748, %v2749
        %v2751 = vrot.slane %v2749, 4
        %v2752 = vrot.slane %v2189, 6
        %v2753 = vsel %vm2662, %v2751, %v2752
        %v2754 = vrot.slane %v2613, 6
        %v2755 = vrot.slane %v2754, 4
        %v2756 = vrot.slane %v1284, 6
        %v2757 = vsel %vm2662, %v2755, %v2756
        %v2758 = vrot.slane %v2756, 4
        %v2759 = vrot.slane %v2190, 6
        %v2760 = vsel %vm2662, %v2758, %v2759
        %v2761 = vrot.slane %v2614, 6
        %v2762 = vrot.slane %v2761, 4
        %v2763 = vrot.slane %v1285, 6
        %v2764 = vsel %vm2662, %v2762, %v2763
        %v2765 = vrot.slane %v2763, 4
        %v2766 = vrot.slane %v2191, 6
        %v2767 = vsel %vm2662, %v2765, %v2766
        %v2768 = vrot.slane %v2615, 6
        %v2769 = vrot.slane %v2768, 4
        %v2770 = vrot.slane %v1286, 6
        %v2771 = vsel %vm2662, %v2769, %v2770
        %v2772 = vrot.slane %v2770, 4
        %v2773 = vrot.slane %v2192, 6
        %v2774 = vsel %vm2662, %v2772, %v2773
        %v2775 = vrot.slane %v2616, 6
        %v2776 = vrot.slane %v2775, 4
        %v2777 = vrot.slane %v1287, 6
        %v2778 = vsel %vm2662, %v2776, %v2777
        %v2779 = vrot.slane %v2777, 4
        %v2780 = vrot.slane %v2193, 6
        %v2781 = vsel %vm2662, %v2779, %v2780
        %v2782 = vrot.slane %v2617, 6
        %v2783 = vrot.slane %v2782, 4
        %v2784 = vrot.slane %v1288, 6
        %v2785 = vsel %vm2662, %v2783, %v2784
        %v2786 = vrot.slane %v2784, 4
        %v2787 = vrot.slane %v2194, 6
        %v2788 = vsel %vm2662, %v2786, %v2787
        %v2789 = vrot.slane %v2618, 6
        %v2790 = vrot.slane %v2789, 4
        %v2791 = vrot.slane %v1289, 6
        %v2792 = vsel %vm2662, %v2790, %v2791
        %v2793 = vrot.slane %v2791, 4
        %v2794 = vrot.slane %v2195, 6
        %v2795 = vsel %vm2662, %v2793, %v2794
        %v2796 = vrot.slane %v2619, 6
        %v2797 = vrot.slane %v2796, 4
        %v2798 = vrot.slane %v1290, 6
        %v2799 = vsel %vm2662, %v2797, %v2798
        %v2800 = vrot.slane %v2798, 4
        %v2801 = vrot.slane %v2196, 6
        %v2802 = vsel %vm2662, %v2800, %v2801
        %v2863 = vmax.bf16 %v2540, %v2663
        %v2864 = vmax.bf16 %v2541, %v2666
        %v2865 = vmax.bf16 %v2542, %v2669
        %v2866 = vmax.bf16 %v2543, %v2670
        %v2867 = vmax.bf16 %v2544, %v2673
        %v2868 = vmax.bf16 %v2545, %v2676
        %v2869 = vmax.bf16 %v2546, %v2677
        %v2870 = vmax.bf16 %v2547, %v2680
        %v2871 = vmax.bf16 %v2548, %v2683
        %v2872 = vmax.bf16 %v2549, %v2684
        %v2873 = vmax.bf16 %v2550, %v2687
        %v2874 = vmax.bf16 %v2551, %v2690
        %v2875 = vmax.bf16 %v2552, %v2691
        %v2876 = vmax.bf16 %v2553, %v2694
        %v2877 = vmax.bf16 %v2554, %v2697
        %v2878 = vmax.bf16 %v2555, %v2698
        %v2879 = vmax.bf16 %v2556, %v2701
        %v2880 = vmax.bf16 %v2557, %v2704
        %v2881 = vmax.bf16 %v2558, %v2705
        %v2882 = vmax.bf16 %v2559, %v2708
        %v2883 = vmax.bf16 %v2560, %v2711
        %v2884 = vmax.bf16 %v2561, %v2712
        %v2885 = vmax.bf16 %v2562, %v2715
        %v2886 = vmax.bf16 %v2563, %v2718
        %v2887 = vmax.bf16 %v2564, %v2719
        %v2888 = vmax.bf16 %v2565, %v2722
        %v2889 = vmax.bf16 %v2566, %v2725
        %v2890 = vmax.bf16 %v2567, %v2726
        %v2891 = vmax.bf16 %v2568, %v2729
        %v2892 = vmax.bf16 %v2569, %v2732
        %v2893 = vmax.bf16 %v2570, %v2733
        %v2894 = vmax.bf16 %v2571, %v2736
        %v2895 = vmax.bf16 %v2572, %v2739
        %v2896 = vmax.bf16 %v2573, %v2740
        %v2897 = vmax.bf16 %v2574, %v2743
        %v2898 = vmax.bf16 %v2575, %v2746
        %v2899 = vmax.bf16 %v2576, %v2747
        %v2900 = vmax.bf16 %v2577, %v2750
        %v2901 = vmax.bf16 %v2578, %v2753
        %v2902 = vmax.bf16 %v2579, %v2754
        %v2903 = vmax.bf16 %v2580, %v2757
        %v2904 = vmax.bf16 %v2581, %v2760
        %v2905 = vmax.bf16 %v2582, %v2761
        %v2906 = vmax.bf16 %v2583, %v2764
        %v2907 = vmax.bf16 %v2584, %v2767
        %v2908 = vmax.bf16 %v2585, %v2768
        %v2909 = vmax.bf16 %v2586, %v2771
        %v2910 = vmax.bf16 %v2587, %v2774
        %v2911 = vmax.bf16 %v2588, %v2775
        %v2912 = vmax.bf16 %v2589, %v2778
        %v2913 = vmax.bf16 %v2590, %v2781
        %v2914 = vmax.bf16 %v2591, %v2782
        %v2915 = vmax.bf16 %v2592, %v2785
        %v2916 = vmax.bf16 %v2593, %v2788
        %v2917 = vmax.bf16 %v2594, %v2789
        %v2918 = vmax.bf16 %v2595, %v2792
        %v2919 = vmax.bf16 %v2596, %v2795
        %v2920 = vmax.bf16 %v2597, %v2796
        %v2921 = vmax.bf16 %v2598, %v2799
        %v2922 = vmax.bf16 %v2599, %v2802
        %v2923 = vmax.bf16 %v2863, %v2866
        %v2924 = vmax.bf16 %v2864, %v2867
        %v2925 = vmax.bf16 %v2865, %v2868
        %v2926 = vmax.bf16 %v2866, %v2869
        %v2927 = vmax.bf16 %v2867, %v2870
        %v2928 = vmax.bf16 %v2868, %v2871
        %v2929 = vmax.bf16 %v2869, %v2872
        %v2930 = vmax.bf16 %v2870, %v2873
        %v2931 = vmax.bf16 %v2871, %v2874
        %v2932 = vmax.bf16 %v2872, %v2875
        %v2933 = vmax.bf16 %v2873, %v2876
        %v2934 = vmax.bf16 %v2874, %v2877
        %v2935 = vmax.bf16 %v2875, %v2878
        %v2936 = vmax.bf16 %v2876, %v2879
        %v2937 = vmax.bf16 %v2877, %v2880
        %v2938 = vmax.bf16 %v2878, %v2881
        %v2939 = vmax.bf16 %v2879, %v2882
        %v2940 = vmax.bf16 %v2880, %v2883
        %v2941 = vmax.bf16 %v2881, %v2884
        %v2942 = vmax.bf16 %v2882, %v2885
        %v2943 = vmax.bf16 %v2883, %v2886
        %v2944 = vmax.bf16 %v2884, %v2887
        %v2945 = vmax.bf16 %v2885, %v2888
        %v2946 = vmax.bf16 %v2886, %v2889
        %v2947 = vmax.bf16 %v2887, %v2890
        %v2948 = vmax.bf16 %v2888, %v2891
        %v2949 = vmax.bf16 %v2889, %v2892
        %v2950 = vmax.bf16 %v2890, %v2893
        %v2951 = vmax.bf16 %v2891, %v2894
        %v2952 = vmax.bf16 %v2892, %v2895
        %v2953 = vmax.bf16 %v2893, %v2896
        %v2954 = vmax.bf16 %v2894, %v2897
        %v2955 = vmax.bf16 %v2895, %v2898
        %v2956 = vmax.bf16 %v2896, %v2899
        %v2957 = vmax.bf16 %v2897, %v2900
        %v2958 = vmax.bf16 %v2898, %v2901
        %v2959 = vmax.bf16 %v2899, %v2902
        %v2960 = vmax.bf16 %v2900, %v2903
        %v2961 = vmax.bf16 %v2901, %v2904
        %v2962 = vmax.bf16 %v2902, %v2905
        %v2963 = vmax.bf16 %v2903, %v2906
        %v2964 = vmax.bf16 %v2904, %v2907
        %v2965 = vmax.bf16 %v2905, %v2908
        %v2966 = vmax.bf16 %v2906, %v2909
        %v2967 = vmax.bf16 %v2907, %v2910
        %v2968 = vmax.bf16 %v2908, %v2911
        %v2969 = vmax.bf16 %v2909, %v2912
        %v2970 = vmax.bf16 %v2910, %v2913
        %v2971 = vmax.bf16 %v2923, %v2869
        %v2972 = vmax.bf16 %v2924, %v2870
        %v2973 = vmax.bf16 %v2925, %v2871
        %v2974 = vmax.bf16 %v2926, %v2872
        %v2975 = vmax.bf16 %v2927, %v2873
        %v2976 = vmax.bf16 %v2928, %v2874
        %v2977 = vmax.bf16 %v2929, %v2875
        %v2978 = vmax.bf16 %v2930, %v2876
        %v2979 = vmax.bf16 %v2931, %v2877
        %v2980 = vmax.bf16 %v2932, %v2878
        %v2981 = vmax.bf16 %v2933, %v2879
        %v2982 = vmax.bf16 %v2934, %v2880
        %v2983 = vmax.bf16 %v2935, %v2881
        %v2984 = vmax.bf16 %v2936, %v2882
        %v2985 = vmax.bf16 %v2937, %v2883
        %v2986 = vmax.bf16 %v2938, %v2884
        %v2987 = vmax.bf16 %v2939, %v2885
        %v2988 = vmax.bf16 %v2940, %v2886
        %v2989 = vmax.bf16 %v2941, %v2887
        %v2990 = vmax.bf16 %v2942, %v2888
        %v2991 = vmax.bf16 %v2943, %v2889
        %v2992 = vmax.bf16 %v2944, %v2890
        %v2993 = vmax.bf16 %v2945, %v2891
        %v2994 = vmax.bf16 %v2946, %v2892
        %v2995 = vmax.bf16 %v2947, %v2893
        %v2996 = vmax.bf16 %v2948, %v2894
        %v2997 = vmax.bf16 %v2949, %v2895
        %v2998 = vmax.bf16 %v2950, %v2896
        %v2999 = vmax.bf16 %v2951, %v2897
        %v3000 = vmax.bf16 %v2952, %v2898
        %v3001 = vmax.bf16 %v2953, %v2899
        %v3002 = vmax.bf16 %v2954, %v2900
        %v3003 = vmax.bf16 %v2955, %v2901
        %v3004 = vmax.bf16 %v2956, %v2902
        %v3005 = vmax.bf16 %v2957, %v2903
        %v3006 = vmax.bf16 %v2958, %v2904
        %v3007 = vmax.bf16 %v2959, %v2905
        %v3008 = vmax.bf16 %v2960, %v2906
        %v3009 = vmax.bf16 %v2961, %v2907
        %v3010 = vmax.bf16 %v2962, %v2908
        %v3011 = vmax.bf16 %v2963, %v2909
        %v3012 = vmax.bf16 %v2964, %v2910
        %v3013 = vmax.bf16 %v2965, %v2911
        %v3014 = vmax.bf16 %v2966, %v2912
        %v3015 = vmax.bf16 %v2967, %v2913
        %v3016 = vmax.bf16 %v2968, %v2914
        %v3017 = vmax.bf16 %v2969, %v2915
        %v3018 = vmax.bf16 %v2970, %v2916
        %v3019 = vmax.bf16 %v2971, %v2872
        %v3020 = vmax.bf16 %v2972, %v2873
        %v3021 = vmax.bf16 %v2973, %v2874
        %v3022 = vmax.bf16 %v2974, %v2875
        %v3023 = vmax.bf16 %v2975, %v2876
        %v3024 = vmax.bf16 %v2976, %v2877
        %v3025 = vmax.bf16 %v2977, %v2878
        %v3026 = vmax.bf16 %v2978, %v2879
        %v3027 = vmax.bf16 %v2979, %v2880
        %v3028 = vmax.bf16 %v2980, %v2881
        %v3029 = vmax.bf16 %v2981, %v2882
        %v3030 = vmax.bf16 %v2982, %v2883
        %v3031 = vmax.bf16 %v2983, %v2884
        %v3032 = vmax.bf16 %v2984, %v2885
        %v3033 = vmax.bf16 %v2985, %v2886
        %v3034 = vmax.bf16 %v2986, %v2887
        %v3035 = vmax.bf16 %v2987, %v2888
        %v3036 = vmax.bf16 %v2988, %v2889
        %v3037 = vmax.bf16 %v2989, %v2890
        %v3038 = vmax.bf16 %v2990, %v2891
        %v3039 = vmax.bf16 %v2991, %v2892
        %v3040 = vmax.bf16 %v2992, %v2893
        %v3041 = vmax.bf16 %v2993, %v2894
        %v3042 = vmax.bf16 %v2994, %v2895
        %v3043 = vmax.bf16 %v2995, %v2896
        %v3044 = vmax.bf16 %v2996, %v2897
        %v3045 = vmax.bf16 %v2997, %v2898
        %v3046 = vmax.bf16 %v2998, %v2899
        %v3047 = vmax.bf16 %v2999, %v2900
        %v3048 = vmax.bf16 %v3000, %v2901
        %v3049 = vmax.bf16 %v3001, %v2902
        %v3050 = vmax.bf16 %v3002, %v2903
        %v3051 = vmax.bf16 %v3003, %v2904
        %v3052 = vmax.bf16 %v3004, %v2905
        %v3053 = vmax.bf16 %v3005, %v2906
        %v3054 = vmax.bf16 %v3006, %v2907
        %v3055 = vmax.bf16 %v3007, %v2908
        %v3056 = vmax.bf16 %v3008, %v2909
        %v3057 = vmax.bf16 %v3009, %v2910
        %v3058 = vmax.bf16 %v3010, %v2911
        %v3059 = vmax.bf16 %v3011, %v2912
        %v3060 = vmax.bf16 %v3012, %v2913
        %v3061 = vmax.bf16 %v3013, %v2914
        %v3062 = vmax.bf16 %v3014, %v2915
        %v3063 = vmax.bf16 %v3015, %v2916
        %v3064 = vmax.bf16 %v3016, %v2917
        %v3065 = vmax.bf16 %v3017, %v2918
        %v3066 = vmax.bf16 %v3018, %v2919
        %v3067 = vmax.bf16 %v3019, %v2875
        %v3068 = vmax.bf16 %v3020, %v2876
        %v3069 = vmax.bf16 %v3021, %v2877
        %v3070 = vmax.bf16 %v3022, %v2878
        %v3071 = vmax.bf16 %v3023, %v2879
        %v3072 = vmax.bf16 %v3024, %v2880
        %v3073 = vmax.bf16 %v3025, %v2881
        %v3074 = vmax.bf16 %v3026, %v2882
        %v3075 = vmax.bf16 %v3027, %v2883
        %v3076 = vmax.bf16 %v3028, %v2884
        %v3077 = vmax.bf16 %v3029, %v2885
        %v3078 = vmax.bf16 %v3030, %v2886
        %v3079 = vmax.bf16 %v3031, %v2887
        %v3080 = vmax.bf16 %v3032, %v2888
        %v3081 = vmax.bf16 %v3033, %v2889
        %v3082 = vmax.bf16 %v3034, %v2890
        %v3083 = vmax.bf16 %v3035, %v2891
        %v3084 = vmax.bf16 %v3036, %v2892
        %v3085 = vmax.bf16 %v3037, %v2893
        %v3086 = vmax.bf16 %v3038, %v2894
        %v3087 = vmax.bf16 %v3039, %v2895
        %v3088 = vmax.bf16 %v3040, %v2896
        %v3089 = vmax.bf16 %v3041, %v2897
        %v3090 = vmax.bf16 %v3042, %v2898
        %v3091 = vmax.bf16 %v3043, %v2899
        %v3092 = vmax.bf16 %v3044, %v2900
        %v3093 = vmax.bf16 %v3045, %v2901
        %v3094 = vmax.bf16 %v3046, %v2902
        %v3095 = vmax.bf16 %v3047, %v2903
        %v3096 = vmax.bf16 %v3048, %v2904
        %v3097 = vmax.bf16 %v3049, %v2905
        %v3098 = vmax.bf16 %v3050, %v2906
        %v3099 = vmax.bf16 %v3051, %v2907
        %v3100 = vmax.bf16 %v3052, %v2908
        %v3101 = vmax.bf16 %v3053, %v2909
        %v3102 = vmax.bf16 %v3054, %v2910
        %v3103 = vmax.bf16 %v3055, %v2911
        %v3104 = vmax.bf16 %v3056, %v2912
        %v3105 = vmax.bf16 %v3057, %v2913
        %v3106 = vmax.bf16 %v3058, %v2914
        %v3107 = vmax.bf16 %v3059, %v2915
        %v3108 = vmax.bf16 %v3060, %v2916
        %v3109 = vmax.bf16 %v3061, %v2917
        %v3110 = vmax.bf16 %v3062, %v2918
        %v3111 = vmax.bf16 %v3063, %v2919
        %v3112 = vmax.bf16 %v3064, %v2920
        %v3113 = vmax.bf16 %v3065, %v2921
        %v3114 = vmax.bf16 %v3066, %v2922
        %s3115 = sadd.s32 %s957, 2
        %vm3164 = vcmask 1040384
        %vm3165 = vcmask 1044484
        %vm3166 = vmor %vm3164, %vm3165
        %v3167 = vrot.slane %v3067, 7
        %v3168 = vrot.slane %v3167, 4
        %v3169 = vrot.slane %v3068, 7
        %v3170 = vsel %vm3166, %v3168, %v3169
        %v3171 = vrot.slane %v3169, 4
        %v3172 = vrot.slane %v3069, 7
        %v3173 = vsel %vm3166, %v3171, %v3172
        %v3174 = vrot.slane %v3070, 7
        %v3175 = vrot.slane %v3174, 4
        %v3176 = vrot.slane %v3071, 7
        %v3177 = vsel %vm3166, %v3175, %v3176
        %v3178 = vrot.slane %v3176, 4
        %v3179 = vrot.slane %v3072, 7
        %v3180 = vsel %vm3166, %v3178, %v3179
        %v3181 = vrot.slane %v3073, 7
        %v3182 = vrot.slane %v3181, 4
        %v3183 = vrot.slane %v3074, 7
        %v3184 = vsel %vm3166, %v3182, %v3183
        %v3185 = vrot.slane %v3183, 4
        %v3186 = vrot.slane %v3075, 7
        %v3187 = vsel %vm3166, %v3185, %v3186
        %v3188 = vrot.slane %v3076, 7
        %v3189 = vrot.slane %v3188, 4
        %v3190 = vrot.slane %v3077, 7
        %v3191 = vsel %vm3166, %v3189, %v3190
        %v3192 = vrot.slane %v3190, 4
        %v3193 = vrot.slane %v3078, 7
        %v3194 = vsel %vm3166, %v3192, %v3193
        %v3195 = vrot.slane %v3079, 7
        %v3196 = vrot.slane %v3195, 4
        %v3197 = vrot.slane %v3080, 7
        %v3198 = vsel %vm3166, %v3196, %v3197
        %v3199 = vrot.slane %v3197, 4
        %v3200 = vrot.slane %v3081, 7
        %v3201 = vsel %vm3166, %v3199, %v3200
        %v3202 = vrot.slane %v3082, 7
        %v3203 = vrot.slane %v3202, 4
        %v3204 = vrot.slane %v3083, 7
        %v3205 = vsel %vm3166, %v3203, %v3204
        %v3206 = vrot.slane %v3204, 4
        %v3207 = vrot.slane %v3084, 7
        %v3208 = vsel %vm3166, %v3206, %v3207
        %v3209 = vrot.slane %v3085, 7
        %v3210 = vrot.slane %v3209, 4
        %v3211 = vrot.slane %v3086, 7
        %v3212 = vsel %vm3166, %v3210, %v3211
        %v3213 = vrot.slane %v3211, 4
        %v3214 = vrot.slane %v3087, 7
        %v3215 = vsel %vm3166, %v3213, %v3214
        %v3216 = vrot.slane %v3088, 7
        %v3217 = vrot.slane %v3216, 4
        %v3218 = vrot.slane %v3089, 7
        %v3219 = vsel %vm3166, %v3217, %v3218
        %v3220 = vrot.slane %v3218, 4
        %v3221 = vrot.slane %v3090, 7
        %v3222 = vsel %vm3166, %v3220, %v3221
        %v3223 = vrot.slane %v3091, 7
        %v3224 = vrot.slane %v3223, 4
        %v3225 = vrot.slane %v3092, 7
        %v3226 = vsel %vm3166, %v3224, %v3225
        %v3227 = vrot.slane %v3225, 4
        %v3228 = vrot.slane %v3093, 7
        %v3229 = vsel %vm3166, %v3227, %v3228
        %v3230 = vrot.slane %v3094, 7
        %v3231 = vrot.slane %v3230, 4
        %v3232 = vrot.slane %v3095, 7
        %v3233 = vsel %vm3166, %v3231, %v3232
        %v3234 = vrot.slane %v3232, 4
        %v3235 = vrot.slane %v3096, 7
        %v3236 = vsel %vm3166, %v3234, %v3235
        %v3237 = vrot.slane %v3097, 7
        %v3238 = vrot.slane %v3237, 4
        %v3239 = vrot.slane %v3098, 7
        %v3240 = vsel %vm3166, %v3238, %v3239
        %v3241 = vrot.slane %v3239, 4
        %v3242 = vrot.slane %v3099, 7
        %v3243 = vsel %vm3166, %v3241, %v3242
        %v3244 = vrot.slane %v3100, 7
        %v3245 = vrot.slane %v3244, 4
        %v3246 = vrot.slane %v3101, 7
        %v3247 = vsel %vm3166, %v3245, %v3246
        %v3248 = vrot.slane %v3246, 4
        %v3249 = vrot.slane %v3102, 7
        %v3250 = vsel %vm3166, %v3248, %v3249
        %v3251 = vrot.slane %v3103, 7
        %v3252 = vrot.slane %v3251, 4
        %v3253 = vrot.slane %v3104, 7
        %v3254 = vsel %vm3166, %v3252, %v3253
        %v3255 = vrot.slane %v3253, 4
        %v3256 = vrot.slane %v3105, 7
        %v3257 = vsel %vm3166, %v3255, %v3256
        %v3258 = vrot.slane %v3106, 7
        %v3259 = vrot.slane %v3258, 4
        %v3260 = vrot.slane %v3107, 7
        %v3261 = vsel %vm3166, %v3259, %v3260
        %v3262 = vrot.slane %v3260, 4
        %v3263 = vrot.slane %v3108, 7
        %v3264 = vsel %vm3166, %v3262, %v3263
        %v3265 = vrot.slane %v3109, 7
        %v3266 = vrot.slane %v3265, 4
        %v3267 = vrot.slane %v3110, 7
        %v3268 = vsel %vm3166, %v3266, %v3267
        %v3269 = vrot.slane %v3267, 4
        %v3270 = vrot.slane %v3111, 7
        %v3271 = vsel %vm3166, %v3269, %v3270
        %v3272 = vrot.slane %v3112, 7
        %v3273 = vrot.slane %v3272, 4
        %v3274 = vrot.slane %v3113, 7
        %v3275 = vsel %vm3166, %v3273, %v3274
        %v3276 = vrot.slane %v3274, 4
        %v3277 = vrot.slane %v3114, 7
        %v3278 = vsel %vm3166, %v3276, %v3277
        %s3311 = smul.u32 %s3115, 5
        %s3312 = smul.addr %s3311, 4
        %s3313 = scalar_lea.vmem [#allocation2], %s3312
        %3314 = vst [vmem:[%s3313 + $0x8] sm:$0xf] %v3170
        %3315 = vst [vmem:[%s3313 + $0xc] sm:$0xf] %v3173
        %3316 = vst [vmem:[%s3313 + $0x1c] sm:$0xf] %v3177
        %3317 = vst [vmem:[%s3313 + $0x20] sm:$0xf] %v3180
        %3318 = vst [vmem:[%s3313 + $0x30] sm:$0xf] %v3184
        %3319 = vst [vmem:[%s3313 + $0x34] sm:$0xf] %v3187
        %3320 = vst [vmem:[%s3313 + $0x44] sm:$0xf] %v3191
        %3321 = vst [vmem:[%s3313 + $0x48] sm:$0xf] %v3194
        %3322 = vst [vmem:[%s3313 + $0x58] sm:$0xf] %v3198
        %3323 = vst [vmem:[%s3313 + $0x5c] sm:$0xf] %v3201
        %3324 = vst [vmem:[%s3313 + $0x6c] sm:$0xf] %v3205
        %3325 = vst [vmem:[%s3313 + $0x70] sm:$0xf] %v3208
        %3326 = vst [vmem:[%s3313 + $0x80] sm:$0xf] %v3212
        %3327 = vst [vmem:[%s3313 + $0x84] sm:$0xf] %v3215
        %3328 = vst [vmem:[%s3313 + $0x94] sm:$0xf] %v3219
        %3329 = vst [vmem:[%s3313 + $0x98] sm:$0xf] %v3222
        %3330 = vst [vmem:[%s3313 + $0xa8] sm:$0xf] %v3226
        %3331 = vst [vmem:[%s3313 + $0xac] sm:$0xf] %v3229
        %3332 = vst [vmem:[%s3313 + $0xbc] sm:$0xf] %v3233
        %3333 = vst [vmem:[%s3313 + $0xc0] sm:$0xf] %v3236
        %3334 = vst [vmem:[%s3313 + $0xd0] sm:$0xf] %v3240
        %3335 = vst [vmem:[%s3313 + $0xd4] sm:$0xf] %v3243
        %3336 = vst [vmem:[%s3313 + $0xe4] sm:$0xf] %v3247
        %3337 = vst [vmem:[%s3313 + $0xe8] sm:$0xf] %v3250
        %3338 = vst [vmem:[%s3313 + $0xf8] sm:$0xf] %v3254
        %3339 = vst [vmem:[%s3313 + $0xfc] sm:$0xf] %v3257
        %3340 = vst [vmem:[%s3313 + $0x10c] sm:$0xf] %v3261
        %3341 = vst [vmem:[%s3313 + $0x110] sm:$0xf] %v3264
        %3342 = vst [vmem:[%s3313 + $0x120] sm:$0xf] %v3268
        %3343 = vst [vmem:[%s3313 + $0x124] sm:$0xf] %v3271
        %3344 = vst [vmem:[%s3313 + $0x134] sm:$0xf] %v3275
        %3345 = vst [vmem:[%s3313 + $0x138] sm:$0xf] %v3278
        %v3346 = vld [vmem:[#allocation3] sm:$0xff]
        %v3347 = vld [vmem:[#allocation3 + $0x8] sm:$0xff]
        %v3348 = vld [vmem:[#allocation3 + $0x10] sm:$0xff]
        %v3349 = vld [vmem:[#allocation3 + $0x18] sm:$0xff]
        %v3350 = vld [vmem:[#allocation3 + $0x20] sm:$0xff]
        %v3351 = vld [vmem:[#allocation3 + $0x28] sm:$0xff]
        %v3352 = vld [vmem:[#allocation3 + $0x30] sm:$0xff]
        %v3353 = vld [vmem:[#allocation3 + $0x38] sm:$0xff]
        %v3354 = vld [vmem:[#allocation3 + $0x40] sm:$0xff]
        %v3355 = vld [vmem:[#allocation3 + $0x48] sm:$0xff]
        %v3356 = vld [vmem:[#allocation3 + $0x50] sm:$0xff]
        %v3357 = vld [vmem:[#allocation3 + $0x58] sm:$0xff]
        %v3358 = vld [vmem:[#allocation3 + $0x60] sm:$0xff]
        %v3359 = vld [vmem:[#allocation3 + $0x68] sm:$0xff]
        %v3360 = vld [vmem:[#allocation3 + $0x70] sm:$0xff]
        %v3361 = vld [vmem:[#allocation3 + $0x78] sm:$0xff]
        %v3362 = vld [vmem:[%s966 + $0x8] sm:$0xf]
        %v3363 = vld [vmem:[%s966 + $0xc] sm:$0xf]
        %v3364 = vld [vmem:[%s966 + $0x1c] sm:$0xf]
        %v3365 = vld [vmem:[%s966 + $0x20] sm:$0xf]
        %v3366 = vld [vmem:[%s966 + $0x30] sm:$0xf]
        %v3367 = vld [vmem:[%s966 + $0x34] sm:$0xf]
        %v3368 = vld [vmem:[%s966 + $0x44] sm:$0xf]
        %v3369 = vld [vmem:[%s966 + $0x48] sm:$0xf]
        %v3370 = vld [vmem:[%s966 + $0x58] sm:$0xf]
        %v3371 = vld [vmem:[%s966 + $0x5c] sm:$0xf]
        %v3372 = vld [vmem:[%s966 + $0x6c] sm:$0xf]
        %v3373 = vld [vmem:[%s966 + $0x70] sm:$0xf]
        %v3374 = vld [vmem:[%s966 + $0x80] sm:$0xf]
        %v3375 = vld [vmem:[%s966 + $0x84] sm:$0xf]
        %v3376 = vld [vmem:[%s966 + $0x94] sm:$0xf]
        %v3377 = vld [vmem:[%s966 + $0x98] sm:$0xf]
        %s3378 = scalar_lea.vmem [#allocation9], 64
        %v3379 = vld [vmem:[%s3378] sm:$0xf]
        %v3380 = vld [vmem:[%s3378 + $0x4] sm:$0xf]
        %v3381 = vld [vmem:[%s3378 + $0x8] sm:$0xf]
        %v3382 = vld [vmem:[%s3378 + $0xc] sm:$0xf]
        %v3383 = vld [vmem:[%s3378 + $0x10] sm:$0xf]
        %v3384 = vld [vmem:[%s3378 + $0x14] sm:$0xf]
        %v3385 = vld [vmem:[%s3378 + $0x18] sm:$0xf]
        %v3386 = vld [vmem:[%s3378 + $0x1c] sm:$0xf]
        %v3387 = vld [vmem:[%s3378 + $0x20] sm:$0xf]
        %v3388 = vld [vmem:[%s3378 + $0x24] sm:$0xf]
        %v3389 = vld [vmem:[%s3378 + $0x28] sm:$0xf]
        %v3390 = vld [vmem:[%s3378 + $0x2c] sm:$0xf]
        %v3391 = vld [vmem:[%s3378 + $0x30] sm:$0xf]
        %v3392 = vld [vmem:[%s3378 + $0x34] sm:$0xf]
        %v3393 = vld [vmem:[%s3378 + $0x38] sm:$0xf]
        %v3394 = vld [vmem:[%s3378 + $0x3c] sm:$0xf]
        %v3411 = vunpack.c.l.b16 %v3362
        %v3412 = vunpack.c.l.b16 %v3363
        %v3413 = vunpack.c.l.b16 %v3364
        %v3414 = vunpack.c.l.b16 %v3365
        %v3415 = vunpack.c.l.b16 %v3366
        %v3416 = vunpack.c.l.b16 %v3367
        %v3417 = vunpack.c.l.b16 %v3368
        %v3418 = vunpack.c.l.b16 %v3369
        %v3419 = vunpack.c.l.b16 %v3370
        %v3420 = vunpack.c.l.b16 %v3371
        %v3421 = vunpack.c.l.b16 %v3372
        %v3422 = vunpack.c.l.b16 %v3373
        %v3423 = vunpack.c.l.b16 %v3374
        %v3424 = vunpack.c.l.b16 %v3375
        %v3425 = vunpack.c.l.b16 %v3376
        %v3426 = vunpack.c.l.b16 %v3377
        %v3427 = vpack.c.b16 %v3412, %v3411
        %v3428 = vpack.c.b16 %v3414, %v3413
        %v3429 = vpack.c.b16 %v3416, %v3415
        %v3430 = vpack.c.b16 %v3418, %v3417
        %v3431 = vpack.c.b16 %v3420, %v3419
        %v3432 = vpack.c.b16 %v3422, %v3421
        %v3433 = vpack.c.b16 %v3424, %v3423
        %v3434 = vpack.c.b16 %v3426, %v3425
        %v3459 = vunpack.c.l.b16 %v3379
        %v3460 = vunpack.c.l.b16 %v3380
        %v3461 = vunpack.c.l.b16 %v3381
        %v3462 = vunpack.c.l.b16 %v3382
        %v3463 = vunpack.c.l.b16 %v3383
        %v3464 = vunpack.c.l.b16 %v3384
        %v3465 = vunpack.c.l.b16 %v3385
        %v3466 = vunpack.c.l.b16 %v3386
        %v3467 = vunpack.c.l.b16 %v3387
        %v3468 = vunpack.c.l.b16 %v3388
        %v3469 = vunpack.c.l.b16 %v3389
        %v3470 = vunpack.c.l.b16 %v3390
        %v3471 = vunpack.c.l.b16 %v3391
        %v3472 = vunpack.c.l.b16 %v3392
        %v3473 = vunpack.c.l.b16 %v3393
        %v3474 = vunpack.c.l.b16 %v3394
        %v3475 = vpack.c.b16 %v3460, %v3459
        %v3476 = vpack.c.b16 %v3462, %v3461
        %v3477 = vpack.c.b16 %v3464, %v3463
        %v3478 = vpack.c.b16 %v3466, %v3465
        %v3479 = vpack.c.b16 %v3468, %v3467
        %v3480 = vpack.c.b16 %v3470, %v3469
        %v3481 = vpack.c.b16 %v3472, %v3471
        %v3482 = vpack.c.b16 %v3474, %v3473
        %3491 = vmatprep.subr.bf16.mxu0 0
        %3492 = vmatpush1.bf16.msra.mxu0 %v3482
        %3493 = vmatprep.subr.bf16.mxu0 0
        %3494 = vmatpush1.bf16.msra.mxu0 %v3481
        %3495 = vmatprep.subr.bf16.mxu0 0
        %3496 = vmatpush1.bf16.msra.mxu0 %v3480
        %3497 = vmatprep.subr.bf16.mxu0 0
        %3498 = vmatpush1.bf16.msra.mxu0 %v3479
        %3499 = vmatprep.subr.bf16.mxu0 0
        %3500 = vmatpush1.bf16.msra.mxu0 %v3478
        %3501 = vmatprep.subr.bf16.mxu0 0
        %3502 = vmatpush1.bf16.msra.mxu0 %v3477
        %3503 = vmatprep.subr.bf16.mxu0 0
        %3504 = vmatpush1.bf16.msra.mxu0 %v3476
        %3505 = vmatprep.subr.bf16.mxu0 0
        %3506 = vmatpush1.bf16.msra.mxu0 %v3475
        %3507 = vmatprep.subr.bf16.mxu0 0
        %3508 = vmatpush2.bf16.msra.mxu0 0
        %3509 = vmatprep.subr.bf16.mxu0 0
        %3510 = vmatpush2.bf16.msra.mxu0 0
        %3511 = vmatprep.subr.bf16.mxu0 0
        %3512 = vmatpush2.bf16.msra.mxu0 0
        %3513 = vmatprep.subr.bf16.mxu0 0
        %3514 = vmatpush2.bf16.msra.mxu0 0
        %3515 = vmatprep.subr.bf16.mxu0 0
        %3516 = vmatpush2.bf16.msra.mxu0 0
        %3517 = vmatprep.subr.bf16.mxu0 0
        %3518 = vmatpush2.bf16.msra.mxu0 0
        %3519 = vmatprep.subr.bf16.mxu0 0
        %3520 = vmatpush2.bf16.msra.mxu0 0
        %3521 = vmatprep.subr.bf16.mxu0 0
        %3522 = vmatpush2.bf16.msra.mxu0 0
        %3523 = vmatprep.mubr.bf16.mxu0 0
        %3524 = vmatmul.mubr.bf16.gmra.mxu0 %v3427
        %v3525 = vpop.f32.mrf.mxu0
        %v3526 = vadd.f32 0.0, %v3525
        %v3527 = vpop.f32.mrf.mxu0
        %v3528 = vpop.f32.mrf.mxu0
        %v3529 = vadd.f32 0.0, %v3528
        %v3530 = vpop.f32.mrf.mxu0
        %3531 = vmatprep.mubr.bf16.mxu0 0
        %3532 = vmatmul.mubr.bf16.gmra.mxu0 %v3428
        %v3533 = vpop.f32.mrf.mxu0
        %v3534 = vadd.f32 0.0, %v3533
        %v3535 = vpop.f32.mrf.mxu0
        %v3536 = vpop.f32.mrf.mxu0
        %v3537 = vadd.f32 0.0, %v3536
        %v3538 = vpop.f32.mrf.mxu0
        %3539 = vmatprep.mubr.bf16.mxu0 0
        %3540 = vmatmul.mubr.bf16.gmra.mxu0 %v3429
        %v3541 = vpop.f32.mrf.mxu0
        %v3542 = vadd.f32 0.0, %v3541
        %v3543 = vpop.f32.mrf.mxu0
        %v3544 = vpop.f32.mrf.mxu0
        %v3545 = vadd.f32 0.0, %v3544
        %v3546 = vpop.f32.mrf.mxu0
        %3547 = vmatprep.mubr.bf16.mxu0 0
        %3548 = vmatmul.mubr.bf16.gmra.mxu0 %v3430
        %v3549 = vpop.f32.mrf.mxu0
        %v3550 = vadd.f32 0.0, %v3549
        %v3551 = vpop.f32.mrf.mxu0
        %v3552 = vpop.f32.mrf.mxu0
        %v3553 = vadd.f32 0.0, %v3552
        %v3554 = vpop.f32.mrf.mxu0
        %3555 = vmatprep.mubr.bf16.mxu0 0
        %3556 = vmatmul.mubr.bf16.gmra.mxu0 %v3431
        %v3557 = vpop.f32.mrf.mxu0
        %v3558 = vadd.f32 0.0, %v3557
        %v3559 = vpop.f32.mrf.mxu0
        %v3560 = vpop.f32.mrf.mxu0
        %v3561 = vadd.f32 0.0, %v3560
        %v3562 = vpop.f32.mrf.mxu0
        %3563 = vmatprep.mubr.bf16.mxu0 0
        %3564 = vmatmul.mubr.bf16.gmra.mxu0 %v3432
        %v3565 = vpop.f32.mrf.mxu0
        %v3566 = vadd.f32 0.0, %v3565
        %v3567 = vpop.f32.mrf.mxu0
        %v3568 = vpop.f32.mrf.mxu0
        %v3569 = vadd.f32 0.0, %v3568
        %v3570 = vpop.f32.mrf.mxu0
        %3571 = vmatprep.mubr.bf16.mxu0 0
        %3572 = vmatmul.mubr.bf16.gmra.mxu0 %v3433
        %v3573 = vpop.f32.mrf.mxu0
        %v3574 = vadd.f32 0.0, %v3573
        %v3575 = vpop.f32.mrf.mxu0
        %v3576 = vpop.f32.mrf.mxu0
        %v3577 = vadd.f32 0.0, %v3576
        %v3578 = vpop.f32.mrf.mxu0
        %3579 = vmatprep.mubr.bf16.mxu0 0
        %3580 = vmatmul.mubr.bf16.gmra.mxu0 %v3434
        %v3581 = vpop.f32.mrf.mxu0
        %v3582 = vadd.f32 0.0, %v3581
        %v3583 = vpop.f32.mrf.mxu0
        %v3584 = vpop.f32.mrf.mxu0
        %v3585 = vadd.f32 0.0, %v3584
        %v3586 = vpop.f32.mrf.mxu0
        %3587 = vdwg.mxu0
        %v3588 = vadd.f32 %v3346, %v3526
        %v3589 = vadd.f32 %v3347, %v3529
        %v3590 = vadd.f32 %v3348, %v3534
        %v3591 = vadd.f32 %v3349, %v3537
        %v3592 = vadd.f32 %v3350, %v3542
        %v3593 = vadd.f32 %v3351, %v3545
        %v3594 = vadd.f32 %v3352, %v3550
        %v3595 = vadd.f32 %v3353, %v3553
        %v3596 = vadd.f32 %v3354, %v3558
        %v3597 = vadd.f32 %v3355, %v3561
        %v3598 = vadd.f32 %v3356, %v3566
        %v3599 = vadd.f32 %v3357, %v3569
        %v3600 = vadd.f32 %v3358, %v3574
        %v3601 = vadd.f32 %v3359, %v3577
        %v3602 = vadd.f32 %v3360, %v3582
        %v3603 = vadd.f32 %v3361, %v3585
        %3604 = vst [vmem:[#allocation3] sm:$0xff] %v3588
        %3605 = vst [vmem:[#allocation3 + $0x8] sm:$0xff] %v3589
        %3606 = vst [vmem:[#allocation3 + $0x10] sm:$0xff] %v3590
        %3607 = vst [vmem:[#allocation3 + $0x18] sm:$0xff] %v3591
        %3608 = vst [vmem:[#allocation3 + $0x20] sm:$0xff] %v3592
        %3609 = vst [vmem:[#allocation3 + $0x28] sm:$0xff] %v3593
        %3610 = vst [vmem:[#allocation3 + $0x30] sm:$0xff] %v3594
        %3611 = vst [vmem:[#allocation3 + $0x38] sm:$0xff] %v3595
        %3612 = vst [vmem:[#allocation3 + $0x40] sm:$0xff] %v3596
        %3613 = vst [vmem:[#allocation3 + $0x48] sm:$0xff] %v3597
        %3614 = vst [vmem:[#allocation3 + $0x50] sm:$0xff] %v3598
        %3615 = vst [vmem:[#allocation3 + $0x58] sm:$0xff] %v3599
        %3616 = vst [vmem:[#allocation3 + $0x60] sm:$0xff] %v3600
        %3617 = vst [vmem:[#allocation3 + $0x68] sm:$0xff] %v3601
        %3618 = vst [vmem:[#allocation3 + $0x70] sm:$0xff] %v3602
        %3619 = vst [vmem:[#allocation3 + $0x78] sm:$0xff] %v3603
        %s3620 = smul.u32 %s962, 5
        %s3621 = smul.addr %s3620, 4
        %s3622 = scalar_lea.vmem [#allocation2], %s3621
        %v3623 = vld [vmem:[%s3622 + $0x4] sm:$0x8]
        %v3624 = vld [vmem:[%s3622 + $0x8] sm:$0xf]
        %v3625 = vld [vmem:[%s3622 + $0xc] sm:$0x7]
        %v3626 = vld [vmem:[%s3622 + $0x18] sm:$0x8]
        %v3627 = vld [vmem:[%s3622 + $0x1c] sm:$0xf]
        %v3628 = vld [vmem:[%s3622 + $0x20] sm:$0x7]
        %v3629 = vld [vmem:[%s3622 + $0x2c] sm:$0x8]
        %v3630 = vld [vmem:[%s3622 + $0x30] sm:$0xf]
        %v3631 = vld [vmem:[%s3622 + $0x34] sm:$0x7]
        %v3632 = vld [vmem:[%s3622 + $0x40] sm:$0x8]
        %v3633 = vld [vmem:[%s3622 + $0x44] sm:$0xf]
        %v3634 = vld [vmem:[%s3622 + $0x48] sm:$0x7]
        %v3635 = vld [vmem:[%s3622 + $0x54] sm:$0x8]
        %v3636 = vld [vmem:[%s3622 + $0x58] sm:$0xf]
        %v3637 = vld [vmem:[%s3622 + $0x5c] sm:$0x7]
        %v3638 = vld [vmem:[%s3622 + $0x68] sm:$0x8]
        %v3639 = vld [vmem:[%s3622 + $0x6c] sm:$0xf]
        %v3640 = vld [vmem:[%s3622 + $0x70] sm:$0x7]
        %v3641 = vld [vmem:[%s3622 + $0x7c] sm:$0x8]
        %v3642 = vld [vmem:[%s3622 + $0x80] sm:$0xf]
        %v3643 = vld [vmem:[%s3622 + $0x84] sm:$0x7]
        %v3644 = vld [vmem:[%s3622 + $0x90] sm:$0x8]
        %v3645 = vld [vmem:[%s3622 + $0x94] sm:$0xf]
        %v3646 = vld [vmem:[%s3622 + $0x98] sm:$0x7]
        %v3647 = vld [vmem:[%s3622 + $0xa4] sm:$0x8]
        %v3648 = vld [vmem:[%s3622 + $0xa8] sm:$0xf]
        %v3649 = vld [vmem:[%s3622 + $0xac] sm:$0x7]
        %v3650 = vld [vmem:[%s3622 + $0xb8] sm:$0x8]
        %v3651 = vld [vmem:[%s3622 + $0xbc] sm:$0xf]
        %v3652 = vld [vmem:[%s3622 + $0xc0] sm:$0x7]
        %v3653 = vld [vmem:[%s3622 + $0xcc] sm:$0x8]
        %v3654 = vld [vmem:[%s3622 + $0xd0] sm:$0xf]
        %v3655 = vld [vmem:[%s3622 + $0xd4] sm:$0x7]
        %v3656 = vld [vmem:[%s3622 + $0xe0] sm:$0x8]
        %v3657 = vld [vmem:[%s3622 + $0xe4] sm:$0xf]
        %v3658 = vld [vmem:[%s3622 + $0xe8] sm:$0x7]
        %v3659 = vld [vmem:[%s3622 + $0xf4] sm:$0x8]
        %v3660 = vld [vmem:[%s3622 + $0xf8] sm:$0xf]
        %v3661 = vld [vmem:[%s3622 + $0xfc] sm:$0x7]
        %v3662 = vld [vmem:[%s3622 + $0x108] sm:$0x8]
        %v3663 = vld [vmem:[%s3622 + $0x10c] sm:$0xf]
        %v3664 = vld [vmem:[%s3622 + $0x110] sm:$0x7]
        %v3665 = vld [vmem:[%s3622 + $0x11c] sm:$0x8]
        %v3666 = vld [vmem:[%s3622 + $0x120] sm:$0xf]
        %v3667 = vld [vmem:[%s3622 + $0x124] sm:$0x7]
        %v3668 = vld [vmem:[%s3622 + $0x130] sm:$0x8]
        %v3669 = vld [vmem:[%s3622 + $0x134] sm:$0xf]
        %v3670 = vld [vmem:[%s3622 + $0x138] sm:$0x7]
        %v3671 = vld [vmem:[%s3622 + $0xc] sm:$0xf]
        %v3672 = vld [vmem:[%s3622 + $0x20] sm:$0xf]
        %v3673 = vld [vmem:[%s3622 + $0x34] sm:$0xf]
        %v3674 = vld [vmem:[%s3622 + $0x48] sm:$0xf]
        %v3675 = vld [vmem:[%s3622 + $0x5c] sm:$0xf]
        %v3676 = vld [vmem:[%s3622 + $0x70] sm:$0xf]
        %v3677 = vld [vmem:[%s3622 + $0x84] sm:$0xf]
        %v3678 = vld [vmem:[%s3622 + $0x98] sm:$0xf]
        %v3679 = vld [vmem:[%s3622 + $0xac] sm:$0xf]
        %v3680 = vld [vmem:[%s3622 + $0xc0] sm:$0xf]
        %v3681 = vld [vmem:[%s3622 + $0xd4] sm:$0xf]
        %v3682 = vld [vmem:[%s3622 + $0xe8] sm:$0xf]
        %v3683 = vld [vmem:[%s3622 + $0xfc] sm:$0xf]
        %v3684 = vld [vmem:[%s3622 + $0x110] sm:$0xf]
        %v3685 = vld [vmem:[%s3622 + $0x124] sm:$0xf]
        %v3686 = vld [vmem:[%s3622 + $0x138] sm:$0xf]
        %v3688 = vshrl.u32 %v3623, 16
        %v3690 = vrot.slane %v3688, 4
        %v3691 = vrot.slane %v3690, 4
        %v3693 = vshll.u32 %v3624, 16
        %v3695 = vrot.slane %v3693, 5
        %v3696 = vsel %vm1293, %v3691, %v3695
        %v3697 = vshrl.u32 %v3624, 16
        %v3699 = vrot.slane %v3697, 4
        %v3700 = vor.u32 %v3699, %v3695
        %v3701 = vrot.slane %v3700, 4
        %v3703 = vshll.u32 %v3671, 16
        %v3705 = vrot.slane %v3703, 5
        %v3706 = vsel %vm1293, %v3701, %v3705
        %v3707 = vshrl.u32 %v3671, 16
        %v3709 = vrot.slane %v3707, 4
        %v3710 = vor.u32 %v3709, %v3705
        %v3711 = vrot.slane %v3710, 4
        %v3713 = vshrl.u32 %v3626, 16
        %v3715 = vrot.slane %v3713, 4
        %v3716 = vrot.slane %v3715, 4
        %v3718 = vshll.u32 %v3627, 16
        %v3720 = vrot.slane %v3718, 5
        %v3721 = vsel %vm1293, %v3716, %v3720
        %v3722 = vshrl.u32 %v3627, 16
        %v3724 = vrot.slane %v3722, 4
        %v3725 = vor.u32 %v3724, %v3720
        %v3726 = vrot.slane %v3725, 4
        %v3728 = vshll.u32 %v3672, 16
        %v3730 = vrot.slane %v3728, 5
        %v3731 = vsel %vm1293, %v3726, %v3730
        %v3732 = vshrl.u32 %v3672, 16
        %v3734 = vrot.slane %v3732, 4
        %v3735 = vor.u32 %v3734, %v3730
        %v3736 = vrot.slane %v3735, 4
        %v3738 = vshrl.u32 %v3629, 16
        %v3740 = vrot.slane %v3738, 4
        %v3741 = vrot.slane %v3740, 4
        %v3743 = vshll.u32 %v3630, 16
        %v3745 = vrot.slane %v3743, 5
        %v3746 = vsel %vm1293, %v3741, %v3745
        %v3747 = vshrl.u32 %v3630, 16
        %v3749 = vrot.slane %v3747, 4
        %v3750 = vor.u32 %v3749, %v3745
        %v3751 = vrot.slane %v3750, 4
        %v3753 = vshll.u32 %v3673, 16
        %v3755 = vrot.slane %v3753, 5
        %v3756 = vsel %vm1293, %v3751, %v3755
        %v3757 = vshrl.u32 %v3673, 16
        %v3759 = vrot.slane %v3757, 4
        %v3760 = vor.u32 %v3759, %v3755
        %v3761 = vrot.slane %v3760, 4
        %v3763 = vshrl.u32 %v3632, 16
        %v3765 = vrot.slane %v3763, 4
        %v3766 = vrot.slane %v3765, 4
        %v3768 = vshll.u32 %v3633, 16
        %v3770 = vrot.slane %v3768, 5
        %v3771 = vsel %vm1293, %v3766, %v3770
        %v3772 = vshrl.u32 %v3633, 16
        %v3774 = vrot.slane %v3772, 4
        %v3775 = vor.u32 %v3774, %v3770
        %v3776 = vrot.slane %v3775, 4
        %v3778 = vshll.u32 %v3674, 16
        %v3780 = vrot.slane %v3778, 5
        %v3781 = vsel %vm1293, %v3776, %v3780
        %v3782 = vshrl.u32 %v3674, 16
        %v3784 = vrot.slane %v3782, 4
        %v3785 = vor.u32 %v3784, %v3780
        %v3786 = vrot.slane %v3785, 4
        %v3788 = vshrl.u32 %v3635, 16
        %v3790 = vrot.slane %v3788, 4
        %v3791 = vrot.slane %v3790, 4
        %v3793 = vshll.u32 %v3636, 16
        %v3795 = vrot.slane %v3793, 5
        %v3796 = vsel %vm1293, %v3791, %v3795
        %v3797 = vshrl.u32 %v3636, 16
        %v3799 = vrot.slane %v3797, 4
        %v3800 = vor.u32 %v3799, %v3795
        %v3801 = vrot.slane %v3800, 4
        %v3803 = vshll.u32 %v3675, 16
        %v3805 = vrot.slane %v3803, 5
        %v3806 = vsel %vm1293, %v3801, %v3805
        %v3807 = vshrl.u32 %v3675, 16
        %v3809 = vrot.slane %v3807, 4
        %v3810 = vor.u32 %v3809, %v3805
        %v3811 = vrot.slane %v3810, 4
        %v3813 = vshrl.u32 %v3638, 16
        %v3815 = vrot.slane %v3813, 4
        %v3816 = vrot.slane %v3815, 4
        %v3818 = vshll.u32 %v3639, 16
        %v3820 = vrot.slane %v3818, 5
        %v3821 = vsel %vm1293, %v3816, %v3820
        %v3822 = vshrl.u32 %v3639, 16
        %v3824 = vrot.slane %v3822, 4
        %v3825 = vor.u32 %v3824, %v3820
        %v3826 = vrot.slane %v3825, 4
        %v3828 = vshll.u32 %v3676, 16
        %v3830 = vrot.slane %v3828, 5
        %v3831 = vsel %vm1293, %v3826, %v3830
        %v3832 = vshrl.u32 %v3676, 16
        %v3834 = vrot.slane %v3832, 4
        %v3835 = vor.u32 %v3834, %v3830
        %v3836 = vrot.slane %v3835, 4
        %v3838 = vshrl.u32 %v3641, 16
        %v3840 = vrot.slane %v3838, 4
        %v3841 = vrot.slane %v3840, 4
        %v3843 = vshll.u32 %v3642, 16
        %v3845 = vrot.slane %v3843, 5
        %v3846 = vsel %vm1293, %v3841, %v3845
        %v3847 = vshrl.u32 %v3642, 16
        %v3849 = vrot.slane %v3847, 4
        %v3850 = vor.u32 %v3849, %v3845
        %v3851 = vrot.slane %v3850, 4
        %v3853 = vshll.u32 %v3677, 16
        %v3855 = vrot.slane %v3853, 5
        %v3856 = vsel %vm1293, %v3851, %v3855
        %v3857 = vshrl.u32 %v3677, 16
        %v3859 = vrot.slane %v3857, 4
        %v3860 = vor.u32 %v3859, %v3855
        %v3861 = vrot.slane %v3860, 4
        %v3863 = vshrl.u32 %v3644, 16
        %v3865 = vrot.slane %v3863, 4
        %v3866 = vrot.slane %v3865, 4
        %v3868 = vshll.u32 %v3645, 16
        %v3870 = vrot.slane %v3868, 5
        %v3871 = vsel %vm1293, %v3866, %v3870
        %v3872 = vshrl.u32 %v3645, 16
        %v3874 = vrot.slane %v3872, 4
        %v3875 = vor.u32 %v3874, %v3870
        %v3876 = vrot.slane %v3875, 4
        %v3878 = vshll.u32 %v3678, 16
        %v3880 = vrot.slane %v3878, 5
        %v3881 = vsel %vm1293, %v3876, %v3880
        %v3882 = vshrl.u32 %v3678, 16
        %v3884 = vrot.slane %v3882, 4
        %v3885 = vor.u32 %v3884, %v3880
        %v3886 = vrot.slane %v3885, 4
        %v3888 = vshrl.u32 %v3647, 16
        %v3890 = vrot.slane %v3888, 4
        %v3891 = vrot.slane %v3890, 4
        %v3893 = vshll.u32 %v3648, 16
        %v3895 = vrot.slane %v3893, 5
        %v3896 = vsel %vm1293, %v3891, %v3895
        %v3897 = vshrl.u32 %v3648, 16
        %v3899 = vrot.slane %v3897, 4
        %v3900 = vor.u32 %v3899, %v3895
        %v3901 = vrot.slane %v3900, 4
        %v3903 = vshll.u32 %v3679, 16
        %v3905 = vrot.slane %v3903, 5
        %v3906 = vsel %vm1293, %v3901, %v3905
        %v3907 = vshrl.u32 %v3679, 16
        %v3909 = vrot.slane %v3907, 4
        %v3910 = vor.u32 %v3909, %v3905
        %v3911 = vrot.slane %v3910, 4
        %v3913 = vshrl.u32 %v3650, 16
        %v3915 = vrot.slane %v3913, 4
        %v3916 = vrot.slane %v3915, 4
        %v3918 = vshll.u32 %v3651, 16
        %v3920 = vrot.slane %v3918, 5
        %v3921 = vsel %vm1293, %v3916, %v3920
        %v3922 = vshrl.u32 %v3651, 16
        %v3924 = vrot.slane %v3922, 4
        %v3925 = vor.u32 %v3924, %v3920
        %v3926 = vrot.slane %v3925, 4
        %v3928 = vshll.u32 %v3680, 16
        %v3930 = vrot.slane %v3928, 5
        %v3931 = vsel %vm1293, %v3926, %v3930
        %v3932 = vshrl.u32 %v3680, 16
        %v3934 = vrot.slane %v3932, 4
        %v3935 = vor.u32 %v3934, %v3930
        %v3936 = vrot.slane %v3935, 4
        %v3938 = vshrl.u32 %v3653, 16
        %v3940 = vrot.slane %v3938, 4
        %v3941 = vrot.slane %v3940, 4
        %v3943 = vshll.u32 %v3654, 16
        %v3945 = vrot.slane %v3943, 5
        %v3946 = vsel %vm1293, %v3941, %v3945
        %v3947 = vshrl.u32 %v3654, 16
        %v3949 = vrot.slane %v3947, 4
        %v3950 = vor.u32 %v3949, %v3945
        %v3951 = vrot.slane %v3950, 4
        %v3953 = vshll.u32 %v3681, 16
        %v3955 = vrot.slane %v3953, 5
        %v3956 = vsel %vm1293, %v3951, %v3955
        %v3957 = vshrl.u32 %v3681, 16
        %v3959 = vrot.slane %v3957, 4
        %v3960 = vor.u32 %v3959, %v3955
        %v3961 = vrot.slane %v3960, 4
        %v3963 = vshrl.u32 %v3656, 16
        %v3965 = vrot.slane %v3963, 4
        %v3966 = vrot.slane %v3965, 4
        %v3968 = vshll.u32 %v3657, 16
        %v3970 = vrot.slane %v3968, 5
        %v3971 = vsel %vm1293, %v3966, %v3970
        %v3972 = vshrl.u32 %v3657, 16
        %v3974 = vrot.slane %v3972, 4
        %v3975 = vor.u32 %v3974, %v3970
        %v3976 = vrot.slane %v3975, 4
        %v3978 = vshll.u32 %v3682, 16
        %v3980 = vrot.slane %v3978, 5
        %v3981 = vsel %vm1293, %v3976, %v3980
        %v3982 = vshrl.u32 %v3682, 16
        %v3984 = vrot.slane %v3982, 4
        %v3985 = vor.u32 %v3984, %v3980
        %v3986 = vrot.slane %v3985, 4
        %v3988 = vshrl.u32 %v3659, 16
        %v3990 = vrot.slane %v3988, 4
        %v3991 = vrot.slane %v3990, 4
        %v3993 = vshll.u32 %v3660, 16
        %v3995 = vrot.slane %v3993, 5
        %v3996 = vsel %vm1293, %v3991, %v3995
        %v3997 = vshrl.u32 %v3660, 16
        %v3999 = vrot.slane %v3997, 4
        %v4000 = vor.u32 %v3999, %v3995
        %v4001 = vrot.slane %v4000, 4
        %v4003 = vshll.u32 %v3683, 16
        %v4005 = vrot.slane %v4003, 5
        %v4006 = vsel %vm1293, %v4001, %v4005
        %v4007 = vshrl.u32 %v3683, 16
        %v4009 = vrot.slane %v4007, 4
        %v4010 = vor.u32 %v4009, %v4005
        %v4011 = vrot.slane %v4010, 4
        %v4013 = vshrl.u32 %v3662, 16
        %v4015 = vrot.slane %v4013, 4
        %v4016 = vrot.slane %v4015, 4
        %v4018 = vshll.u32 %v3663, 16
        %v4020 = vrot.slane %v4018, 5
        %v4021 = vsel %vm1293, %v4016, %v4020
        %v4022 = vshrl.u32 %v3663, 16
        %v4024 = vrot.slane %v4022, 4
        %v4025 = vor.u32 %v4024, %v4020
        %v4026 = vrot.slane %v4025, 4
        %v4028 = vshll.u32 %v3684, 16
        %v4030 = vrot.slane %v4028, 5
        %v4031 = vsel %vm1293, %v4026, %v4030
        %v4032 = vshrl.u32 %v3684, 16
        %v4034 = vrot.slane %v4032, 4
        %v4035 = vor.u32 %v4034, %v4030
        %v4036 = vrot.slane %v4035, 4
        %v4038 = vshrl.u32 %v3665, 16
        %v4040 = vrot.slane %v4038, 4
        %v4041 = vrot.slane %v4040, 4
        %v4043 = vshll.u32 %v3666, 16
        %v4045 = vrot.slane %v4043, 5
        %v4046 = vsel %vm1293, %v4041, %v4045
        %v4047 = vshrl.u32 %v3666, 16
        %v4049 = vrot.slane %v4047, 4
        %v4050 = vor.u32 %v4049, %v4045
        %v4051 = vrot.slane %v4050, 4
        %v4053 = vshll.u32 %v3685, 16
        %v4055 = vrot.slane %v4053, 5
        %v4056 = vsel %vm1293, %v4051, %v4055
        %v4057 = vshrl.u32 %v3685, 16
        %v4059 = vrot.slane %v4057, 4
        %v4060 = vor.u32 %v4059, %v4055
        %v4061 = vrot.slane %v4060, 4
        %v4063 = vshrl.u32 %v3668, 16
        %v4065 = vrot.slane %v4063, 4
        %v4066 = vrot.slane %v4065, 4
        %v4068 = vshll.u32 %v3669, 16
        %v4070 = vrot.slane %v4068, 5
        %v4071 = vsel %vm1293, %v4066, %v4070
        %v4072 = vshrl.u32 %v3669, 16
        %v4074 = vrot.slane %v4072, 4
        %v4075 = vor.u32 %v4074, %v4070
        %v4076 = vrot.slane %v4075, 4
        %v4078 = vshll.u32 %v3686, 16
        %v4080 = vrot.slane %v4078, 5
        %v4081 = vsel %vm1293, %v4076, %v4080
        %v4082 = vshrl.u32 %v3686, 16
        %v4084 = vrot.slane %v4082, 4
        %v4085 = vor.u32 %v4084, %v4080
        %v4086 = vrot.slane %v4085, 4
        %v4135 = vmax.bf16 %v3623, %v3696
        %v4136 = vmax.bf16 %v3624, %v3706
        %v4137 = vmax.bf16 %v3625, %v3711
        %v4138 = vmax.bf16 %v3626, %v3721
        %v4139 = vmax.bf16 %v3627, %v3731
        %v4140 = vmax.bf16 %v3628, %v3736
        %v4141 = vmax.bf16 %v3629, %v3746
        %v4142 = vmax.bf16 %v3630, %v3756
        %v4143 = vmax.bf16 %v3631, %v3761
        %v4144 = vmax.bf16 %v3632, %v3771
        %v4145 = vmax.bf16 %v3633, %v3781
        %v4146 = vmax.bf16 %v3634, %v3786
        %v4147 = vmax.bf16 %v3635, %v3796
        %v4148 = vmax.bf16 %v3636, %v3806
        %v4149 = vmax.bf16 %v3637, %v3811
        %v4150 = vmax.bf16 %v3638, %v3821
        %v4151 = vmax.bf16 %v3639, %v3831
        %v4152 = vmax.bf16 %v3640, %v3836
        %v4153 = vmax.bf16 %v3641, %v3846
        %v4154 = vmax.bf16 %v3642, %v3856
        %v4155 = vmax.bf16 %v3643, %v3861
        %v4156 = vmax.bf16 %v3644, %v3871
        %v4157 = vmax.bf16 %v3645, %v3881
        %v4158 = vmax.bf16 %v3646, %v3886
        %v4159 = vmax.bf16 %v3647, %v3896
        %v4160 = vmax.bf16 %v3648, %v3906
        %v4161 = vmax.bf16 %v3649, %v3911
        %v4162 = vmax.bf16 %v3650, %v3921
        %v4163 = vmax.bf16 %v3651, %v3931
        %v4164 = vmax.bf16 %v3652, %v3936
        %v4165 = vmax.bf16 %v3653, %v3946
        %v4166 = vmax.bf16 %v3654, %v3956
        %v4167 = vmax.bf16 %v3655, %v3961
        %v4168 = vmax.bf16 %v3656, %v3971
        %v4169 = vmax.bf16 %v3657, %v3981
        %v4170 = vmax.bf16 %v3658, %v3986
        %v4171 = vmax.bf16 %v3659, %v3996
        %v4172 = vmax.bf16 %v3660, %v4006
        %v4173 = vmax.bf16 %v3661, %v4011
        %v4174 = vmax.bf16 %v3662, %v4021
        %v4175 = vmax.bf16 %v3663, %v4031
        %v4176 = vmax.bf16 %v3664, %v4036
        %v4177 = vmax.bf16 %v3665, %v4046
        %v4178 = vmax.bf16 %v3666, %v4056
        %v4179 = vmax.bf16 %v3667, %v4061
        %v4180 = vmax.bf16 %v3668, %v4071
        %v4181 = vmax.bf16 %v3669, %v4081
        %v4182 = vmax.bf16 %v3670, %v4086
        %v4215 = vrot.slane %v3624, 5
        %v4216 = vrot.slane %v4215, 4
        %v4217 = vrot.slane %v3671, 5
        %v4218 = vsel %vm1956, %v4216, %v4217
        %v4219 = vrot.slane %v4217, 4
        %v4220 = vrot.slane %v3627, 5
        %v4221 = vrot.slane %v4220, 4
        %v4222 = vrot.slane %v3672, 5
        %v4223 = vsel %vm1956, %v4221, %v4222
        %v4224 = vrot.slane %v4222, 4
        %v4225 = vrot.slane %v3630, 5
        %v4226 = vrot.slane %v4225, 4
        %v4227 = vrot.slane %v3673, 5
        %v4228 = vsel %vm1956, %v4226, %v4227
        %v4229 = vrot.slane %v4227, 4
        %v4230 = vrot.slane %v3633, 5
        %v4231 = vrot.slane %v4230, 4
        %v4232 = vrot.slane %v3674, 5
        %v4233 = vsel %vm1956, %v4231, %v4232
        %v4234 = vrot.slane %v4232, 4
        %v4235 = vrot.slane %v3636, 5
        %v4236 = vrot.slane %v4235, 4
        %v4237 = vrot.slane %v3675, 5
        %v4238 = vsel %vm1956, %v4236, %v4237
        %v4239 = vrot.slane %v4237, 4
        %v4240 = vrot.slane %v3639, 5
        %v4241 = vrot.slane %v4240, 4
        %v4242 = vrot.slane %v3676, 5
        %v4243 = vsel %vm1956, %v4241, %v4242
        %v4244 = vrot.slane %v4242, 4
        %v4245 = vrot.slane %v3642, 5
        %v4246 = vrot.slane %v4245, 4
        %v4247 = vrot.slane %v3677, 5
        %v4248 = vsel %vm1956, %v4246, %v4247
        %v4249 = vrot.slane %v4247, 4
        %v4250 = vrot.slane %v3645, 5
        %v4251 = vrot.slane %v4250, 4
        %v4252 = vrot.slane %v3678, 5
        %v4253 = vsel %vm1956, %v4251, %v4252
        %v4254 = vrot.slane %v4252, 4
        %v4255 = vrot.slane %v3648, 5
        %v4256 = vrot.slane %v4255, 4
        %v4257 = vrot.slane %v3679, 5
        %v4258 = vsel %vm1956, %v4256, %v4257
        %v4259 = vrot.slane %v4257, 4
        %v4260 = vrot.slane %v3651, 5
        %v4261 = vrot.slane %v4260, 4
        %v4262 = vrot.slane %v3680, 5
        %v4263 = vsel %vm1956, %v4261, %v4262
        %v4264 = vrot.slane %v4262, 4
        %v4265 = vrot.slane %v3654, 5
        %v4266 = vrot.slane %v4265, 4
        %v4267 = vrot.slane %v3681, 5
        %v4268 = vsel %vm1956, %v4266, %v4267
        %v4269 = vrot.slane %v4267, 4
        %v4270 = vrot.slane %v3657, 5
        %v4271 = vrot.slane %v4270, 4
        %v4272 = vrot.slane %v3682, 5
        %v4273 = vsel %vm1956, %v4271, %v4272
        %v4274 = vrot.slane %v4272, 4
        %v4275 = vrot.slane %v3660, 5
        %v4276 = vrot.slane %v4275, 4
        %v4277 = vrot.slane %v3683, 5
        %v4278 = vsel %vm1956, %v4276, %v4277
        %v4279 = vrot.slane %v4277, 4
        %v4280 = vrot.slane %v3663, 5
        %v4281 = vrot.slane %v4280, 4
        %v4282 = vrot.slane %v3684, 5
        %v4283 = vsel %vm1956, %v4281, %v4282
        %v4284 = vrot.slane %v4282, 4
        %v4285 = vrot.slane %v3666, 5
        %v4286 = vrot.slane %v4285, 4
        %v4287 = vrot.slane %v3685, 5
        %v4288 = vsel %vm1956, %v4286, %v4287
        %v4289 = vrot.slane %v4287, 4
        %v4290 = vrot.slane %v3669, 5
        %v4291 = vrot.slane %v4290, 4
        %v4292 = vrot.slane %v3686, 5
        %v4293 = vsel %vm1956, %v4291, %v4292
        %v4294 = vrot.slane %v4292, 4
        %v4343 = vmax.bf16 %v4135, %v4215
        %v4344 = vmax.bf16 %v4136, %v4218
        %v4345 = vmax.bf16 %v4137, %v4219
        %v4346 = vmax.bf16 %v4138, %v4220
        %v4347 = vmax.bf16 %v4139, %v4223
        %v4348 = vmax.bf16 %v4140, %v4224
        %v4349 = vmax.bf16 %v4141, %v4225
        %v4350 = vmax.bf16 %v4142, %v4228
        %v4351 = vmax.bf16 %v4143, %v4229
        %v4352 = vmax.bf16 %v4144, %v4230
        %v4353 = vmax.bf16 %v4145, %v4233
        %v4354 = vmax.bf16 %v4146, %v4234
        %v4355 = vmax.bf16 %v4147, %v4235
        %v4356 = vmax.bf16 %v4148, %v4238
        %v4357 = vmax.bf16 %v4149, %v4239
        %v4358 = vmax.bf16 %v4150, %v4240
        %v4359 = vmax.bf16 %v4151, %v4243
        %v4360 = vmax.bf16 %v4152, %v4244
        %v4361 = vmax.bf16 %v4153, %v4245
        %v4362 = vmax.bf16 %v4154, %v4248
        %v4363 = vmax.bf16 %v4155, %v4249
        %v4364 = vmax.bf16 %v4156, %v4250
        %v4365 = vmax.bf16 %v4157, %v4253
        %v4366 = vmax.bf16 %v4158, %v4254
        %v4367 = vmax.bf16 %v4159, %v4255
        %v4368 = vmax.bf16 %v4160, %v4258
        %v4369 = vmax.bf16 %v4161, %v4259
        %v4370 = vmax.bf16 %v4162, %v4260
        %v4371 = vmax.bf16 %v4163, %v4263
        %v4372 = vmax.bf16 %v4164, %v4264
        %v4373 = vmax.bf16 %v4165, %v4265
        %v4374 = vmax.bf16 %v4166, %v4268
        %v4375 = vmax.bf16 %v4167, %v4269
        %v4376 = vmax.bf16 %v4168, %v4270
        %v4377 = vmax.bf16 %v4169, %v4273
        %v4378 = vmax.bf16 %v4170, %v4274
        %v4379 = vmax.bf16 %v4171, %v4275
        %v4380 = vmax.bf16 %v4172, %v4278
        %v4381 = vmax.bf16 %v4173, %v4279
        %v4382 = vmax.bf16 %v4174, %v4280
        %v4383 = vmax.bf16 %v4175, %v4283
        %v4384 = vmax.bf16 %v4176, %v4284
        %v4385 = vmax.bf16 %v4177, %v4285
        %v4386 = vmax.bf16 %v4178, %v4288
        %v4387 = vmax.bf16 %v4179, %v4289
        %v4388 = vmax.bf16 %v4180, %v4290
        %v4389 = vmax.bf16 %v4181, %v4293
        %v4390 = vmax.bf16 %v4182, %v4294
        %v4391 = vld [vmem:[%s3622 + $0x10] sm:$0x1]
        %v4392 = vld [vmem:[%s3622 + $0x24] sm:$0x1]
        %v4393 = vld [vmem:[%s3622 + $0x38] sm:$0x1]
        %v4394 = vld [vmem:[%s3622 + $0x4c] sm:$0x1]
        %v4395 = vld [vmem:[%s3622 + $0x60] sm:$0x1]
        %v4396 = vld [vmem:[%s3622 + $0x74] sm:$0x1]
        %v4397 = vld [vmem:[%s3622 + $0x88] sm:$0x1]
        %v4398 = vld [vmem:[%s3622 + $0x9c] sm:$0x1]
        %v4399 = vld [vmem:[%s3622 + $0xb0] sm:$0x1]
        %v4400 = vld [vmem:[%s3622 + $0xc4] sm:$0x1]
        %v4401 = vld [vmem:[%s3622 + $0xd8] sm:$0x1]
        %v4402 = vld [vmem:[%s3622 + $0xec] sm:$0x1]
        %v4403 = vld [vmem:[%s3622 + $0x100] sm:$0x1]
        %v4404 = vld [vmem:[%s3622 + $0x114] sm:$0x1]
        %v4405 = vld [vmem:[%s3622 + $0x128] sm:$0x1]
        %v4406 = vld [vmem:[%s3622 + $0x13c] sm:$0x1]
        %v4407 = vrot.slane %v3697, 5
        %v4408 = vrot.slane %v3693, 6
        %v4409 = vor.u32 %v4407, %v4408
        %v4410 = vrot.slane %v4409, 4
        %v4411 = vrot.slane %v3707, 5
        %v4412 = vrot.slane %v3703, 6
        %v4413 = vor.u32 %v4411, %v4412
        %v4414 = vsel %vm2199, %v4410, %v4413
        %v4415 = vrot.slane %v4413, 4
        %v4417 = vshll.u32 %v4391, 16
        %v4419 = vrot.slane %v4417, 6
        %v4420 = vsel %vm2199, %v4415, %v4419
        %v4421 = vrot.slane %v3722, 5
        %v4422 = vrot.slane %v3718, 6
        %v4423 = vor.u32 %v4421, %v4422
        %v4424 = vrot.slane %v4423, 4
        %v4425 = vrot.slane %v3732, 5
        %v4426 = vrot.slane %v3728, 6
        %v4427 = vor.u32 %v4425, %v4426
        %v4428 = vsel %vm2199, %v4424, %v4427
        %v4429 = vrot.slane %v4427, 4
        %v4431 = vshll.u32 %v4392, 16
        %v4433 = vrot.slane %v4431, 6
        %v4434 = vsel %vm2199, %v4429, %v4433
        %v4435 = vrot.slane %v3747, 5
        %v4436 = vrot.slane %v3743, 6
        %v4437 = vor.u32 %v4435, %v4436
        %v4438 = vrot.slane %v4437, 4
        %v4439 = vrot.slane %v3757, 5
        %v4440 = vrot.slane %v3753, 6
        %v4441 = vor.u32 %v4439, %v4440
        %v4442 = vsel %vm2199, %v4438, %v4441
        %v4443 = vrot.slane %v4441, 4
        %v4445 = vshll.u32 %v4393, 16
        %v4447 = vrot.slane %v4445, 6
        %v4448 = vsel %vm2199, %v4443, %v4447
        %v4449 = vrot.slane %v3772, 5
        %v4450 = vrot.slane %v3768, 6
        %v4451 = vor.u32 %v4449, %v4450
        %v4452 = vrot.slane %v4451, 4
        %v4453 = vrot.slane %v3782, 5
        %v4454 = vrot.slane %v3778, 6
        %v4455 = vor.u32 %v4453, %v4454
        %v4456 = vsel %vm2199, %v4452, %v4455
        %v4457 = vrot.slane %v4455, 4
        %v4459 = vshll.u32 %v4394, 16
        %v4461 = vrot.slane %v4459, 6
        %v4462 = vsel %vm2199, %v4457, %v4461
        %v4463 = vrot.slane %v3797, 5
        %v4464 = vrot.slane %v3793, 6
        %v4465 = vor.u32 %v4463, %v4464
        %v4466 = vrot.slane %v4465, 4
        %v4467 = vrot.slane %v3807, 5
        %v4468 = vrot.slane %v3803, 6
        %v4469 = vor.u32 %v4467, %v4468
        %v4470 = vsel %vm2199, %v4466, %v4469
        %v4471 = vrot.slane %v4469, 4
        %v4473 = vshll.u32 %v4395, 16
        %v4475 = vrot.slane %v4473, 6
        %v4476 = vsel %vm2199, %v4471, %v4475
        %v4477 = vrot.slane %v3822, 5
        %v4478 = vrot.slane %v3818, 6
        %v4479 = vor.u32 %v4477, %v4478
        %v4480 = vrot.slane %v4479, 4
        %v4481 = vrot.slane %v3832, 5
        %v4482 = vrot.slane %v3828, 6
        %v4483 = vor.u32 %v4481, %v4482
        %v4484 = vsel %vm2199, %v4480, %v4483
        %v4485 = vrot.slane %v4483, 4
        %v4487 = vshll.u32 %v4396, 16
        %v4489 = vrot.slane %v4487, 6
        %v4490 = vsel %vm2199, %v4485, %v4489
        %v4491 = vrot.slane %v3847, 5
        %v4492 = vrot.slane %v3843, 6
        %v4493 = vor.u32 %v4491, %v4492
        %v4494 = vrot.slane %v4493, 4
        %v4495 = vrot.slane %v3857, 5
        %v4496 = vrot.slane %v3853, 6
        %v4497 = vor.u32 %v4495, %v4496
        %v4498 = vsel %vm2199, %v4494, %v4497
        %v4499 = vrot.slane %v4497, 4
        %v4501 = vshll.u32 %v4397, 16
        %v4503 = vrot.slane %v4501, 6
        %v4504 = vsel %vm2199, %v4499, %v4503
        %v4505 = vrot.slane %v3872, 5
        %v4506 = vrot.slane %v3868, 6
        %v4507 = vor.u32 %v4505, %v4506
        %v4508 = vrot.slane %v4507, 4
        %v4509 = vrot.slane %v3882, 5
        %v4510 = vrot.slane %v3878, 6
        %v4511 = vor.u32 %v4509, %v4510
        %v4512 = vsel %vm2199, %v4508, %v4511
        %v4513 = vrot.slane %v4511, 4
        %v4515 = vshll.u32 %v4398, 16
        %v4517 = vrot.slane %v4515, 6
        %v4518 = vsel %vm2199, %v4513, %v4517
        %v4519 = vrot.slane %v3897, 5
        %v4520 = vrot.slane %v3893, 6
        %v4521 = vor.u32 %v4519, %v4520
        %v4522 = vrot.slane %v4521, 4
        %v4523 = vrot.slane %v3907, 5
        %v4524 = vrot.slane %v3903, 6
        %v4525 = vor.u32 %v4523, %v4524
        %v4526 = vsel %vm2199, %v4522, %v4525
        %v4527 = vrot.slane %v4525, 4
        %v4529 = vshll.u32 %v4399, 16
        %v4531 = vrot.slane %v4529, 6
        %v4532 = vsel %vm2199, %v4527, %v4531
        %v4533 = vrot.slane %v3922, 5
        %v4534 = vrot.slane %v3918, 6
        %v4535 = vor.u32 %v4533, %v4534
        %v4536 = vrot.slane %v4535, 4
        %v4537 = vrot.slane %v3932, 5
        %v4538 = vrot.slane %v3928, 6
        %v4539 = vor.u32 %v4537, %v4538
        %v4540 = vsel %vm2199, %v4536, %v4539
        %v4541 = vrot.slane %v4539, 4
        %v4543 = vshll.u32 %v4400, 16
        %v4545 = vrot.slane %v4543, 6
        %v4546 = vsel %vm2199, %v4541, %v4545
        %v4547 = vrot.slane %v3947, 5
        %v4548 = vrot.slane %v3943, 6
        %v4549 = vor.u32 %v4547, %v4548
        %v4550 = vrot.slane %v4549, 4
        %v4551 = vrot.slane %v3957, 5
        %v4552 = vrot.slane %v3953, 6
        %v4553 = vor.u32 %v4551, %v4552
        %v4554 = vsel %vm2199, %v4550, %v4553
        %v4555 = vrot.slane %v4553, 4
        %v4557 = vshll.u32 %v4401, 16
        %v4559 = vrot.slane %v4557, 6
        %v4560 = vsel %vm2199, %v4555, %v4559
        %v4561 = vrot.slane %v3972, 5
        %v4562 = vrot.slane %v3968, 6
        %v4563 = vor.u32 %v4561, %v4562
        %v4564 = vrot.slane %v4563, 4
        %v4565 = vrot.slane %v3982, 5
        %v4566 = vrot.slane %v3978, 6
        %v4567 = vor.u32 %v4565, %v4566
        %v4568 = vsel %vm2199, %v4564, %v4567
        %v4569 = vrot.slane %v4567, 4
        %v4571 = vshll.u32 %v4402, 16
        %v4573 = vrot.slane %v4571, 6
        %v4574 = vsel %vm2199, %v4569, %v4573
        %v4575 = vrot.slane %v3997, 5
        %v4576 = vrot.slane %v3993, 6
        %v4577 = vor.u32 %v4575, %v4576
        %v4578 = vrot.slane %v4577, 4
        %v4579 = vrot.slane %v4007, 5
        %v4580 = vrot.slane %v4003, 6
        %v4581 = vor.u32 %v4579, %v4580
        %v4582 = vsel %vm2199, %v4578, %v4581
        %v4583 = vrot.slane %v4581, 4
        %v4585 = vshll.u32 %v4403, 16
        %v4587 = vrot.slane %v4585, 6
        %v4588 = vsel %vm2199, %v4583, %v4587
        %v4589 = vrot.slane %v4022, 5
        %v4590 = vrot.slane %v4018, 6
        %v4591 = vor.u32 %v4589, %v4590
        %v4592 = vrot.slane %v4591, 4
        %v4593 = vrot.slane %v4032, 5
        %v4594 = vrot.slane %v4028, 6
        %v4595 = vor.u32 %v4593, %v4594
        %v4596 = vsel %vm2199, %v4592, %v4595
        %v4597 = vrot.slane %v4595, 4
        %v4599 = vshll.u32 %v4404, 16
        %v4601 = vrot.slane %v4599, 6
        %v4602 = vsel %vm2199, %v4597, %v4601
        %v4603 = vrot.slane %v4047, 5
        %v4604 = vrot.slane %v4043, 6
        %v4605 = vor.u32 %v4603, %v4604
        %v4606 = vrot.slane %v4605, 4
        %v4607 = vrot.slane %v4057, 5
        %v4608 = vrot.slane %v4053, 6
        %v4609 = vor.u32 %v4607, %v4608
        %v4610 = vsel %vm2199, %v4606, %v4609
        %v4611 = vrot.slane %v4609, 4
        %v4613 = vshll.u32 %v4405, 16
        %v4615 = vrot.slane %v4613, 6
        %v4616 = vsel %vm2199, %v4611, %v4615
        %v4617 = vrot.slane %v4072, 5
        %v4618 = vrot.slane %v4068, 6
        %v4619 = vor.u32 %v4617, %v4618
        %v4620 = vrot.slane %v4619, 4
        %v4621 = vrot.slane %v4082, 5
        %v4622 = vrot.slane %v4078, 6
        %v4623 = vor.u32 %v4621, %v4622
        %v4624 = vsel %vm2199, %v4620, %v4623
        %v4625 = vrot.slane %v4623, 4
        %v4627 = vshll.u32 %v4406, 16
        %v4629 = vrot.slane %v4627, 6
        %v4630 = vsel %vm2199, %v4625, %v4629
        %v4679 = vmax.bf16 %v4343, %v4409
        %v4680 = vmax.bf16 %v4344, %v4414
        %v4681 = vmax.bf16 %v4345, %v4420
        %v4682 = vmax.bf16 %v4346, %v4423
        %v4683 = vmax.bf16 %v4347, %v4428
        %v4684 = vmax.bf16 %v4348, %v4434
        %v4685 = vmax.bf16 %v4349, %v4437
        %v4686 = vmax.bf16 %v4350, %v4442
        %v4687 = vmax.bf16 %v4351, %v4448
        %v4688 = vmax.bf16 %v4352, %v4451
        %v4689 = vmax.bf16 %v4353, %v4456
        %v4690 = vmax.bf16 %v4354, %v4462
        %v4691 = vmax.bf16 %v4355, %v4465
        %v4692 = vmax.bf16 %v4356, %v4470
        %v4693 = vmax.bf16 %v4357, %v4476
        %v4694 = vmax.bf16 %v4358, %v4479
        %v4695 = vmax.bf16 %v4359, %v4484
        %v4696 = vmax.bf16 %v4360, %v4490
        %v4697 = vmax.bf16 %v4361, %v4493
        %v4698 = vmax.bf16 %v4362, %v4498
        %v4699 = vmax.bf16 %v4363, %v4504
        %v4700 = vmax.bf16 %v4364, %v4507
        %v4701 = vmax.bf16 %v4365, %v4512
        %v4702 = vmax.bf16 %v4366, %v4518
        %v4703 = vmax.bf16 %v4367, %v4521
        %v4704 = vmax.bf16 %v4368, %v4526
        %v4705 = vmax.bf16 %v4369, %v4532
        %v4706 = vmax.bf16 %v4370, %v4535
        %v4707 = vmax.bf16 %v4371, %v4540
        %v4708 = vmax.bf16 %v4372, %v4546
        %v4709 = vmax.bf16 %v4373, %v4549
        %v4710 = vmax.bf16 %v4374, %v4554
        %v4711 = vmax.bf16 %v4375, %v4560
        %v4712 = vmax.bf16 %v4376, %v4563
        %v4713 = vmax.bf16 %v4377, %v4568
        %v4714 = vmax.bf16 %v4378, %v4574
        %v4715 = vmax.bf16 %v4379, %v4577
        %v4716 = vmax.bf16 %v4380, %v4582
        %v4717 = vmax.bf16 %v4381, %v4588
        %v4718 = vmax.bf16 %v4382, %v4591
        %v4719 = vmax.bf16 %v4383, %v4596
        %v4720 = vmax.bf16 %v4384, %v4602
        %v4721 = vmax.bf16 %v4385, %v4605
        %v4722 = vmax.bf16 %v4386, %v4610
        %v4723 = vmax.bf16 %v4387, %v4616
        %v4724 = vmax.bf16 %v4388, %v4619
        %v4725 = vmax.bf16 %v4389, %v4624
        %v4726 = vmax.bf16 %v4390, %v4630
        %v4727 = vld [vmem:[%s3622 + $0x8] sm:$0xe]
        %v4728 = vld [vmem:[%s3622 + $0x1c] sm:$0xe]
        %v4729 = vld [vmem:[%s3622 + $0x30] sm:$0xe]
        %v4730 = vld [vmem:[%s3622 + $0x44] sm:$0xe]
        %v4731 = vld [vmem:[%s3622 + $0x58] sm:$0xe]
        %v4732 = vld [vmem:[%s3622 + $0x6c] sm:$0xe]
        %v4733 = vld [vmem:[%s3622 + $0x80] sm:$0xe]
        %v4734 = vld [vmem:[%s3622 + $0x94] sm:$0xe]
        %v4735 = vld [vmem:[%s3622 + $0xa8] sm:$0xe]
        %v4736 = vld [vmem:[%s3622 + $0xbc] sm:$0xe]
        %v4737 = vld [vmem:[%s3622 + $0xd0] sm:$0xe]
        %v4738 = vld [vmem:[%s3622 + $0xe4] sm:$0xe]
        %v4739 = vld [vmem:[%s3622 + $0xf8] sm:$0xe]
        %v4740 = vld [vmem:[%s3622 + $0x10c] sm:$0xe]
        %v4741 = vld [vmem:[%s3622 + $0x120] sm:$0xe]
        %v4742 = vld [vmem:[%s3622 + $0x134] sm:$0xe]
        %v4775 = vrot.slane %v4727, 6
        %v4776 = vrot.slane %v4775, 4
        %v4777 = vrot.slane %v3671, 6
        %v4778 = vsel %vm2662, %v4776, %v4777
        %v4779 = vrot.slane %v4777, 4
        %v4780 = vrot.slane %v4391, 6
        %v4781 = vsel %vm2662, %v4779, %v4780
        %v4782 = vrot.slane %v4728, 6
        %v4783 = vrot.slane %v4782, 4
        %v4784 = vrot.slane %v3672, 6
        %v4785 = vsel %vm2662, %v4783, %v4784
        %v4786 = vrot.slane %v4784, 4
        %v4787 = vrot.slane %v4392, 6
        %v4788 = vsel %vm2662, %v4786, %v4787
        %v4789 = vrot.slane %v4729, 6
        %v4790 = vrot.slane %v4789, 4
        %v4791 = vrot.slane %v3673, 6
        %v4792 = vsel %vm2662, %v4790, %v4791
        %v4793 = vrot.slane %v4791, 4
        %v4794 = vrot.slane %v4393, 6
        %v4795 = vsel %vm2662, %v4793, %v4794
        %v4796 = vrot.slane %v4730, 6
        %v4797 = vrot.slane %v4796, 4
        %v4798 = vrot.slane %v3674, 6
        %v4799 = vsel %vm2662, %v4797, %v4798
        %v4800 = vrot.slane %v4798, 4
        %v4801 = vrot.slane %v4394, 6
        %v4802 = vsel %vm2662, %v4800, %v4801
        %v4803 = vrot.slane %v4731, 6
        %v4804 = vrot.slane %v4803, 4
        %v4805 = vrot.slane %v3675, 6
        %v4806 = vsel %vm2662, %v4804, %v4805
        %v4807 = vrot.slane %v4805, 4
        %v4808 = vrot.slane %v4395, 6
        %v4809 = vsel %vm2662, %v4807, %v4808
        %v4810 = vrot.slane %v4732, 6
        %v4811 = vrot.slane %v4810, 4
        %v4812 = vrot.slane %v3676, 6
        %v4813 = vsel %vm2662, %v4811, %v4812
        %v4814 = vrot.slane %v4812, 4
        %v4815 = vrot.slane %v4396, 6
        %v4816 = vsel %vm2662, %v4814, %v4815
        %v4817 = vrot.slane %v4733, 6
        %v4818 = vrot.slane %v4817, 4
        %v4819 = vrot.slane %v3677, 6
        %v4820 = vsel %vm2662, %v4818, %v4819
        %v4821 = vrot.slane %v4819, 4
        %v4822 = vrot.slane %v4397, 6
        %v4823 = vsel %vm2662, %v4821, %v4822
        %v4824 = vrot.slane %v4734, 6
        %v4825 = vrot.slane %v4824, 4
        %v4826 = vrot.slane %v3678, 6
        %v4827 = vsel %vm2662, %v4825, %v4826
        %v4828 = vrot.slane %v4826, 4
        %v4829 = vrot.slane %v4398, 6
        %v4830 = vsel %vm2662, %v4828, %v4829
        %v4831 = vrot.slane %v4735, 6
        %v4832 = vrot.slane %v4831, 4
        %v4833 = vrot.slane %v3679, 6
        %v4834 = vsel %vm2662, %v4832, %v4833
        %v4835 = vrot.slane %v4833, 4
        %v4836 = vrot.slane %v4399, 6
        %v4837 = vsel %vm2662, %v4835, %v4836
        %v4838 = vrot.slane %v4736, 6
        %v4839 = vrot.slane %v4838, 4
        %v4840 = vrot.slane %v3680, 6
        %v4841 = vsel %vm2662, %v4839, %v4840
        %v4842 = vrot.slane %v4840, 4
        %v4843 = vrot.slane %v4400, 6
        %v4844 = vsel %vm2662, %v4842, %v4843
        %v4845 = vrot.slane %v4737, 6
        %v4846 = vrot.slane %v4845, 4
        %v4847 = vrot.slane %v3681, 6
        %v4848 = vsel %vm2662, %v4846, %v4847
        %v4849 = vrot.slane %v4847, 4
        %v4850 = vrot.slane %v4401, 6
        %v4851 = vsel %vm2662, %v4849, %v4850
        %v4852 = vrot.slane %v4738, 6
        %v4853 = vrot.slane %v4852, 4
        %v4854 = vrot.slane %v3682, 6
        %v4855 = vsel %vm2662, %v4853, %v4854
        %v4856 = vrot.slane %v4854, 4
        %v4857 = vrot.slane %v4402, 6
        %v4858 = vsel %vm2662, %v4856, %v4857
        %v4859 = vrot.slane %v4739, 6
        %v4860 = vrot.slane %v4859, 4
        %v4861 = vrot.slane %v3683, 6
        %v4862 = vsel %vm2662, %v4860, %v4861
        %v4863 = vrot.slane %v4861, 4
        %v4864 = vrot.slane %v4403, 6
        %v4865 = vsel %vm2662, %v4863, %v4864
        %v4866 = vrot.slane %v4740, 6
        %v4867 = vrot.slane %v4866, 4
        %v4868 = vrot.slane %v3684, 6
        %v4869 = vsel %vm2662, %v4867, %v4868
        %v4870 = vrot.slane %v4868, 4
        %v4871 = vrot.slane %v4404, 6
        %v4872 = vsel %vm2662, %v4870, %v4871
        %v4873 = vrot.slane %v4741, 6
        %v4874 = vrot.slane %v4873, 4
        %v4875 = vrot.slane %v3685, 6
        %v4876 = vsel %vm2662, %v4874, %v4875
        %v4877 = vrot.slane %v4875, 4
        %v4878 = vrot.slane %v4405, 6
        %v4879 = vsel %vm2662, %v4877, %v4878
        %v4880 = vrot.slane %v4742, 6
        %v4881 = vrot.slane %v4880, 4
        %v4882 = vrot.slane %v3686, 6
        %v4883 = vsel %vm2662, %v4881, %v4882
        %v4884 = vrot.slane %v4882, 4
        %v4885 = vrot.slane %v4406, 6
        %v4886 = vsel %vm2662, %v4884, %v4885
        %v4935 = vmax.bf16 %v4679, %v4775
        %v4936 = vmax.bf16 %v4680, %v4778
        %v4937 = vmax.bf16 %v4681, %v4781
        %v4938 = vmax.bf16 %v4682, %v4782
        %v4939 = vmax.bf16 %v4683, %v4785
        %v4940 = vmax.bf16 %v4684, %v4788
        %v4941 = vmax.bf16 %v4685, %v4789
        %v4942 = vmax.bf16 %v4686, %v4792
        %v4943 = vmax.bf16 %v4687, %v4795
        %v4944 = vmax.bf16 %v4688, %v4796
        %v4945 = vmax.bf16 %v4689, %v4799
        %v4946 = vmax.bf16 %v4690, %v4802
        %v4947 = vmax.bf16 %v4691, %v4803
        %v4948 = vmax.bf16 %v4692, %v4806
        %v4949 = vmax.bf16 %v4693, %v4809
        %v4950 = vmax.bf16 %v4694, %v4810
        %v4951 = vmax.bf16 %v4695, %v4813
        %v4952 = vmax.bf16 %v4696, %v4816
        %v4953 = vmax.bf16 %v4697, %v4817
        %v4954 = vmax.bf16 %v4698, %v4820
        %v4955 = vmax.bf16 %v4699, %v4823
        %v4956 = vmax.bf16 %v4700, %v4824
        %v4957 = vmax.bf16 %v4701, %v4827
        %v4958 = vmax.bf16 %v4702, %v4830
        %v4959 = vmax.bf16 %v4703, %v4831
        %v4960 = vmax.bf16 %v4704, %v4834
        %v4961 = vmax.bf16 %v4705, %v4837
        %v4962 = vmax.bf16 %v4706, %v4838
        %v4963 = vmax.bf16 %v4707, %v4841
        %v4964 = vmax.bf16 %v4708, %v4844
        %v4965 = vmax.bf16 %v4709, %v4845
        %v4966 = vmax.bf16 %v4710, %v4848
        %v4967 = vmax.bf16 %v4711, %v4851
        %v4968 = vmax.bf16 %v4712, %v4852
        %v4969 = vmax.bf16 %v4713, %v4855
        %v4970 = vmax.bf16 %v4714, %v4858
        %v4971 = vmax.bf16 %v4715, %v4859
        %v4972 = vmax.bf16 %v4716, %v4862
        %v4973 = vmax.bf16 %v4717, %v4865
        %v4974 = vmax.bf16 %v4718, %v4866
        %v4975 = vmax.bf16 %v4719, %v4869
        %v4976 = vmax.bf16 %v4720, %v4872
        %v4977 = vmax.bf16 %v4721, %v4873
        %v4978 = vmax.bf16 %v4722, %v4876
        %v4979 = vmax.bf16 %v4723, %v4879
        %v4980 = vmax.bf16 %v4724, %v4880
        %v4981 = vmax.bf16 %v4725, %v4883
        %v4982 = vmax.bf16 %v4726, %v4886
        %v4983 = vmax.bf16 %v4935, %v4938
        %v4984 = vmax.bf16 %v4936, %v4939
        %v4985 = vmax.bf16 %v4937, %v4940
        %v4986 = vmax.bf16 %v4938, %v4941
        %v4987 = vmax.bf16 %v4939, %v4942
        %v4988 = vmax.bf16 %v4940, %v4943
        %v4989 = vmax.bf16 %v4941, %v4944
        %v4990 = vmax.bf16 %v4942, %v4945
        %v4991 = vmax.bf16 %v4943, %v4946
        %v4992 = vmax.bf16 %v4944, %v4947
        %v4993 = vmax.bf16 %v4945, %v4948
        %v4994 = vmax.bf16 %v4946, %v4949
        %v4995 = vmax.bf16 %v4947, %v4950
        %v4996 = vmax.bf16 %v4948, %v4951
        %v4997 = vmax.bf16 %v4949, %v4952
        %v4998 = vmax.bf16 %v4950, %v4953
        %v4999 = vmax.bf16 %v4951, %v4954
        %v5000 = vmax.bf16 %v4952, %v4955
        %v5001 = vmax.bf16 %v4953, %v4956
        %v5002 = vmax.bf16 %v4954, %v4957
        %v5003 = vmax.bf16 %v4955, %v4958
        %v5004 = vmax.bf16 %v4956, %v4959
        %v5005 = vmax.bf16 %v4957, %v4960
        %v5006 = vmax.bf16 %v4958, %v4961
        %v5007 = vmax.bf16 %v4959, %v4962
        %v5008 = vmax.bf16 %v4960, %v4963
        %v5009 = vmax.bf16 %v4961, %v4964
        %v5010 = vmax.bf16 %v4962, %v4965
        %v5011 = vmax.bf16 %v4963, %v4966
        %v5012 = vmax.bf16 %v4964, %v4967
        %v5013 = vmax.bf16 %v4965, %v4968
        %v5014 = vmax.bf16 %v4966, %v4969
        %v5015 = vmax.bf16 %v4967, %v4970
        %v5016 = vmax.bf16 %v4968, %v4971
        %v5017 = vmax.bf16 %v4969, %v4972
        %v5018 = vmax.bf16 %v4970, %v4973
        %v5019 = vmax.bf16 %v4983, %v4941
        %v5020 = vmax.bf16 %v4984, %v4942
        %v5021 = vmax.bf16 %v4985, %v4943
        %v5022 = vmax.bf16 %v4986, %v4944
        %v5023 = vmax.bf16 %v4987, %v4945
        %v5024 = vmax.bf16 %v4988, %v4946
        %v5025 = vmax.bf16 %v4989, %v4947
        %v5026 = vmax.bf16 %v4990, %v4948
        %v5027 = vmax.bf16 %v4991, %v4949
        %v5028 = vmax.bf16 %v4992, %v4950
        %v5029 = vmax.bf16 %v4993, %v4951
        %v5030 = vmax.bf16 %v4994, %v4952
        %v5031 = vmax.bf16 %v4995, %v4953
        %v5032 = vmax.bf16 %v4996, %v4954
        %v5033 = vmax.bf16 %v4997, %v4955
        %v5034 = vmax.bf16 %v4998, %v4956
        %v5035 = vmax.bf16 %v4999, %v4957
        %v5036 = vmax.bf16 %v5000, %v4958
        %v5037 = vmax.bf16 %v5001, %v4959
        %v5038 = vmax.bf16 %v5002, %v4960
        %v5039 = vmax.bf16 %v5003, %v4961
        %v5040 = vmax.bf16 %v5004, %v4962
        %v5041 = vmax.bf16 %v5005, %v4963
        %v5042 = vmax.bf16 %v5006, %v4964
        %v5043 = vmax.bf16 %v5007, %v4965
        %v5044 = vmax.bf16 %v5008, %v4966
        %v5045 = vmax.bf16 %v5009, %v4967
        %v5046 = vmax.bf16 %v5010, %v4968
        %v5047 = vmax.bf16 %v5011, %v4969
        %v5048 = vmax.bf16 %v5012, %v4970
        %v5049 = vmax.bf16 %v5013, %v4971
        %v5050 = vmax.bf16 %v5014, %v4972
        %v5051 = vmax.bf16 %v5015, %v4973
        %v5052 = vmax.bf16 %v5016, %v4974
        %v5053 = vmax.bf16 %v5017, %v4975
        %v5054 = vmax.bf16 %v5018, %v4976
        %v5055 = vmax.bf16 %v5019, %v4944
        %v5056 = vmax.bf16 %v5020, %v4945
        %v5057 = vmax.bf16 %v5021, %v4946
        %v5058 = vmax.bf16 %v5022, %v4947
        %v5059 = vmax.bf16 %v5023, %v4948
        %v5060 = vmax.bf16 %v5024, %v4949
        %v5061 = vmax.bf16 %v5025, %v4950
        %v5062 = vmax.bf16 %v5026, %v4951
        %v5063 = vmax.bf16 %v5027, %v4952
        %v5064 = vmax.bf16 %v5028, %v4953
        %v5065 = vmax.bf16 %v5029, %v4954
        %v5066 = vmax.bf16 %v5030, %v4955
        %v5067 = vmax.bf16 %v5031, %v4956
        %v5068 = vmax.bf16 %v5032, %v4957
        %v5069 = vmax.bf16 %v5033, %v4958
        %v5070 = vmax.bf16 %v5034, %v4959
        %v5071 = vmax.bf16 %v5035, %v4960
        %v5072 = vmax.bf16 %v5036, %v4961
        %v5073 = vmax.bf16 %v5037, %v4962
        %v5074 = vmax.bf16 %v5038, %v4963
        %v5075 = vmax.bf16 %v5039, %v4964
        %v5076 = vmax.bf16 %v5040, %v4965
        %v5077 = vmax.bf16 %v5041, %v4966
        %v5078 = vmax.bf16 %v5042, %v4967
        %v5079 = vmax.bf16 %v5043, %v4968
        %v5080 = vmax.bf16 %v5044, %v4969
        %v5081 = vmax.bf16 %v5045, %v4970
        %v5082 = vmax.bf16 %v5046, %v4971
        %v5083 = vmax.bf16 %v5047, %v4972
        %v5084 = vmax.bf16 %v5048, %v4973
        %v5085 = vmax.bf16 %v5049, %v4974
        %v5086 = vmax.bf16 %v5050, %v4975
        %v5087 = vmax.bf16 %v5051, %v4976
        %v5088 = vmax.bf16 %v5052, %v4977
        %v5089 = vmax.bf16 %v5053, %v4978
        %v5090 = vmax.bf16 %v5054, %v4979
        %v5091 = vmax.bf16 %v5055, %v4947
        %v5092 = vmax.bf16 %v5056, %v4948
        %v5093 = vmax.bf16 %v5057, %v4949
        %v5094 = vmax.bf16 %v5058, %v4950
        %v5095 = vmax.bf16 %v5059, %v4951
        %v5096 = vmax.bf16 %v5060, %v4952
        %v5097 = vmax.bf16 %v5061, %v4953
        %v5098 = vmax.bf16 %v5062, %v4954
        %v5099 = vmax.bf16 %v5063, %v4955
        %v5100 = vmax.bf16 %v5064, %v4956
        %v5101 = vmax.bf16 %v5065, %v4957
        %v5102 = vmax.bf16 %v5066, %v4958
        %v5103 = vmax.bf16 %v5067, %v4959
        %v5104 = vmax.bf16 %v5068, %v4960
        %v5105 = vmax.bf16 %v5069, %v4961
        %v5106 = vmax.bf16 %v5070, %v4962
        %v5107 = vmax.bf16 %v5071, %v4963
        %v5108 = vmax.bf16 %v5072, %v4964
        %v5109 = vmax.bf16 %v5073, %v4965
        %v5110 = vmax.bf16 %v5074, %v4966
        %v5111 = vmax.bf16 %v5075, %v4967
        %v5112 = vmax.bf16 %v5076, %v4968
        %v5113 = vmax.bf16 %v5077, %v4969
        %v5114 = vmax.bf16 %v5078, %v4970
        %v5115 = vmax.bf16 %v5079, %v4971
        %v5116 = vmax.bf16 %v5080, %v4972
        %v5117 = vmax.bf16 %v5081, %v4973
        %v5118 = vmax.bf16 %v5082, %v4974
        %v5119 = vmax.bf16 %v5083, %v4975
        %v5120 = vmax.bf16 %v5084, %v4976
        %v5121 = vmax.bf16 %v5085, %v4977
        %v5122 = vmax.bf16 %v5086, %v4978
        %v5123 = vmax.bf16 %v5087, %v4979
        %v5124 = vmax.bf16 %v5088, %v4980
        %v5125 = vmax.bf16 %v5089, %v4981
        %v5126 = vmax.bf16 %v5090, %v4982
        %s5127 = sadd.s32 %s962, 2
        %v5164 = vrot.slane %v5091, 7
        %v5165 = vrot.slane %v5164, 4
        %v5166 = vrot.slane %v5092, 7
        %v5167 = vsel %vm3166, %v5165, %v5166
        %v5168 = vrot.slane %v5166, 4
        %v5169 = vrot.slane %v5093, 7
        %v5170 = vsel %vm3166, %v5168, %v5169
        %v5171 = vrot.slane %v5094, 7
        %v5172 = vrot.slane %v5171, 4
        %v5173 = vrot.slane %v5095, 7
        %v5174 = vsel %vm3166, %v5172, %v5173
        %v5175 = vrot.slane %v5173, 4
        %v5176 = vrot.slane %v5096, 7
        %v5177 = vsel %vm3166, %v5175, %v5176
        %v5178 = vrot.slane %v5097, 7
        %v5179 = vrot.slane %v5178, 4
        %v5180 = vrot.slane %v5098, 7
        %v5181 = vsel %vm3166, %v5179, %v5180
        %v5182 = vrot.slane %v5180, 4
        %v5183 = vrot.slane %v5099, 7
        %v5184 = vsel %vm3166, %v5182, %v5183
        %v5185 = vrot.slane %v5100, 7
        %v5186 = vrot.slane %v5185, 4
        %v5187 = vrot.slane %v5101, 7
        %v5188 = vsel %vm3166, %v5186, %v5187
        %v5189 = vrot.slane %v5187, 4
        %v5190 = vrot.slane %v5102, 7
        %v5191 = vsel %vm3166, %v5189, %v5190
        %v5192 = vrot.slane %v5103, 7
        %v5193 = vrot.slane %v5192, 4
        %v5194 = vrot.slane %v5104, 7
        %v5195 = vsel %vm3166, %v5193, %v5194
        %v5196 = vrot.slane %v5194, 4
        %v5197 = vrot.slane %v5105, 7
        %v5198 = vsel %vm3166, %v5196, %v5197
        %v5199 = vrot.slane %v5106, 7
        %v5200 = vrot.slane %v5199, 4
        %v5201 = vrot.slane %v5107, 7
        %v5202 = vsel %vm3166, %v5200, %v5201
        %v5203 = vrot.slane %v5201, 4
        %v5204 = vrot.slane %v5108, 7
        %v5205 = vsel %vm3166, %v5203, %v5204
        %v5206 = vrot.slane %v5109, 7
        %v5207 = vrot.slane %v5206, 4
        %v5208 = vrot.slane %v5110, 7
        %v5209 = vsel %vm3166, %v5207, %v5208
        %v5210 = vrot.slane %v5208, 4
        %v5211 = vrot.slane %v5111, 7
        %v5212 = vsel %vm3166, %v5210, %v5211
        %v5213 = vrot.slane %v5112, 7
        %v5214 = vrot.slane %v5213, 4
        %v5215 = vrot.slane %v5113, 7
        %v5216 = vsel %vm3166, %v5214, %v5215
        %v5217 = vrot.slane %v5215, 4
        %v5218 = vrot.slane %v5114, 7
        %v5219 = vsel %vm3166, %v5217, %v5218
        %v5220 = vrot.slane %v5115, 7
        %v5221 = vrot.slane %v5220, 4
        %v5222 = vrot.slane %v5116, 7
        %v5223 = vsel %vm3166, %v5221, %v5222
        %v5224 = vrot.slane %v5222, 4
        %v5225 = vrot.slane %v5117, 7
        %v5226 = vsel %vm3166, %v5224, %v5225
        %v5227 = vrot.slane %v5118, 7
        %v5228 = vrot.slane %v5227, 4
        %v5229 = vrot.slane %v5119, 7
        %v5230 = vsel %vm3166, %v5228, %v5229
        %v5231 = vrot.slane %v5229, 4
        %v5232 = vrot.slane %v5120, 7
        %v5233 = vsel %vm3166, %v5231, %v5232
        %v5234 = vrot.slane %v5121, 7
        %v5235 = vrot.slane %v5234, 4
        %v5236 = vrot.slane %v5122, 7
        %v5237 = vsel %vm3166, %v5235, %v5236
        %v5238 = vrot.slane %v5236, 4
        %v5239 = vrot.slane %v5123, 7
        %v5240 = vsel %vm3166, %v5238, %v5239
        %v5241 = vrot.slane %v5124, 7
        %v5242 = vrot.slane %v5241, 4
        %v5243 = vrot.slane %v5125, 7
        %v5244 = vsel %vm3166, %v5242, %v5243
        %v5245 = vrot.slane %v5243, 4
        %v5246 = vrot.slane %v5126, 7
        %v5247 = vsel %vm3166, %v5245, %v5246
        %s5272 = smul.u32 %s5127, 5
        %s5273 = smul.addr %s5272, 4
        %s5274 = scalar_lea.vmem [#allocation2], %s5273
        %5275 = vst [vmem:[%s5274 + $0x8] sm:$0xf] %v5167
        %5276 = vst [vmem:[%s5274 + $0xc] sm:$0xf] %v5170
        %5277 = vst [vmem:[%s5274 + $0x1c] sm:$0xf] %v5174
        %5278 = vst [vmem:[%s5274 + $0x20] sm:$0xf] %v5177
        %5279 = vst [vmem:[%s5274 + $0x30] sm:$0xf] %v5181
        %5280 = vst [vmem:[%s5274 + $0x34] sm:$0xf] %v5184
        %5281 = vst [vmem:[%s5274 + $0x44] sm:$0xf] %v5188
        %5282 = vst [vmem:[%s5274 + $0x48] sm:$0xf] %v5191
        %5283 = vst [vmem:[%s5274 + $0x58] sm:$0xf] %v5195
        %5284 = vst [vmem:[%s5274 + $0x5c] sm:$0xf] %v5198
        %5285 = vst [vmem:[%s5274 + $0x6c] sm:$0xf] %v5202
        %5286 = vst [vmem:[%s5274 + $0x70] sm:$0xf] %v5205
        %5287 = vst [vmem:[%s5274 + $0x80] sm:$0xf] %v5209
        %5288 = vst [vmem:[%s5274 + $0x84] sm:$0xf] %v5212
        %5289 = vst [vmem:[%s5274 + $0x94] sm:$0xf] %v5216
        %5290 = vst [vmem:[%s5274 + $0x98] sm:$0xf] %v5219
        %5291 = vst [vmem:[%s5274 + $0xa8] sm:$0xf] %v5223
        %5292 = vst [vmem:[%s5274 + $0xac] sm:$0xf] %v5226
        %5293 = vst [vmem:[%s5274 + $0xbc] sm:$0xf] %v5230
        %5294 = vst [vmem:[%s5274 + $0xc0] sm:$0xf] %v5233
        %5295 = vst [vmem:[%s5274 + $0xd0] sm:$0xf] %v5237
        %5296 = vst [vmem:[%s5274 + $0xd4] sm:$0xf] %v5240
        %5297 = vst [vmem:[%s5274 + $0xe4] sm:$0xf] %v5244
        %5298 = vst [vmem:[%s5274 + $0xe8] sm:$0xf] %v5247
        %v5299 = vld [vmem:[#allocation3] sm:$0xff]
        %v5300 = vld [vmem:[#allocation3 + $0x8] sm:$0xff]
        %v5301 = vld [vmem:[#allocation3 + $0x10] sm:$0xff]
        %v5302 = vld [vmem:[#allocation3 + $0x18] sm:$0xff]
        %v5303 = vld [vmem:[#allocation3 + $0x20] sm:$0xff]
        %v5304 = vld [vmem:[#allocation3 + $0x28] sm:$0xff]
        %v5305 = vld [vmem:[#allocation3 + $0x30] sm:$0xff]
        %v5306 = vld [vmem:[#allocation3 + $0x38] sm:$0xff]
        %v5307 = vld [vmem:[#allocation3 + $0x40] sm:$0xff]
        %v5308 = vld [vmem:[#allocation3 + $0x48] sm:$0xff]
        %v5309 = vld [vmem:[#allocation3 + $0x50] sm:$0xff]
        %v5310 = vld [vmem:[#allocation3 + $0x58] sm:$0xff]
        %v5311 = vld [vmem:[#allocation3 + $0x60] sm:$0xff]
        %v5312 = vld [vmem:[#allocation3 + $0x68] sm:$0xff]
        %v5313 = vld [vmem:[#allocation3 + $0x70] sm:$0xff]
        %v5314 = vld [vmem:[#allocation3 + $0x78] sm:$0xff]
        %v5315 = vld [vmem:[%s966 + $0x8] sm:$0xf]
        %v5316 = vld [vmem:[%s966 + $0xc] sm:$0xf]
        %v5317 = vld [vmem:[%s966 + $0x1c] sm:$0xf]
        %v5318 = vld [vmem:[%s966 + $0x20] sm:$0xf]
        %v5319 = vld [vmem:[%s966 + $0x30] sm:$0xf]
        %v5320 = vld [vmem:[%s966 + $0x34] sm:$0xf]
        %v5321 = vld [vmem:[%s966 + $0x44] sm:$0xf]
        %v5322 = vld [vmem:[%s966 + $0x48] sm:$0xf]
        %v5323 = vld [vmem:[%s966 + $0x58] sm:$0xf]
        %v5324 = vld [vmem:[%s966 + $0x5c] sm:$0xf]
        %v5325 = vld [vmem:[%s966 + $0x6c] sm:$0xf]
        %v5326 = vld [vmem:[%s966 + $0x70] sm:$0xf]
        %v5327 = vld [vmem:[%s966 + $0x80] sm:$0xf]
        %v5328 = vld [vmem:[%s966 + $0x84] sm:$0xf]
        %v5329 = vld [vmem:[%s966 + $0x94] sm:$0xf]
        %v5330 = vld [vmem:[%s966 + $0x98] sm:$0xf]
        %s5331 = scalar_lea.vmem [#allocation9], 128
        %v5332 = vld [vmem:[%s5331] sm:$0xf]
        %v5333 = vld [vmem:[%s5331 + $0x4] sm:$0xf]
        %v5334 = vld [vmem:[%s5331 + $0x8] sm:$0xf]
        %v5335 = vld [vmem:[%s5331 + $0xc] sm:$0xf]
        %v5336 = vld [vmem:[%s5331 + $0x10] sm:$0xf]
        %v5337 = vld [vmem:[%s5331 + $0x14] sm:$0xf]
        %v5338 = vld [vmem:[%s5331 + $0x18] sm:$0xf]
        %v5339 = vld [vmem:[%s5331 + $0x1c] sm:$0xf]
        %v5340 = vld [vmem:[%s5331 + $0x20] sm:$0xf]
        %v5341 = vld [vmem:[%s5331 + $0x24] sm:$0xf]
        %v5342 = vld [vmem:[%s5331 + $0x28] sm:$0xf]
        %v5343 = vld [vmem:[%s5331 + $0x2c] sm:$0xf]
        %v5344 = vld [vmem:[%s5331 + $0x30] sm:$0xf]
        %v5345 = vld [vmem:[%s5331 + $0x34] sm:$0xf]
        %v5346 = vld [vmem:[%s5331 + $0x38] sm:$0xf]
        %v5347 = vld [vmem:[%s5331 + $0x3c] sm:$0xf]
        %v5364 = vunpack.c.l.b16 %v5315
        %v5365 = vunpack.c.l.b16 %v5316
        %v5366 = vunpack.c.l.b16 %v5317
        %v5367 = vunpack.c.l.b16 %v5318
        %v5368 = vunpack.c.l.b16 %v5319
        %v5369 = vunpack.c.l.b16 %v5320
        %v5370 = vunpack.c.l.b16 %v5321
        %v5371 = vunpack.c.l.b16 %v5322
        %v5372 = vunpack.c.l.b16 %v5323
        %v5373 = vunpack.c.l.b16 %v5324
        %v5374 = vunpack.c.l.b16 %v5325
        %v5375 = vunpack.c.l.b16 %v5326
        %v5376 = vunpack.c.l.b16 %v5327
        %v5377 = vunpack.c.l.b16 %v5328
        %v5378 = vunpack.c.l.b16 %v5329
        %v5379 = vunpack.c.l.b16 %v5330
        %v5380 = vpack.c.b16 %v5365, %v5364
        %v5381 = vpack.c.b16 %v5367, %v5366
        %v5382 = vpack.c.b16 %v5369, %v5368
        %v5383 = vpack.c.b16 %v5371, %v5370
        %v5384 = vpack.c.b16 %v5373, %v5372
        %v5385 = vpack.c.b16 %v5375, %v5374
        %v5386 = vpack.c.b16 %v5377, %v5376
        %v5387 = vpack.c.b16 %v5379, %v5378
        %v5412 = vunpack.c.l.b16 %v5332
        %v5413 = vunpack.c.l.b16 %v5333
        %v5414 = vunpack.c.l.b16 %v5334
        %v5415 = vunpack.c.l.b16 %v5335
        %v5416 = vunpack.c.l.b16 %v5336
        %v5417 = vunpack.c.l.b16 %v5337
        %v5418 = vunpack.c.l.b16 %v5338
        %v5419 = vunpack.c.l.b16 %v5339
        %v5420 = vunpack.c.l.b16 %v5340
        %v5421 = vunpack.c.l.b16 %v5341
        %v5422 = vunpack.c.l.b16 %v5342
        %v5423 = vunpack.c.l.b16 %v5343
        %v5424 = vunpack.c.l.b16 %v5344
        %v5425 = vunpack.c.l.b16 %v5345
        %v5426 = vunpack.c.l.b16 %v5346
        %v5427 = vunpack.c.l.b16 %v5347
        %v5428 = vpack.c.b16 %v5413, %v5412
        %v5429 = vpack.c.b16 %v5415, %v5414
        %v5430 = vpack.c.b16 %v5417, %v5416
        %v5431 = vpack.c.b16 %v5419, %v5418
        %v5432 = vpack.c.b16 %v5421, %v5420
        %v5433 = vpack.c.b16 %v5423, %v5422
        %v5434 = vpack.c.b16 %v5425, %v5424
        %v5435 = vpack.c.b16 %v5427, %v5426
        %5444 = vmatprep.subr.bf16.mxu0 0
        %5445 = vmatpush1.bf16.msra.mxu0 %v5435
        %5446 = vmatprep.subr.bf16.mxu0 0
        %5447 = vmatpush1.bf16.msra.mxu0 %v5434
        %5448 = vmatprep.subr.bf16.mxu0 0
        %5449 = vmatpush1.bf16.msra.mxu0 %v5433
        %5450 = vmatprep.subr.bf16.mxu0 0
        %5451 = vmatpush1.bf16.msra.mxu0 %v5432
        %5452 = vmatprep.subr.bf16.mxu0 0
        %5453 = vmatpush1.bf16.msra.mxu0 %v5431
        %5454 = vmatprep.subr.bf16.mxu0 0
        %5455 = vmatpush1.bf16.msra.mxu0 %v5430
        %5456 = vmatprep.subr.bf16.mxu0 0
        %5457 = vmatpush1.bf16.msra.mxu0 %v5429
        %5458 = vmatprep.subr.bf16.mxu0 0
        %5459 = vmatpush1.bf16.msra.mxu0 %v5428
        %5460 = vmatprep.subr.bf16.mxu0 0
        %5461 = vmatpush2.bf16.msra.mxu0 0
        %5462 = vmatprep.subr.bf16.mxu0 0
        %5463 = vmatpush2.bf16.msra.mxu0 0
        %5464 = vmatprep.subr.bf16.mxu0 0
        %5465 = vmatpush2.bf16.msra.mxu0 0
        %5466 = vmatprep.subr.bf16.mxu0 0
        %5467 = vmatpush2.bf16.msra.mxu0 0
        %5468 = vmatprep.subr.bf16.mxu0 0
        %5469 = vmatpush2.bf16.msra.mxu0 0
        %5470 = vmatprep.subr.bf16.mxu0 0
        %5471 = vmatpush2.bf16.msra.mxu0 0
        %5472 = vmatprep.subr.bf16.mxu0 0
        %5473 = vmatpush2.bf16.msra.mxu0 0
        %5474 = vmatprep.subr.bf16.mxu0 0
        %5475 = vmatpush2.bf16.msra.mxu0 0
        %5476 = vmatprep.mubr.bf16.mxu0 0
        %5477 = vmatmul.mubr.bf16.gmra.mxu0 %v5380
        %v5478 = vpop.f32.mrf.mxu0
        %v5479 = vadd.f32 0.0, %v5478
        %v5480 = vpop.f32.mrf.mxu0
        %v5481 = vpop.f32.mrf.mxu0
        %v5482 = vadd.f32 0.0, %v5481
        %v5483 = vpop.f32.mrf.mxu0
        %5484 = vmatprep.mubr.bf16.mxu0 0
        %5485 = vmatmul.mubr.bf16.gmra.mxu0 %v5381
        %v5486 = vpop.f32.mrf.mxu0
        %v5487 = vadd.f32 0.0, %v5486
        %v5488 = vpop.f32.mrf.mxu0
        %v5489 = vpop.f32.mrf.mxu0
        %v5490 = vadd.f32 0.0, %v5489
        %v5491 = vpop.f32.mrf.mxu0
        %5492 = vmatprep.mubr.bf16.mxu0 0
        %5493 = vmatmul.mubr.bf16.gmra.mxu0 %v5382
        %v5494 = vpop.f32.mrf.mxu0
        %v5495 = vadd.f32 0.0, %v5494
        %v5496 = vpop.f32.mrf.mxu0
        %v5497 = vpop.f32.mrf.mxu0
        %v5498 = vadd.f32 0.0, %v5497
        %v5499 = vpop.f32.mrf.mxu0
        %5500 = vmatprep.mubr.bf16.mxu0 0
        %5501 = vmatmul.mubr.bf16.gmra.mxu0 %v5383
        %v5502 = vpop.f32.mrf.mxu0
        %v5503 = vadd.f32 0.0, %v5502
        %v5504 = vpop.f32.mrf.mxu0
        %v5505 = vpop.f32.mrf.mxu0
        %v5506 = vadd.f32 0.0, %v5505
        %v5507 = vpop.f32.mrf.mxu0
        %5508 = vmatprep.mubr.bf16.mxu0 0
        %5509 = vmatmul.mubr.bf16.gmra.mxu0 %v5384
        %v5510 = vpop.f32.mrf.mxu0
        %v5511 = vadd.f32 0.0, %v5510
        %v5512 = vpop.f32.mrf.mxu0
        %v5513 = vpop.f32.mrf.mxu0
        %v5514 = vadd.f32 0.0, %v5513
        %v5515 = vpop.f32.mrf.mxu0
        %5516 = vmatprep.mubr.bf16.mxu0 0
        %5517 = vmatmul.mubr.bf16.gmra.mxu0 %v5385
        %v5518 = vpop.f32.mrf.mxu0
        %v5519 = vadd.f32 0.0, %v5518
        %v5520 = vpop.f32.mrf.mxu0
        %v5521 = vpop.f32.mrf.mxu0
        %v5522 = vadd.f32 0.0, %v5521
        %v5523 = vpop.f32.mrf.mxu0
        %5524 = vmatprep.mubr.bf16.mxu0 0
        %5525 = vmatmul.mubr.bf16.gmra.mxu0 %v5386
        %v5526 = vpop.f32.mrf.mxu0
        %v5527 = vadd.f32 0.0, %v5526
        %v5528 = vpop.f32.mrf.mxu0
        %v5529 = vpop.f32.mrf.mxu0
        %v5530 = vadd.f32 0.0, %v5529
        %v5531 = vpop.f32.mrf.mxu0
        %5532 = vmatprep.mubr.bf16.mxu0 0
        %5533 = vmatmul.mubr.bf16.gmra.mxu0 %v5387
        %v5534 = vpop.f32.mrf.mxu0
        %v5535 = vadd.f32 0.0, %v5534
        %v5536 = vpop.f32.mrf.mxu0
        %v5537 = vpop.f32.mrf.mxu0
        %v5538 = vadd.f32 0.0, %v5537
        %v5539 = vpop.f32.mrf.mxu0
        %5540 = vdwg.mxu0
        %v5541 = vadd.f32 %v5299, %v5479
        %v5542 = vadd.f32 %v5300, %v5482
        %v5543 = vadd.f32 %v5301, %v5487
        %v5544 = vadd.f32 %v5302, %v5490
        %v5545 = vadd.f32 %v5303, %v5495
        %v5546 = vadd.f32 %v5304, %v5498
        %v5547 = vadd.f32 %v5305, %v5503
        %v5548 = vadd.f32 %v5306, %v5506
        %v5549 = vadd.f32 %v5307, %v5511
        %v5550 = vadd.f32 %v5308, %v5514
        %v5551 = vadd.f32 %v5309, %v5519
        %v5552 = vadd.f32 %v5310, %v5522
        %v5553 = vadd.f32 %v5311, %v5527
        %v5554 = vadd.f32 %v5312, %v5530
        %v5555 = vadd.f32 %v5313, %v5535
        %v5556 = vadd.f32 %v5314, %v5538
        %5557 = vst [vmem:[#allocation3] sm:$0xff] %v5541
        %5558 = vst [vmem:[#allocation3 + $0x8] sm:$0xff] %v5542
        %5559 = vst [vmem:[#allocation3 + $0x10] sm:$0xff] %v5543
        %5560 = vst [vmem:[#allocation3 + $0x18] sm:$0xff] %v5544
        %5561 = vst [vmem:[#allocation3 + $0x20] sm:$0xff] %v5545
        %5562 = vst [vmem:[#allocation3 + $0x28] sm:$0xff] %v5546
        %5563 = vst [vmem:[#allocation3 + $0x30] sm:$0xff] %v5547
        %5564 = vst [vmem:[#allocation3 + $0x38] sm:$0xff] %v5548
        %5565 = vst [vmem:[#allocation3 + $0x40] sm:$0xff] %v5549
        %5566 = vst [vmem:[#allocation3 + $0x48] sm:$0xff] %v5550
        %5567 = vst [vmem:[#allocation3 + $0x50] sm:$0xff] %v5551
        %5568 = vst [vmem:[#allocation3 + $0x58] sm:$0xff] %v5552
        %5569 = vst [vmem:[#allocation3 + $0x60] sm:$0xff] %v5553
        %5570 = vst [vmem:[#allocation3 + $0x68] sm:$0xff] %v5554
        %5571 = vst [vmem:[#allocation3 + $0x70] sm:$0xff] %v5555
        %5572 = vst [vmem:[#allocation3 + $0x78] sm:$0xff] %v5556
        %s5573 = smul.u32 %s295, 5
        %s5574 = smul.addr %s5573, 4
        %s5575 = scalar_lea.vmem [#allocation2], %s5574
        %v5576 = vld [vmem:[%s5575 + $0x4] sm:$0x8]
        %v5577 = vld [vmem:[%s5575 + $0x8] sm:$0xf]
        %v5578 = vld [vmem:[%s5575 + $0xc] sm:$0x7]
        %v5579 = vld [vmem:[%s5575 + $0x18] sm:$0x8]
        %v5580 = vld [vmem:[%s5575 + $0x1c] sm:$0xf]
        %v5581 = vld [vmem:[%s5575 + $0x20] sm:$0x7]
        %v5582 = vld [vmem:[%s5575 + $0x2c] sm:$0x8]
        %v5583 = vld [vmem:[%s5575 + $0x30] sm:$0xf]
        %v5584 = vld [vmem:[%s5575 + $0x34] sm:$0x7]
        %v5585 = vld [vmem:[%s5575 + $0x40] sm:$0x8]
        %v5586 = vld [vmem:[%s5575 + $0x44] sm:$0xf]
        %v5587 = vld [vmem:[%s5575 + $0x48] sm:$0x7]
        %v5588 = vld [vmem:[%s5575 + $0x54] sm:$0x8]
        %v5589 = vld [vmem:[%s5575 + $0x58] sm:$0xf]
        %v5590 = vld [vmem:[%s5575 + $0x5c] sm:$0x7]
        %v5591 = vld [vmem:[%s5575 + $0x68] sm:$0x8]
        %v5592 = vld [vmem:[%s5575 + $0x6c] sm:$0xf]
        %v5593 = vld [vmem:[%s5575 + $0x70] sm:$0x7]
        %v5594 = vld [vmem:[%s5575 + $0x7c] sm:$0x8]
        %v5595 = vld [vmem:[%s5575 + $0x80] sm:$0xf]
        %v5596 = vld [vmem:[%s5575 + $0x84] sm:$0x7]
        %v5597 = vld [vmem:[%s5575 + $0x90] sm:$0x8]
        %v5598 = vld [vmem:[%s5575 + $0x94] sm:$0xf]
        %v5599 = vld [vmem:[%s5575 + $0x98] sm:$0x7]
        %v5600 = vld [vmem:[%s5575 + $0xa4] sm:$0x8]
        %v5601 = vld [vmem:[%s5575 + $0xa8] sm:$0xf]
        %v5602 = vld [vmem:[%s5575 + $0xac] sm:$0x7]
        %v5603 = vld [vmem:[%s5575 + $0xb8] sm:$0x8]
        %v5604 = vld [vmem:[%s5575 + $0xbc] sm:$0xf]
        %v5605 = vld [vmem:[%s5575 + $0xc0] sm:$0x7]
        %v5606 = vld [vmem:[%s5575 + $0xcc] sm:$0x8]
        %v5607 = vld [vmem:[%s5575 + $0xd0] sm:$0xf]
        %v5608 = vld [vmem:[%s5575 + $0xd4] sm:$0x7]
        %v5609 = vld [vmem:[%s5575 + $0xe0] sm:$0x8]
        %v5610 = vld [vmem:[%s5575 + $0xe4] sm:$0xf]
        %v5611 = vld [vmem:[%s5575 + $0xe8] sm:$0x7]
        %v5612 = vld [vmem:[%s5575 + $0xc] sm:$0xf]
        %v5613 = vld [vmem:[%s5575 + $0x20] sm:$0xf]
        %v5614 = vld [vmem:[%s5575 + $0x34] sm:$0xf]
        %v5615 = vld [vmem:[%s5575 + $0x48] sm:$0xf]
        %v5616 = vld [vmem:[%s5575 + $0x5c] sm:$0xf]
        %v5617 = vld [vmem:[%s5575 + $0x70] sm:$0xf]
        %v5618 = vld [vmem:[%s5575 + $0x84] sm:$0xf]
        %v5619 = vld [vmem:[%s5575 + $0x98] sm:$0xf]
        %v5620 = vld [vmem:[%s5575 + $0xac] sm:$0xf]
        %v5621 = vld [vmem:[%s5575 + $0xc0] sm:$0xf]
        %v5622 = vld [vmem:[%s5575 + $0xd4] sm:$0xf]
        %v5623 = vld [vmem:[%s5575 + $0xe8] sm:$0xf]
        %v5625 = vshrl.u32 %v5576, 16
        %v5627 = vrot.slane %v5625, 4
        %v5628 = vrot.slane %v5627, 4
        %v5630 = vshll.u32 %v5577, 16
        %v5632 = vrot.slane %v5630, 5
        %v5633 = vsel %vm1293, %v5628, %v5632
        %v5634 = vshrl.u32 %v5577, 16
        %v5636 = vrot.slane %v5634, 4
        %v5637 = vor.u32 %v5636, %v5632
        %v5638 = vrot.slane %v5637, 4
        %v5640 = vshll.u32 %v5612, 16
        %v5642 = vrot.slane %v5640, 5
        %v5643 = vsel %vm1293, %v5638, %v5642
        %v5644 = vshrl.u32 %v5612, 16
        %v5646 = vrot.slane %v5644, 4
        %v5647 = vor.u32 %v5646, %v5642
        %v5648 = vrot.slane %v5647, 4
        %v5650 = vshrl.u32 %v5579, 16
        %v5652 = vrot.slane %v5650, 4
        %v5653 = vrot.slane %v5652, 4
        %v5655 = vshll.u32 %v5580, 16
        %v5657 = vrot.slane %v5655, 5
        %v5658 = vsel %vm1293, %v5653, %v5657
        %v5659 = vshrl.u32 %v5580, 16
        %v5661 = vrot.slane %v5659, 4
        %v5662 = vor.u32 %v5661, %v5657
        %v5663 = vrot.slane %v5662, 4
        %v5665 = vshll.u32 %v5613, 16
        %v5667 = vrot.slane %v5665, 5
        %v5668 = vsel %vm1293, %v5663, %v5667
        %v5669 = vshrl.u32 %v5613, 16
        %v5671 = vrot.slane %v5669, 4
        %v5672 = vor.u32 %v5671, %v5667
        %v5673 = vrot.slane %v5672, 4
        %v5675 = vshrl.u32 %v5582, 16
        %v5677 = vrot.slane %v5675, 4
        %v5678 = vrot.slane %v5677, 4
        %v5680 = vshll.u32 %v5583, 16
        %v5682 = vrot.slane %v5680, 5
        %v5683 = vsel %vm1293, %v5678, %v5682
        %v5684 = vshrl.u32 %v5583, 16
        %v5686 = vrot.slane %v5684, 4
        %v5687 = vor.u32 %v5686, %v5682
        %v5688 = vrot.slane %v5687, 4
        %v5690 = vshll.u32 %v5614, 16
        %v5692 = vrot.slane %v5690, 5
        %v5693 = vsel %vm1293, %v5688, %v5692
        %v5694 = vshrl.u32 %v5614, 16
        %v5696 = vrot.slane %v5694, 4
        %v5697 = vor.u32 %v5696, %v5692
        %v5698 = vrot.slane %v5697, 4
        %v5700 = vshrl.u32 %v5585, 16
        %v5702 = vrot.slane %v5700, 4
        %v5703 = vrot.slane %v5702, 4
        %v5705 = vshll.u32 %v5586, 16
        %v5707 = vrot.slane %v5705, 5
        %v5708 = vsel %vm1293, %v5703, %v5707
        %v5709 = vshrl.u32 %v5586, 16
        %v5711 = vrot.slane %v5709, 4
        %v5712 = vor.u32 %v5711, %v5707
        %v5713 = vrot.slane %v5712, 4
        %v5715 = vshll.u32 %v5615, 16
        %v5717 = vrot.slane %v5715, 5
        %v5718 = vsel %vm1293, %v5713, %v5717
        %v5719 = vshrl.u32 %v5615, 16
        %v5721 = vrot.slane %v5719, 4
        %v5722 = vor.u32 %v5721, %v5717
        %v5723 = vrot.slane %v5722, 4
        %v5725 = vshrl.u32 %v5588, 16
        %v5727 = vrot.slane %v5725, 4
        %v5728 = vrot.slane %v5727, 4
        %v5730 = vshll.u32 %v5589, 16
        %v5732 = vrot.slane %v5730, 5
        %v5733 = vsel %vm1293, %v5728, %v5732
        %v5734 = vshrl.u32 %v5589, 16
        %v5736 = vrot.slane %v5734, 4
        %v5737 = vor.u32 %v5736, %v5732
        %v5738 = vrot.slane %v5737, 4
        %v5740 = vshll.u32 %v5616, 16
        %v5742 = vrot.slane %v5740, 5
        %v5743 = vsel %vm1293, %v5738, %v5742
        %v5744 = vshrl.u32 %v5616, 16
        %v5746 = vrot.slane %v5744, 4
        %v5747 = vor.u32 %v5746, %v5742
        %v5748 = vrot.slane %v5747, 4
        %v5750 = vshrl.u32 %v5591, 16
        %v5752 = vrot.slane %v5750, 4
        %v5753 = vrot.slane %v5752, 4
        %v5755 = vshll.u32 %v5592, 16
        %v5757 = vrot.slane %v5755, 5
        %v5758 = vsel %vm1293, %v5753, %v5757
        %v5759 = vshrl.u32 %v5592, 16
        %v5761 = vrot.slane %v5759, 4
        %v5762 = vor.u32 %v5761, %v5757
        %v5763 = vrot.slane %v5762, 4
        %v5765 = vshll.u32 %v5617, 16
        %v5767 = vrot.slane %v5765, 5
        %v5768 = vsel %vm1293, %v5763, %v5767
        %v5769 = vshrl.u32 %v5617, 16
        %v5771 = vrot.slane %v5769, 4
        %v5772 = vor.u32 %v5771, %v5767
        %v5773 = vrot.slane %v5772, 4
        %v5775 = vshrl.u32 %v5594, 16
        %v5777 = vrot.slane %v5775, 4
        %v5778 = vrot.slane %v5777, 4
        %v5780 = vshll.u32 %v5595, 16
        %v5782 = vrot.slane %v5780, 5
        %v5783 = vsel %vm1293, %v5778, %v5782
        %v5784 = vshrl.u32 %v5595, 16
        %v5786 = vrot.slane %v5784, 4
        %v5787 = vor.u32 %v5786, %v5782
        %v5788 = vrot.slane %v5787, 4
        %v5790 = vshll.u32 %v5618, 16
        %v5792 = vrot.slane %v5790, 5
        %v5793 = vsel %vm1293, %v5788, %v5792
        %v5794 = vshrl.u32 %v5618, 16
        %v5796 = vrot.slane %v5794, 4
        %v5797 = vor.u32 %v5796, %v5792
        %v5798 = vrot.slane %v5797, 4
        %v5800 = vshrl.u32 %v5597, 16
        %v5802 = vrot.slane %v5800, 4
        %v5803 = vrot.slane %v5802, 4
        %v5805 = vshll.u32 %v5598, 16
        %v5807 = vrot.slane %v5805, 5
        %v5808 = vsel %vm1293, %v5803, %v5807
        %v5809 = vshrl.u32 %v5598, 16
        %v5811 = vrot.slane %v5809, 4
        %v5812 = vor.u32 %v5811, %v5807
        %v5813 = vrot.slane %v5812, 4
        %v5815 = vshll.u32 %v5619, 16
        %v5817 = vrot.slane %v5815, 5
        %v5818 = vsel %vm1293, %v5813, %v5817
        %v5819 = vshrl.u32 %v5619, 16
        %v5821 = vrot.slane %v5819, 4
        %v5822 = vor.u32 %v5821, %v5817
        %v5823 = vrot.slane %v5822, 4
        %v5825 = vshrl.u32 %v5600, 16
        %v5827 = vrot.slane %v5825, 4
        %v5828 = vrot.slane %v5827, 4
        %v5830 = vshll.u32 %v5601, 16
        %v5832 = vrot.slane %v5830, 5
        %v5833 = vsel %vm1293, %v5828, %v5832
        %v5834 = vshrl.u32 %v5601, 16
        %v5836 = vrot.slane %v5834, 4
        %v5837 = vor.u32 %v5836, %v5832
        %v5838 = vrot.slane %v5837, 4
        %v5840 = vshll.u32 %v5620, 16
        %v5842 = vrot.slane %v5840, 5
        %v5843 = vsel %vm1293, %v5838, %v5842
        %v5844 = vshrl.u32 %v5620, 16
        %v5846 = vrot.slane %v5844, 4
        %v5847 = vor.u32 %v5846, %v5842
        %v5848 = vrot.slane %v5847, 4
        %v5850 = vshrl.u32 %v5603, 16
        %v5852 = vrot.slane %v5850, 4
        %v5853 = vrot.slane %v5852, 4
        %v5855 = vshll.u32 %v5604, 16
        %v5857 = vrot.slane %v5855, 5
        %v5858 = vsel %vm1293, %v5853, %v5857
        %v5859 = vshrl.u32 %v5604, 16
        %v5861 = vrot.slane %v5859, 4
        %v5862 = vor.u32 %v5861, %v5857
        %v5863 = vrot.slane %v5862, 4
        %v5865 = vshll.u32 %v5621, 16
        %v5867 = vrot.slane %v5865, 5
        %v5868 = vsel %vm1293, %v5863, %v5867
        %v5869 = vshrl.u32 %v5621, 16
        %v5871 = vrot.slane %v5869, 4
        %v5872 = vor.u32 %v5871, %v5867
        %v5873 = vrot.slane %v5872, 4
        %v5875 = vshrl.u32 %v5606, 16
        %v5877 = vrot.slane %v5875, 4
        %v5878 = vrot.slane %v5877, 4
        %v5880 = vshll.u32 %v5607, 16
        %v5882 = vrot.slane %v5880, 5
        %v5883 = vsel %vm1293, %v5878, %v5882
        %v5884 = vshrl.u32 %v5607, 16
        %v5886 = vrot.slane %v5884, 4
        %v5887 = vor.u32 %v5886, %v5882
        %v5888 = vrot.slane %v5887, 4
        %v5890 = vshll.u32 %v5622, 16
        %v5892 = vrot.slane %v5890, 5
        %v5893 = vsel %vm1293, %v5888, %v5892
        %v5894 = vshrl.u32 %v5622, 16
        %v5896 = vrot.slane %v5894, 4
        %v5897 = vor.u32 %v5896, %v5892
        %v5898 = vrot.slane %v5897, 4
        %v5900 = vshrl.u32 %v5609, 16
        %v5902 = vrot.slane %v5900, 4
        %v5903 = vrot.slane %v5902, 4
        %v5905 = vshll.u32 %v5610, 16
        %v5907 = vrot.slane %v5905, 5
        %v5908 = vsel %vm1293, %v5903, %v5907
        %v5909 = vshrl.u32 %v5610, 16
        %v5911 = vrot.slane %v5909, 4
        %v5912 = vor.u32 %v5911, %v5907
        %v5913 = vrot.slane %v5912, 4
        %v5915 = vshll.u32 %v5623, 16
        %v5917 = vrot.slane %v5915, 5
        %v5918 = vsel %vm1293, %v5913, %v5917
        %v5919 = vshrl.u32 %v5623, 16
        %v5921 = vrot.slane %v5919, 4
        %v5922 = vor.u32 %v5921, %v5917
        %v5923 = vrot.slane %v5922, 4
        %v5960 = vmax.bf16 %v5576, %v5633
        %v5961 = vmax.bf16 %v5577, %v5643
        %v5962 = vmax.bf16 %v5578, %v5648
        %v5963 = vmax.bf16 %v5579, %v5658
        %v5964 = vmax.bf16 %v5580, %v5668
        %v5965 = vmax.bf16 %v5581, %v5673
        %v5966 = vmax.bf16 %v5582, %v5683
        %v5967 = vmax.bf16 %v5583, %v5693
        %v5968 = vmax.bf16 %v5584, %v5698
        %v5969 = vmax.bf16 %v5585, %v5708
        %v5970 = vmax.bf16 %v5586, %v5718
        %v5971 = vmax.bf16 %v5587, %v5723
        %v5972 = vmax.bf16 %v5588, %v5733
        %v5973 = vmax.bf16 %v5589, %v5743
        %v5974 = vmax.bf16 %v5590, %v5748
        %v5975 = vmax.bf16 %v5591, %v5758
        %v5976 = vmax.bf16 %v5592, %v5768
        %v5977 = vmax.bf16 %v5593, %v5773
        %v5978 = vmax.bf16 %v5594, %v5783
        %v5979 = vmax.bf16 %v5595, %v5793
        %v5980 = vmax.bf16 %v5596, %v5798
        %v5981 = vmax.bf16 %v5597, %v5808
        %v5982 = vmax.bf16 %v5598, %v5818
        %v5983 = vmax.bf16 %v5599, %v5823
        %v5984 = vmax.bf16 %v5600, %v5833
        %v5985 = vmax.bf16 %v5601, %v5843
        %v5986 = vmax.bf16 %v5602, %v5848
        %v5987 = vmax.bf16 %v5603, %v5858
        %v5988 = vmax.bf16 %v5604, %v5868
        %v5989 = vmax.bf16 %v5605, %v5873
        %v5990 = vmax.bf16 %v5606, %v5883
        %v5991 = vmax.bf16 %v5607, %v5893
        %v5992 = vmax.bf16 %v5608, %v5898
        %v5993 = vmax.bf16 %v5609, %v5908
        %v5994 = vmax.bf16 %v5610, %v5918
        %v5995 = vmax.bf16 %v5611, %v5923
        %v6020 = vrot.slane %v5577, 5
        %v6021 = vrot.slane %v6020, 4
        %v6022 = vrot.slane %v5612, 5
        %v6023 = vsel %vm1956, %v6021, %v6022
        %v6024 = vrot.slane %v6022, 4
        %v6025 = vrot.slane %v5580, 5
        %v6026 = vrot.slane %v6025, 4
        %v6027 = vrot.slane %v5613, 5
        %v6028 = vsel %vm1956, %v6026, %v6027
        %v6029 = vrot.slane %v6027, 4
        %v6030 = vrot.slane %v5583, 5
        %v6031 = vrot.slane %v6030, 4
        %v6032 = vrot.slane %v5614, 5
        %v6033 = vsel %vm1956, %v6031, %v6032
        %v6034 = vrot.slane %v6032, 4
        %v6035 = vrot.slane %v5586, 5
        %v6036 = vrot.slane %v6035, 4
        %v6037 = vrot.slane %v5615, 5
        %v6038 = vsel %vm1956, %v6036, %v6037
        %v6039 = vrot.slane %v6037, 4
        %v6040 = vrot.slane %v5589, 5
        %v6041 = vrot.slane %v6040, 4
        %v6042 = vrot.slane %v5616, 5
        %v6043 = vsel %vm1956, %v6041, %v6042
        %v6044 = vrot.slane %v6042, 4
        %v6045 = vrot.slane %v5592, 5
        %v6046 = vrot.slane %v6045, 4
        %v6047 = vrot.slane %v5617, 5
        %v6048 = vsel %vm1956, %v6046, %v6047
        %v6049 = vrot.slane %v6047, 4
        %v6050 = vrot.slane %v5595, 5
        %v6051 = vrot.slane %v6050, 4
        %v6052 = vrot.slane %v5618, 5
        %v6053 = vsel %vm1956, %v6051, %v6052
        %v6054 = vrot.slane %v6052, 4
        %v6055 = vrot.slane %v5598, 5
        %v6056 = vrot.slane %v6055, 4
        %v6057 = vrot.slane %v5619, 5
        %v6058 = vsel %vm1956, %v6056, %v6057
        %v6059 = vrot.slane %v6057, 4
        %v6060 = vrot.slane %v5601, 5
        %v6061 = vrot.slane %v6060, 4
        %v6062 = vrot.slane %v5620, 5
        %v6063 = vsel %vm1956, %v6061, %v6062
        %v6064 = vrot.slane %v6062, 4
        %v6065 = vrot.slane %v5604, 5
        %v6066 = vrot.slane %v6065, 4
        %v6067 = vrot.slane %v5621, 5
        %v6068 = vsel %vm1956, %v6066, %v6067
        %v6069 = vrot.slane %v6067, 4
        %v6070 = vrot.slane %v5607, 5
        %v6071 = vrot.slane %v6070, 4
        %v6072 = vrot.slane %v5622, 5
        %v6073 = vsel %vm1956, %v6071, %v6072
        %v6074 = vrot.slane %v6072, 4
        %v6075 = vrot.slane %v5610, 5
        %v6076 = vrot.slane %v6075, 4
        %v6077 = vrot.slane %v5623, 5
        %v6078 = vsel %vm1956, %v6076, %v6077
        %v6079 = vrot.slane %v6077, 4
        %v6116 = vmax.bf16 %v5960, %v6020
        %v6117 = vmax.bf16 %v5961, %v6023
        %v6118 = vmax.bf16 %v5962, %v6024
        %v6119 = vmax.bf16 %v5963, %v6025
        %v6120 = vmax.bf16 %v5964, %v6028
        %v6121 = vmax.bf16 %v5965, %v6029
        %v6122 = vmax.bf16 %v5966, %v6030
        %v6123 = vmax.bf16 %v5967, %v6033
        %v6124 = vmax.bf16 %v5968, %v6034
        %v6125 = vmax.bf16 %v5969, %v6035
        %v6126 = vmax.bf16 %v5970, %v6038
        %v6127 = vmax.bf16 %v5971, %v6039
        %v6128 = vmax.bf16 %v5972, %v6040
        %v6129 = vmax.bf16 %v5973, %v6043
        %v6130 = vmax.bf16 %v5974, %v6044
        %v6131 = vmax.bf16 %v5975, %v6045
        %v6132 = vmax.bf16 %v5976, %v6048
        %v6133 = vmax.bf16 %v5977, %v6049
        %v6134 = vmax.bf16 %v5978, %v6050
        %v6135 = vmax.bf16 %v5979, %v6053
        %v6136 = vmax.bf16 %v5980, %v6054
        %v6137 = vmax.bf16 %v5981, %v6055
        %v6138 = vmax.bf16 %v5982, %v6058
        %v6139 = vmax.bf16 %v5983, %v6059
        %v6140 = vmax.bf16 %v5984, %v6060
        %v6141 = vmax.bf16 %v5985, %v6063
        %v6142 = vmax.bf16 %v5986, %v6064
        %v6143 = vmax.bf16 %v5987, %v6065
        %v6144 = vmax.bf16 %v5988, %v6068
        %v6145 = vmax.bf16 %v5989, %v6069
        %v6146 = vmax.bf16 %v5990, %v6070
        %v6147 = vmax.bf16 %v5991, %v6073
        %v6148 = vmax.bf16 %v5992, %v6074
        %v6149 = vmax.bf16 %v5993, %v6075
        %v6150 = vmax.bf16 %v5994, %v6078
        %v6151 = vmax.bf16 %v5995, %v6079
        %v6152 = vld [vmem:[%s5575 + $0x10] sm:$0x1]
        %v6153 = vld [vmem:[%s5575 + $0x24] sm:$0x1]
        %v6154 = vld [vmem:[%s5575 + $0x38] sm:$0x1]
        %v6155 = vld [vmem:[%s5575 + $0x4c] sm:$0x1]
        %v6156 = vld [vmem:[%s5575 + $0x60] sm:$0x1]
        %v6157 = vld [vmem:[%s5575 + $0x74] sm:$0x1]
        %v6158 = vld [vmem:[%s5575 + $0x88] sm:$0x1]
        %v6159 = vld [vmem:[%s5575 + $0x9c] sm:$0x1]
        %v6160 = vld [vmem:[%s5575 + $0xb0] sm:$0x1]
        %v6161 = vld [vmem:[%s5575 + $0xc4] sm:$0x1]
        %v6162 = vld [vmem:[%s5575 + $0xd8] sm:$0x1]
        %v6163 = vld [vmem:[%s5575 + $0xec] sm:$0x1]
        %v6164 = vrot.slane %v5634, 5
        %v6165 = vrot.slane %v5630, 6
        %v6166 = vor.u32 %v6164, %v6165
        %v6167 = vrot.slane %v6166, 4
        %v6168 = vrot.slane %v5644, 5
        %v6169 = vrot.slane %v5640, 6
        %v6170 = vor.u32 %v6168, %v6169
        %v6171 = vsel %vm2199, %v6167, %v6170
        %v6172 = vrot.slane %v6170, 4
        %v6174 = vshll.u32 %v6152, 16
        %v6176 = vrot.slane %v6174, 6
        %v6177 = vsel %vm2199, %v6172, %v6176
        %v6178 = vrot.slane %v5659, 5
        %v6179 = vrot.slane %v5655, 6
        %v6180 = vor.u32 %v6178, %v6179
        %v6181 = vrot.slane %v6180, 4
        %v6182 = vrot.slane %v5669, 5
        %v6183 = vrot.slane %v5665, 6
        %v6184 = vor.u32 %v6182, %v6183
        %v6185 = vsel %vm2199, %v6181, %v6184
        %v6186 = vrot.slane %v6184, 4
        %v6188 = vshll.u32 %v6153, 16
        %v6190 = vrot.slane %v6188, 6
        %v6191 = vsel %vm2199, %v6186, %v6190
        %v6192 = vrot.slane %v5684, 5
        %v6193 = vrot.slane %v5680, 6
        %v6194 = vor.u32 %v6192, %v6193
        %v6195 = vrot.slane %v6194, 4
        %v6196 = vrot.slane %v5694, 5
        %v6197 = vrot.slane %v5690, 6
        %v6198 = vor.u32 %v6196, %v6197
        %v6199 = vsel %vm2199, %v6195, %v6198
        %v6200 = vrot.slane %v6198, 4
        %v6202 = vshll.u32 %v6154, 16
        %v6204 = vrot.slane %v6202, 6
        %v6205 = vsel %vm2199, %v6200, %v6204
        %v6206 = vrot.slane %v5709, 5
        %v6207 = vrot.slane %v5705, 6
        %v6208 = vor.u32 %v6206, %v6207
        %v6209 = vrot.slane %v6208, 4
        %v6210 = vrot.slane %v5719, 5
        %v6211 = vrot.slane %v5715, 6
        %v6212 = vor.u32 %v6210, %v6211
        %v6213 = vsel %vm2199, %v6209, %v6212
        %v6214 = vrot.slane %v6212, 4
        %v6216 = vshll.u32 %v6155, 16
        %v6218 = vrot.slane %v6216, 6
        %v6219 = vsel %vm2199, %v6214, %v6218
        %v6220 = vrot.slane %v5734, 5
        %v6221 = vrot.slane %v5730, 6
        %v6222 = vor.u32 %v6220, %v6221
        %v6223 = vrot.slane %v6222, 4
        %v6224 = vrot.slane %v5744, 5
        %v6225 = vrot.slane %v5740, 6
        %v6226 = vor.u32 %v6224, %v6225
        %v6227 = vsel %vm2199, %v6223, %v6226
        %v6228 = vrot.slane %v6226, 4
        %v6230 = vshll.u32 %v6156, 16
        %v6232 = vrot.slane %v6230, 6
        %v6233 = vsel %vm2199, %v6228, %v6232
        %v6234 = vrot.slane %v5759, 5
        %v6235 = vrot.slane %v5755, 6
        %v6236 = vor.u32 %v6234, %v6235
        %v6237 = vrot.slane %v6236, 4
        %v6238 = vrot.slane %v5769, 5
        %v6239 = vrot.slane %v5765, 6
        %v6240 = vor.u32 %v6238, %v6239
        %v6241 = vsel %vm2199, %v6237, %v6240
        %v6242 = vrot.slane %v6240, 4
        %v6244 = vshll.u32 %v6157, 16
        %v6246 = vrot.slane %v6244, 6
        %v6247 = vsel %vm2199, %v6242, %v6246
        %v6248 = vrot.slane %v5784, 5
        %v6249 = vrot.slane %v5780, 6
        %v6250 = vor.u32 %v6248, %v6249
        %v6251 = vrot.slane %v6250, 4
        %v6252 = vrot.slane %v5794, 5
        %v6253 = vrot.slane %v5790, 6
        %v6254 = vor.u32 %v6252, %v6253
        %v6255 = vsel %vm2199, %v6251, %v6254
        %v6256 = vrot.slane %v6254, 4
        %v6258 = vshll.u32 %v6158, 16
        %v6260 = vrot.slane %v6258, 6
        %v6261 = vsel %vm2199, %v6256, %v6260
        %v6262 = vrot.slane %v5809, 5
        %v6263 = vrot.slane %v5805, 6
        %v6264 = vor.u32 %v6262, %v6263
        %v6265 = vrot.slane %v6264, 4
        %v6266 = vrot.slane %v5819, 5
        %v6267 = vrot.slane %v5815, 6
        %v6268 = vor.u32 %v6266, %v6267
        %v6269 = vsel %vm2199, %v6265, %v6268
        %v6270 = vrot.slane %v6268, 4
        %v6272 = vshll.u32 %v6159, 16
        %v6274 = vrot.slane %v6272, 6
        %v6275 = vsel %vm2199, %v6270, %v6274
        %v6276 = vrot.slane %v5834, 5
        %v6277 = vrot.slane %v5830, 6
        %v6278 = vor.u32 %v6276, %v6277
        %v6279 = vrot.slane %v6278, 4
        %v6280 = vrot.slane %v5844, 5
        %v6281 = vrot.slane %v5840, 6
        %v6282 = vor.u32 %v6280, %v6281
        %v6283 = vsel %vm2199, %v6279, %v6282
        %v6284 = vrot.slane %v6282, 4
        %v6286 = vshll.u32 %v6160, 16
        %v6288 = vrot.slane %v6286, 6
        %v6289 = vsel %vm2199, %v6284, %v6288
        %v6290 = vrot.slane %v5859, 5
        %v6291 = vrot.slane %v5855, 6
        %v6292 = vor.u32 %v6290, %v6291
        %v6293 = vrot.slane %v6292, 4
        %v6294 = vrot.slane %v5869, 5
        %v6295 = vrot.slane %v5865, 6
        %v6296 = vor.u32 %v6294, %v6295
        %v6297 = vsel %vm2199, %v6293, %v6296
        %v6298 = vrot.slane %v6296, 4
        %v6300 = vshll.u32 %v6161, 16
        %v6302 = vrot.slane %v6300, 6
        %v6303 = vsel %vm2199, %v6298, %v6302
        %v6304 = vrot.slane %v5884, 5
        %v6305 = vrot.slane %v5880, 6
        %v6306 = vor.u32 %v6304, %v6305
        %v6307 = vrot.slane %v6306, 4
        %v6308 = vrot.slane %v5894, 5
        %v6309 = vrot.slane %v5890, 6
        %v6310 = vor.u32 %v6308, %v6309
        %v6311 = vsel %vm2199, %v6307, %v6310
        %v6312 = vrot.slane %v6310, 4
        %v6314 = vshll.u32 %v6162, 16
        %v6316 = vrot.slane %v6314, 6
        %v6317 = vsel %vm2199, %v6312, %v6316
        %v6318 = vrot.slane %v5909, 5
        %v6319 = vrot.slane %v5905, 6
        %v6320 = vor.u32 %v6318, %v6319
        %v6321 = vrot.slane %v6320, 4
        %v6322 = vrot.slane %v5919, 5
        %v6323 = vrot.slane %v5915, 6
        %v6324 = vor.u32 %v6322, %v6323
        %v6325 = vsel %vm2199, %v6321, %v6324
        %v6326 = vrot.slane %v6324, 4
        %v6328 = vshll.u32 %v6163, 16
        %v6330 = vrot.slane %v6328, 6
        %v6331 = vsel %vm2199, %v6326, %v6330
        %v6368 = vmax.bf16 %v6116, %v6166
        %v6369 = vmax.bf16 %v6117, %v6171
        %v6370 = vmax.bf16 %v6118, %v6177
        %v6371 = vmax.bf16 %v6119, %v6180
        %v6372 = vmax.bf16 %v6120, %v6185
        %v6373 = vmax.bf16 %v6121, %v6191
        %v6374 = vmax.bf16 %v6122, %v6194
        %v6375 = vmax.bf16 %v6123, %v6199
        %v6376 = vmax.bf16 %v6124, %v6205
        %v6377 = vmax.bf16 %v6125, %v6208
        %v6378 = vmax.bf16 %v6126, %v6213
        %v6379 = vmax.bf16 %v6127, %v6219
        %v6380 = vmax.bf16 %v6128, %v6222
        %v6381 = vmax.bf16 %v6129, %v6227
        %v6382 = vmax.bf16 %v6130, %v6233
        %v6383 = vmax.bf16 %v6131, %v6236
        %v6384 = vmax.bf16 %v6132, %v6241
        %v6385 = vmax.bf16 %v6133, %v6247
        %v6386 = vmax.bf16 %v6134, %v6250
        %v6387 = vmax.bf16 %v6135, %v6255
        %v6388 = vmax.bf16 %v6136, %v6261
        %v6389 = vmax.bf16 %v6137, %v6264
        %v6390 = vmax.bf16 %v6138, %v6269
        %v6391 = vmax.bf16 %v6139, %v6275
        %v6392 = vmax.bf16 %v6140, %v6278
        %v6393 = vmax.bf16 %v6141, %v6283
        %v6394 = vmax.bf16 %v6142, %v6289
        %v6395 = vmax.bf16 %v6143, %v6292
        %v6396 = vmax.bf16 %v6144, %v6297
        %v6397 = vmax.bf16 %v6145, %v6303
        %v6398 = vmax.bf16 %v6146, %v6306
        %v6399 = vmax.bf16 %v6147, %v6311
        %v6400 = vmax.bf16 %v6148, %v6317
        %v6401 = vmax.bf16 %v6149, %v6320
        %v6402 = vmax.bf16 %v6150, %v6325
        %v6403 = vmax.bf16 %v6151, %v6331
        %v6404 = vld [vmem:[%s5575 + $0x8] sm:$0xe]
        %v6405 = vld [vmem:[%s5575 + $0x1c] sm:$0xe]
        %v6406 = vld [vmem:[%s5575 + $0x30] sm:$0xe]
        %v6407 = vld [vmem:[%s5575 + $0x44] sm:$0xe]
        %v6408 = vld [vmem:[%s5575 + $0x58] sm:$0xe]
        %v6409 = vld [vmem:[%s5575 + $0x6c] sm:$0xe]
        %v6410 = vld [vmem:[%s5575 + $0x80] sm:$0xe]
        %v6411 = vld [vmem:[%s5575 + $0x94] sm:$0xe]
        %v6412 = vld [vmem:[%s5575 + $0xa8] sm:$0xe]
        %v6413 = vld [vmem:[%s5575 + $0xbc] sm:$0xe]
        %v6414 = vld [vmem:[%s5575 + $0xd0] sm:$0xe]
        %v6415 = vld [vmem:[%s5575 + $0xe4] sm:$0xe]
        %v6440 = vrot.slane %v6404, 6
        %v6441 = vrot.slane %v6440, 4
        %v6442 = vrot.slane %v5612, 6
        %v6443 = vsel %vm2662, %v6441, %v6442
        %v6444 = vrot.slane %v6442, 4
        %v6445 = vrot.slane %v6152, 6
        %v6446 = vsel %vm2662, %v6444, %v6445
        %v6447 = vrot.slane %v6405, 6
        %v6448 = vrot.slane %v6447, 4
        %v6449 = vrot.slane %v5613, 6
        %v6450 = vsel %vm2662, %v6448, %v6449
        %v6451 = vrot.slane %v6449, 4
        %v6452 = vrot.slane %v6153, 6
        %v6453 = vsel %vm2662, %v6451, %v6452
        %v6454 = vrot.slane %v6406, 6
        %v6455 = vrot.slane %v6454, 4
        %v6456 = vrot.slane %v5614, 6
        %v6457 = vsel %vm2662, %v6455, %v6456
        %v6458 = vrot.slane %v6456, 4
        %v6459 = vrot.slane %v6154, 6
        %v6460 = vsel %vm2662, %v6458, %v6459
        %v6461 = vrot.slane %v6407, 6
        %v6462 = vrot.slane %v6461, 4
        %v6463 = vrot.slane %v5615, 6
        %v6464 = vsel %vm2662, %v6462, %v6463
        %v6465 = vrot.slane %v6463, 4
        %v6466 = vrot.slane %v6155, 6
        %v6467 = vsel %vm2662, %v6465, %v6466
        %v6468 = vrot.slane %v6408, 6
        %v6469 = vrot.slane %v6468, 4
        %v6470 = vrot.slane %v5616, 6
        %v6471 = vsel %vm2662, %v6469, %v6470
        %v6472 = vrot.slane %v6470, 4
        %v6473 = vrot.slane %v6156, 6
        %v6474 = vsel %vm2662, %v6472, %v6473
        %v6475 = vrot.slane %v6409, 6
        %v6476 = vrot.slane %v6475, 4
        %v6477 = vrot.slane %v5617, 6
        %v6478 = vsel %vm2662, %v6476, %v6477
        %v6479 = vrot.slane %v6477, 4
        %v6480 = vrot.slane %v6157, 6
        %v6481 = vsel %vm2662, %v6479, %v6480
        %v6482 = vrot.slane %v6410, 6
        %v6483 = vrot.slane %v6482, 4
        %v6484 = vrot.slane %v5618, 6
        %v6485 = vsel %vm2662, %v6483, %v6484
        %v6486 = vrot.slane %v6484, 4
        %v6487 = vrot.slane %v6158, 6
        %v6488 = vsel %vm2662, %v6486, %v6487
        %v6489 = vrot.slane %v6411, 6
        %v6490 = vrot.slane %v6489, 4
        %v6491 = vrot.slane %v5619, 6
        %v6492 = vsel %vm2662, %v6490, %v6491
        %v6493 = vrot.slane %v6491, 4
        %v6494 = vrot.slane %v6159, 6
        %v6495 = vsel %vm2662, %v6493, %v6494
        %v6496 = vrot.slane %v6412, 6
        %v6497 = vrot.slane %v6496, 4
        %v6498 = vrot.slane %v5620, 6
        %v6499 = vsel %vm2662, %v6497, %v6498
        %v6500 = vrot.slane %v6498, 4
        %v6501 = vrot.slane %v6160, 6
        %v6502 = vsel %vm2662, %v6500, %v6501
        %v6503 = vrot.slane %v6413, 6
        %v6504 = vrot.slane %v6503, 4
        %v6505 = vrot.slane %v5621, 6
        %v6506 = vsel %vm2662, %v6504, %v6505
        %v6507 = vrot.slane %v6505, 4
        %v6508 = vrot.slane %v6161, 6
        %v6509 = vsel %vm2662, %v6507, %v6508
        %v6510 = vrot.slane %v6414, 6
        %v6511 = vrot.slane %v6510, 4
        %v6512 = vrot.slane %v5622, 6
        %v6513 = vsel %vm2662, %v6511, %v6512
        %v6514 = vrot.slane %v6512, 4
        %v6515 = vrot.slane %v6162, 6
        %v6516 = vsel %vm2662, %v6514, %v6515
        %v6517 = vrot.slane %v6415, 6
        %v6518 = vrot.slane %v6517, 4
        %v6519 = vrot.slane %v5623, 6
        %v6520 = vsel %vm2662, %v6518, %v6519
        %v6521 = vrot.slane %v6519, 4
        %v6522 = vrot.slane %v6163, 6
        %v6523 = vsel %vm2662, %v6521, %v6522
        %v6560 = vmax.bf16 %v6368, %v6440
        %v6561 = vmax.bf16 %v6369, %v6443
        %v6562 = vmax.bf16 %v6370, %v6446
        %v6563 = vmax.bf16 %v6371, %v6447
        %v6564 = vmax.bf16 %v6372, %v6450
        %v6565 = vmax.bf16 %v6373, %v6453
        %v6566 = vmax.bf16 %v6374, %v6454
        %v6567 = vmax.bf16 %v6375, %v6457
        %v6568 = vmax.bf16 %v6376, %v6460
        %v6569 = vmax.bf16 %v6377, %v6461
        %v6570 = vmax.bf16 %v6378, %v6464
        %v6571 = vmax.bf16 %v6379, %v6467
        %v6572 = vmax.bf16 %v6380, %v6468
        %v6573 = vmax.bf16 %v6381, %v6471
        %v6574 = vmax.bf16 %v6382, %v6474
        %v6575 = vmax.bf16 %v6383, %v6475
        %v6576 = vmax.bf16 %v6384, %v6478
        %v6577 = vmax.bf16 %v6385, %v6481
        %v6578 = vmax.bf16 %v6386, %v6482
        %v6579 = vmax.bf16 %v6387, %v6485
        %v6580 = vmax.bf16 %v6388, %v6488
        %v6581 = vmax.bf16 %v6389, %v6489
        %v6582 = vmax.bf16 %v6390, %v6492
        %v6583 = vmax.bf16 %v6391, %v6495
        %v6584 = vmax.bf16 %v6392, %v6496
        %v6585 = vmax.bf16 %v6393, %v6499
        %v6586 = vmax.bf16 %v6394, %v6502
        %v6587 = vmax.bf16 %v6395, %v6503
        %v6588 = vmax.bf16 %v6396, %v6506
        %v6589 = vmax.bf16 %v6397, %v6509
        %v6590 = vmax.bf16 %v6398, %v6510
        %v6591 = vmax.bf16 %v6399, %v6513
        %v6592 = vmax.bf16 %v6400, %v6516
        %v6593 = vmax.bf16 %v6401, %v6517
        %v6594 = vmax.bf16 %v6402, %v6520
        %v6595 = vmax.bf16 %v6403, %v6523
        %v6596 = vmax.bf16 %v6560, %v6563
        %v6597 = vmax.bf16 %v6561, %v6564
        %v6598 = vmax.bf16 %v6562, %v6565
        %v6599 = vmax.bf16 %v6563, %v6566
        %v6600 = vmax.bf16 %v6564, %v6567
        %v6601 = vmax.bf16 %v6565, %v6568
        %v6602 = vmax.bf16 %v6566, %v6569
        %v6603 = vmax.bf16 %v6567, %v6570
        %v6604 = vmax.bf16 %v6568, %v6571
        %v6605 = vmax.bf16 %v6569, %v6572
        %v6606 = vmax.bf16 %v6570, %v6573
        %v6607 = vmax.bf16 %v6571, %v6574
        %v6608 = vmax.bf16 %v6572, %v6575
        %v6609 = vmax.bf16 %v6573, %v6576
        %v6610 = vmax.bf16 %v6574, %v6577
        %v6611 = vmax.bf16 %v6575, %v6578
        %v6612 = vmax.bf16 %v6576, %v6579
        %v6613 = vmax.bf16 %v6577, %v6580
        %v6614 = vmax.bf16 %v6578, %v6581
        %v6615 = vmax.bf16 %v6579, %v6582
        %v6616 = vmax.bf16 %v6580, %v6583
        %v6617 = vmax.bf16 %v6581, %v6584
        %v6618 = vmax.bf16 %v6582, %v6585
        %v6619 = vmax.bf16 %v6583, %v6586
        %v6620 = vmax.bf16 %v6596, %v6566
        %v6621 = vmax.bf16 %v6597, %v6567
        %v6622 = vmax.bf16 %v6598, %v6568
        %v6623 = vmax.bf16 %v6599, %v6569
        %v6624 = vmax.bf16 %v6600, %v6570
        %v6625 = vmax.bf16 %v6601, %v6571
        %v6626 = vmax.bf16 %v6602, %v6572
        %v6627 = vmax.bf16 %v6603, %v6573
        %v6628 = vmax.bf16 %v6604, %v6574
        %v6629 = vmax.bf16 %v6605, %v6575
        %v6630 = vmax.bf16 %v6606, %v6576
        %v6631 = vmax.bf16 %v6607, %v6577
        %v6632 = vmax.bf16 %v6608, %v6578
        %v6633 = vmax.bf16 %v6609, %v6579
        %v6634 = vmax.bf16 %v6610, %v6580
        %v6635 = vmax.bf16 %v6611, %v6581
        %v6636 = vmax.bf16 %v6612, %v6582
        %v6637 = vmax.bf16 %v6613, %v6583
        %v6638 = vmax.bf16 %v6614, %v6584
        %v6639 = vmax.bf16 %v6615, %v6585
        %v6640 = vmax.bf16 %v6616, %v6586
        %v6641 = vmax.bf16 %v6617, %v6587
        %v6642 = vmax.bf16 %v6618, %v6588
        %v6643 = vmax.bf16 %v6619, %v6589
        %v6644 = vmax.bf16 %v6620, %v6569
        %v6645 = vmax.bf16 %v6621, %v6570
        %v6646 = vmax.bf16 %v6622, %v6571
        %v6647 = vmax.bf16 %v6623, %v6572
        %v6648 = vmax.bf16 %v6624, %v6573
        %v6649 = vmax.bf16 %v6625, %v6574
        %v6650 = vmax.bf16 %v6626, %v6575
        %v6651 = vmax.bf16 %v6627, %v6576
        %v6652 = vmax.bf16 %v6628, %v6577
        %v6653 = vmax.bf16 %v6629, %v6578
        %v6654 = vmax.bf16 %v6630, %v6579
        %v6655 = vmax.bf16 %v6631, %v6580
        %v6656 = vmax.bf16 %v6632, %v6581
        %v6657 = vmax.bf16 %v6633, %v6582
        %v6658 = vmax.bf16 %v6634, %v6583
        %v6659 = vmax.bf16 %v6635, %v6584
        %v6660 = vmax.bf16 %v6636, %v6585
        %v6661 = vmax.bf16 %v6637, %v6586
        %v6662 = vmax.bf16 %v6638, %v6587
        %v6663 = vmax.bf16 %v6639, %v6588
        %v6664 = vmax.bf16 %v6640, %v6589
        %v6665 = vmax.bf16 %v6641, %v6590
        %v6666 = vmax.bf16 %v6642, %v6591
        %v6667 = vmax.bf16 %v6643, %v6592
        %v6668 = vmax.bf16 %v6644, %v6572
        %v6669 = vmax.bf16 %v6645, %v6573
        %v6670 = vmax.bf16 %v6646, %v6574
        %v6671 = vmax.bf16 %v6647, %v6575
        %v6672 = vmax.bf16 %v6648, %v6576
        %v6673 = vmax.bf16 %v6649, %v6577
        %v6674 = vmax.bf16 %v6650, %v6578
        %v6675 = vmax.bf16 %v6651, %v6579
        %v6676 = vmax.bf16 %v6652, %v6580
        %v6677 = vmax.bf16 %v6653, %v6581
        %v6678 = vmax.bf16 %v6654, %v6582
        %v6679 = vmax.bf16 %v6655, %v6583
        %v6680 = vmax.bf16 %v6656, %v6584
        %v6681 = vmax.bf16 %v6657, %v6585
        %v6682 = vmax.bf16 %v6658, %v6586
        %v6683 = vmax.bf16 %v6659, %v6587
        %v6684 = vmax.bf16 %v6660, %v6588
        %v6685 = vmax.bf16 %v6661, %v6589
        %v6686 = vmax.bf16 %v6662, %v6590
        %v6687 = vmax.bf16 %v6663, %v6591
        %v6688 = vmax.bf16 %v6664, %v6592
        %v6689 = vmax.bf16 %v6665, %v6593
        %v6690 = vmax.bf16 %v6666, %v6594
        %v6691 = vmax.bf16 %v6667, %v6595
        %v6692 = vld [vmem:[#allocation3] sm:$0xff]
        %v6693 = vld [vmem:[#allocation3 + $0x8] sm:$0xff]
        %v6694 = vld [vmem:[#allocation3 + $0x10] sm:$0xff]
        %v6695 = vld [vmem:[#allocation3 + $0x18] sm:$0xff]
        %v6696 = vld [vmem:[#allocation3 + $0x20] sm:$0xff]
        %v6697 = vld [vmem:[#allocation3 + $0x28] sm:$0xff]
        %v6698 = vld [vmem:[#allocation3 + $0x30] sm:$0xff]
        %v6699 = vld [vmem:[#allocation3 + $0x38] sm:$0xff]
        %v6700 = vld [vmem:[#allocation3 + $0x40] sm:$0xff]
        %v6701 = vld [vmem:[#allocation3 + $0x48] sm:$0xff]
        %v6702 = vld [vmem:[#allocation3 + $0x50] sm:$0xff]
        %v6703 = vld [vmem:[#allocation3 + $0x58] sm:$0xff]
        %v6704 = vld [vmem:[#allocation3 + $0x60] sm:$0xff]
        %v6705 = vld [vmem:[#allocation3 + $0x68] sm:$0xff]
        %v6706 = vld [vmem:[#allocation3 + $0x70] sm:$0xff]
        %v6707 = vld [vmem:[#allocation3 + $0x78] sm:$0xff]
        %v6732 = vrot.slane %v6668, 7
        %v6733 = vrot.slane %v6732, 4
        %v6734 = vrot.slane %v6669, 7
        %v6735 = vsel %vm3166, %v6733, %v6734
        %v6736 = vrot.slane %v6734, 4
        %v6737 = vrot.slane %v6670, 7
        %v6738 = vsel %vm3166, %v6736, %v6737
        %v6739 = vrot.slane %v6671, 7
        %v6740 = vrot.slane %v6739, 4
        %v6741 = vrot.slane %v6672, 7
        %v6742 = vsel %vm3166, %v6740, %v6741
        %v6743 = vrot.slane %v6741, 4
        %v6744 = vrot.slane %v6673, 7
        %v6745 = vsel %vm3166, %v6743, %v6744
        %v6746 = vrot.slane %v6674, 7
        %v6747 = vrot.slane %v6746, 4
        %v6748 = vrot.slane %v6675, 7
        %v6749 = vsel %vm3166, %v6747, %v6748
        %v6750 = vrot.slane %v6748, 4
        %v6751 = vrot.slane %v6676, 7
        %v6752 = vsel %vm3166, %v6750, %v6751
        %v6753 = vrot.slane %v6677, 7
        %v6754 = vrot.slane %v6753, 4
        %v6755 = vrot.slane %v6678, 7
        %v6756 = vsel %vm3166, %v6754, %v6755
        %v6757 = vrot.slane %v6755, 4
        %v6758 = vrot.slane %v6679, 7
        %v6759 = vsel %vm3166, %v6757, %v6758
        %v6760 = vrot.slane %v6680, 7
        %v6761 = vrot.slane %v6760, 4
        %v6762 = vrot.slane %v6681, 7
        %v6763 = vsel %vm3166, %v6761, %v6762
        %v6764 = vrot.slane %v6762, 4
        %v6765 = vrot.slane %v6682, 7
        %v6766 = vsel %vm3166, %v6764, %v6765
        %v6767 = vrot.slane %v6683, 7
        %v6768 = vrot.slane %v6767, 4
        %v6769 = vrot.slane %v6684, 7
        %v6770 = vsel %vm3166, %v6768, %v6769
        %v6771 = vrot.slane %v6769, 4
        %v6772 = vrot.slane %v6685, 7
        %v6773 = vsel %vm3166, %v6771, %v6772
        %v6774 = vrot.slane %v6686, 7
        %v6775 = vrot.slane %v6774, 4
        %v6776 = vrot.slane %v6687, 7
        %v6777 = vsel %vm3166, %v6775, %v6776
        %v6778 = vrot.slane %v6776, 4
        %v6779 = vrot.slane %v6688, 7
        %v6780 = vsel %vm3166, %v6778, %v6779
        %v6781 = vrot.slane %v6689, 7
        %v6782 = vrot.slane %v6781, 4
        %v6783 = vrot.slane %v6690, 7
        %v6784 = vsel %vm3166, %v6782, %v6783
        %v6785 = vrot.slane %v6783, 4
        %v6786 = vrot.slane %v6691, 7
        %v6787 = vsel %vm3166, %v6785, %v6786
        %s6788 = scalar_lea.vmem [#allocation9], 192
        %v6789 = vld [vmem:[%s6788] sm:$0xf]
        %v6790 = vld [vmem:[%s6788 + $0x4] sm:$0xf]
        %v6791 = vld [vmem:[%s6788 + $0x8] sm:$0xf]
        %v6792 = vld [vmem:[%s6788 + $0xc] sm:$0xf]
        %v6793 = vld [vmem:[%s6788 + $0x10] sm:$0xf]
        %v6794 = vld [vmem:[%s6788 + $0x14] sm:$0xf]
        %v6795 = vld [vmem:[%s6788 + $0x18] sm:$0xf]
        %v6796 = vld [vmem:[%s6788 + $0x1c] sm:$0xf]
        %v6797 = vld [vmem:[%s6788 + $0x20] sm:$0xf]
        %v6798 = vld [vmem:[%s6788 + $0x24] sm:$0xf]
        %v6799 = vld [vmem:[%s6788 + $0x28] sm:$0xf]
        %v6800 = vld [vmem:[%s6788 + $0x2c] sm:$0xf]
        %v6801 = vld [vmem:[%s6788 + $0x30] sm:$0xf]
        %v6802 = vld [vmem:[%s6788 + $0x34] sm:$0xf]
        %v6803 = vld [vmem:[%s6788 + $0x38] sm:$0xf]
        %v6804 = vld [vmem:[%s6788 + $0x3c] sm:$0xf]
        %v6805 = vunpack.c.l.b16 %v6735
        %v6806 = vunpack.c.l.b16 %v6738
        %v6807 = vunpack.c.l.b16 %v6742
        %v6808 = vunpack.c.l.b16 %v6745
        %v6809 = vunpack.c.l.b16 %v6749
        %v6810 = vunpack.c.l.b16 %v6752
        %v6811 = vunpack.c.l.b16 %v6756
        %v6812 = vunpack.c.l.b16 %v6759
        %v6813 = vunpack.c.l.b16 %v6763
        %v6814 = vunpack.c.l.b16 %v6766
        %v6815 = vunpack.c.l.b16 %v6770
        %v6816 = vunpack.c.l.b16 %v6773
        %v6817 = vunpack.c.l.b16 %v6777
        %v6818 = vunpack.c.l.b16 %v6780
        %v6819 = vunpack.c.l.b16 %v6784
        %v6820 = vunpack.c.l.b16 %v6787
        %v6821 = vpack.c.b16 %v6806, %v6805
        %v6822 = vpack.c.b16 %v6808, %v6807
        %v6823 = vpack.c.b16 %v6810, %v6809
        %v6824 = vpack.c.b16 %v6812, %v6811
        %v6825 = vpack.c.b16 %v6814, %v6813
        %v6826 = vpack.c.b16 %v6816, %v6815
        %v6827 = vpack.c.b16 %v6818, %v6817
        %v6828 = vpack.c.b16 %v6820, %v6819
        %v6853 = vunpack.c.l.b16 %v6789
        %v6854 = vunpack.c.l.b16 %v6790
        %v6855 = vunpack.c.l.b16 %v6791
        %v6856 = vunpack.c.l.b16 %v6792
        %v6857 = vunpack.c.l.b16 %v6793
        %v6858 = vunpack.c.l.b16 %v6794
        %v6859 = vunpack.c.l.b16 %v6795
        %v6860 = vunpack.c.l.b16 %v6796
        %v6861 = vunpack.c.l.b16 %v6797
        %v6862 = vunpack.c.l.b16 %v6798
        %v6863 = vunpack.c.l.b16 %v6799
        %v6864 = vunpack.c.l.b16 %v6800
        %v6865 = vunpack.c.l.b16 %v6801
        %v6866 = vunpack.c.l.b16 %v6802
        %v6867 = vunpack.c.l.b16 %v6803
        %v6868 = vunpack.c.l.b16 %v6804
        %v6869 = vpack.c.b16 %v6854, %v6853
        %v6870 = vpack.c.b16 %v6856, %v6855
        %v6871 = vpack.c.b16 %v6858, %v6857
        %v6872 = vpack.c.b16 %v6860, %v6859
        %v6873 = vpack.c.b16 %v6862, %v6861
        %v6874 = vpack.c.b16 %v6864, %v6863
        %v6875 = vpack.c.b16 %v6866, %v6865
        %v6876 = vpack.c.b16 %v6868, %v6867
        %6885 = vmatprep.subr.bf16.mxu0 0
        %6886 = vmatpush1.bf16.msra.mxu0 %v6876
        %6887 = vmatprep.subr.bf16.mxu0 0
        %6888 = vmatpush1.bf16.msra.mxu0 %v6875
        %6889 = vmatprep.subr.bf16.mxu0 0
        %6890 = vmatpush1.bf16.msra.mxu0 %v6874
        %6891 = vmatprep.subr.bf16.mxu0 0
        %6892 = vmatpush1.bf16.msra.mxu0 %v6873
        %6893 = vmatprep.subr.bf16.mxu0 0
        %6894 = vmatpush1.bf16.msra.mxu0 %v6872
        %6895 = vmatprep.subr.bf16.mxu0 0
        %6896 = vmatpush1.bf16.msra.mxu0 %v6871
        %6897 = vmatprep.subr.bf16.mxu0 0
        %6898 = vmatpush1.bf16.msra.mxu0 %v6870
        %6899 = vmatprep.subr.bf16.mxu0 0
        %6900 = vmatpush1.bf16.msra.mxu0 %v6869
        %6901 = vmatprep.subr.bf16.mxu0 0
        %6902 = vmatpush2.bf16.msra.mxu0 0
        %6903 = vmatprep.subr.bf16.mxu0 0
        %6904 = vmatpush2.bf16.msra.mxu0 0
        %6905 = vmatprep.subr.bf16.mxu0 0
        %6906 = vmatpush2.bf16.msra.mxu0 0
        %6907 = vmatprep.subr.bf16.mxu0 0
        %6908 = vmatpush2.bf16.msra.mxu0 0
        %6909 = vmatprep.subr.bf16.mxu0 0
        %6910 = vmatpush2.bf16.msra.mxu0 0
        %6911 = vmatprep.subr.bf16.mxu0 0
        %6912 = vmatpush2.bf16.msra.mxu0 0
        %6913 = vmatprep.subr.bf16.mxu0 0
        %6914 = vmatpush2.bf16.msra.mxu0 0
        %6915 = vmatprep.subr.bf16.mxu0 0
        %6916 = vmatpush2.bf16.msra.mxu0 0
        %6917 = vmatprep.mubr.bf16.mxu0 0
        %6918 = vmatmul.mubr.bf16.gmra.mxu0 %v6821
        %v6919 = vpop.f32.mrf.mxu0
        %v6920 = vadd.f32 0.0, %v6919
        %v6921 = vpop.f32.mrf.mxu0
        %v6922 = vpop.f32.mrf.mxu0
        %v6923 = vadd.f32 0.0, %v6922
        %v6924 = vpop.f32.mrf.mxu0
        %6925 = vmatprep.mubr.bf16.mxu0 0
        %6926 = vmatmul.mubr.bf16.gmra.mxu0 %v6822
        %v6927 = vpop.f32.mrf.mxu0
        %v6928 = vadd.f32 0.0, %v6927
        %v6929 = vpop.f32.mrf.mxu0
        %v6930 = vpop.f32.mrf.mxu0
        %v6931 = vadd.f32 0.0, %v6930
        %v6932 = vpop.f32.mrf.mxu0
        %6933 = vmatprep.mubr.bf16.mxu0 0
        %6934 = vmatmul.mubr.bf16.gmra.mxu0 %v6823
        %v6935 = vpop.f32.mrf.mxu0
        %v6936 = vadd.f32 0.0, %v6935
        %v6937 = vpop.f32.mrf.mxu0
        %v6938 = vpop.f32.mrf.mxu0
        %v6939 = vadd.f32 0.0, %v6938
        %v6940 = vpop.f32.mrf.mxu0
        %6941 = vmatprep.mubr.bf16.mxu0 0
        %6942 = vmatmul.mubr.bf16.gmra.mxu0 %v6824
        %v6943 = vpop.f32.mrf.mxu0
        %v6944 = vadd.f32 0.0, %v6943
        %v6945 = vpop.f32.mrf.mxu0
        %v6946 = vpop.f32.mrf.mxu0
        %v6947 = vadd.f32 0.0, %v6946
        %v6948 = vpop.f32.mrf.mxu0
        %6949 = vmatprep.mubr.bf16.mxu0 0
        %6950 = vmatmul.mubr.bf16.gmra.mxu0 %v6825
        %v6951 = vpop.f32.mrf.mxu0
        %v6952 = vadd.f32 0.0, %v6951
        %v6953 = vpop.f32.mrf.mxu0
        %v6954 = vpop.f32.mrf.mxu0
        %v6955 = vadd.f32 0.0, %v6954
        %v6956 = vpop.f32.mrf.mxu0
        %6957 = vmatprep.mubr.bf16.mxu0 0
        %6958 = vmatmul.mubr.bf16.gmra.mxu0 %v6826
        %v6959 = vpop.f32.mrf.mxu0
        %v6960 = vadd.f32 0.0, %v6959
        %v6961 = vpop.f32.mrf.mxu0
        %v6962 = vpop.f32.mrf.mxu0
        %v6963 = vadd.f32 0.0, %v6962
        %v6964 = vpop.f32.mrf.mxu0
        %6965 = vmatprep.mubr.bf16.mxu0 0
        %6966 = vmatmul.mubr.bf16.gmra.mxu0 %v6827
        %v6967 = vpop.f32.mrf.mxu0
        %v6968 = vadd.f32 0.0, %v6967
        %v6969 = vpop.f32.mrf.mxu0
        %v6970 = vpop.f32.mrf.mxu0
        %v6971 = vadd.f32 0.0, %v6970
        %v6972 = vpop.f32.mrf.mxu0
        %6973 = vmatprep.mubr.bf16.mxu0 0
        %6974 = vmatmul.mubr.bf16.gmra.mxu0 %v6828
        %v6975 = vpop.f32.mrf.mxu0
        %v6976 = vadd.f32 0.0, %v6975
        %v6977 = vpop.f32.mrf.mxu0
        %v6978 = vpop.f32.mrf.mxu0
        %v6979 = vadd.f32 0.0, %v6978
        %v6980 = vpop.f32.mrf.mxu0
        %6981 = vdwg.mxu0
        %v6982 = vadd.f32 %v6692, %v6920
        %v6983 = vadd.f32 %v6693, %v6923
        %v6984 = vadd.f32 %v6694, %v6928
        %v6985 = vadd.f32 %v6695, %v6931
        %v6986 = vadd.f32 %v6696, %v6936
        %v6987 = vadd.f32 %v6697, %v6939
        %v6988 = vadd.f32 %v6698, %v6944
        %v6989 = vadd.f32 %v6699, %v6947
        %v6990 = vadd.f32 %v6700, %v6952
        %v6991 = vadd.f32 %v6701, %v6955
        %v6992 = vadd.f32 %v6702, %v6960
        %v6993 = vadd.f32 %v6703, %v6963
        %v6994 = vadd.f32 %v6704, %v6968
        %v6995 = vadd.f32 %v6705, %v6971
        %v6996 = vadd.f32 %v6706, %v6976
        %v6997 = vadd.f32 %v6707, %v6979
        %6998 = vst [vmem:[#allocation3] sm:$0xff] %v6982
        %6999 = vst [vmem:[#allocation3 + $0x8] sm:$0xff] %v6983
        %7000 = vst [vmem:[#allocation3 + $0x10] sm:$0xff] %v6984
        %7001 = vst [vmem:[#allocation3 + $0x18] sm:$0xff] %v6985
        %7002 = vst [vmem:[#allocation3 + $0x20] sm:$0xff] %v6986
        %7003 = vst [vmem:[#allocation3 + $0x28] sm:$0xff] %v6987
        %7004 = vst [vmem:[#allocation3 + $0x30] sm:$0xff] %v6988
        %7005 = vst [vmem:[#allocation3 + $0x38] sm:$0xff] %v6989
        %7006 = vst [vmem:[#allocation3 + $0x40] sm:$0xff] %v6990
        %7007 = vst [vmem:[#allocation3 + $0x48] sm:$0xff] %v6991
        %7008 = vst [vmem:[#allocation3 + $0x50] sm:$0xff] %v6992
        %7009 = vst [vmem:[#allocation3 + $0x58] sm:$0xff] %v6993
        %7010 = vst [vmem:[#allocation3 + $0x60] sm:$0xff] %v6994
        %7011 = vst [vmem:[#allocation3 + $0x68] sm:$0xff] %v6995
        %7012 = vst [vmem:[#allocation3 + $0x70] sm:$0xff] %v6996
        %7013 = vst [vmem:[#allocation3 + $0x78] sm:$0xff] %v6997
        %v7014 = vld [vmem:[#allocation3] sm:$0xff]
        %v7015 = vld [vmem:[#allocation3 + $0x8] sm:$0xff]
        %v7016 = vld [vmem:[#allocation3 + $0x10] sm:$0xff]
        %v7017 = vld [vmem:[#allocation3 + $0x18] sm:$0xff]
        %v7018 = vld [vmem:[#allocation3 + $0x20] sm:$0xff]
        %v7019 = vld [vmem:[#allocation3 + $0x28] sm:$0xff]
        %v7020 = vld [vmem:[#allocation3 + $0x30] sm:$0xff]
        %v7021 = vld [vmem:[#allocation3 + $0x38] sm:$0xff]
        %v7022 = vld [vmem:[#allocation3 + $0x40] sm:$0xff]
        %v7023 = vld [vmem:[#allocation3 + $0x48] sm:$0xff]
        %v7024 = vld [vmem:[#allocation3 + $0x50] sm:$0xff]
        %v7025 = vld [vmem:[#allocation3 + $0x58] sm:$0xff]
        %v7026 = vld [vmem:[#allocation3 + $0x60] sm:$0xff]
        %v7027 = vld [vmem:[#allocation3 + $0x68] sm:$0xff]
        %v7028 = vld [vmem:[#allocation3 + $0x70] sm:$0xff]
        %v7029 = vld [vmem:[#allocation3 + $0x78] sm:$0xff]
        %v7030 = vld [vmem:[%s4] sm:$0x1]
        %v7032 = vlaneseq
        %v7033 = vshrl.u32 %v7032, 7
        %v7034 = vsub.s32 0, %v7033
        %v7035 = vrot.slane %v7030, %v7034
        %v7037 = vadd.f32 %v7014, %v7035
        %v7038 = vadd.f32 %v7015, %v7035
        %v7039 = vadd.f32 %v7016, %v7035
        %v7040 = vadd.f32 %v7017, %v7035
        %v7041 = vadd.f32 %v7018, %v7035
        %v7042 = vadd.f32 %v7019, %v7035
        %v7043 = vadd.f32 %v7020, %v7035
        %v7044 = vadd.f32 %v7021, %v7035
        %v7045 = vadd.f32 %v7022, %v7035
        %v7046 = vadd.f32 %v7023, %v7035
        %v7047 = vadd.f32 %v7024, %v7035
        %v7048 = vadd.f32 %v7025, %v7035
        %v7049 = vadd.f32 %v7026, %v7035
        %v7050 = vadd.f32 %v7027, %v7035
        %v7051 = vadd.f32 %v7028, %v7035
        %v7052 = vadd.f32 %v7029, %v7035
        %v7053 = vadd.f32 %v7037, 3.0
        %v7054 = vadd.f32 %v7038, 3.0
        %v7055 = vadd.f32 %v7039, 3.0
        %v7056 = vadd.f32 %v7040, 3.0
        %v7057 = vadd.f32 %v7041, 3.0
        %v7058 = vadd.f32 %v7042, 3.0
        %v7059 = vadd.f32 %v7043, 3.0
        %v7060 = vadd.f32 %v7044, 3.0
        %v7061 = vadd.f32 %v7045, 3.0
        %v7062 = vadd.f32 %v7046, 3.0
        %v7063 = vadd.f32 %v7047, 3.0
        %v7064 = vadd.f32 %v7048, 3.0
        %v7065 = vadd.f32 %v7049, 3.0
        %v7066 = vadd.f32 %v7050, 3.0
        %v7067 = vadd.f32 %v7051, 3.0
        %v7068 = vadd.f32 %v7052, 3.0
        %v7069 = vmax.f32 %v7053, 0.0
        %v7070 = vmax.f32 %v7054, 0.0
        %v7071 = vmax.f32 %v7055, 0.0
        %v7072 = vmax.f32 %v7056, 0.0
        %v7073 = vmax.f32 %v7057, 0.0
        %v7074 = vmax.f32 %v7058, 0.0
        %v7075 = vmax.f32 %v7059, 0.0
        %v7076 = vmax.f32 %v7060, 0.0
        %v7077 = vmax.f32 %v7061, 0.0
        %v7078 = vmax.f32 %v7062, 0.0
        %v7079 = vmax.f32 %v7063, 0.0
        %v7080 = vmax.f32 %v7064, 0.0
        %v7081 = vmax.f32 %v7065, 0.0
        %v7082 = vmax.f32 %v7066, 0.0
        %v7083 = vmax.f32 %v7067, 0.0
        %v7084 = vmax.f32 %v7068, 0.0
        %v7085 = vmin.f32 %v7069, 6.0
        %v7086 = vmin.f32 %v7070, 6.0
        %v7087 = vmin.f32 %v7071, 6.0
        %v7088 = vmin.f32 %v7072, 6.0
        %v7089 = vmin.f32 %v7073, 6.0
        %v7090 = vmin.f32 %v7074, 6.0
        %v7091 = vmin.f32 %v7075, 6.0
        %v7092 = vmin.f32 %v7076, 6.0
        %v7093 = vmin.f32 %v7077, 6.0
        %v7094 = vmin.f32 %v7078, 6.0
        %v7095 = vmin.f32 %v7079, 6.0
        %v7096 = vmin.f32 %v7080, 6.0
        %v7097 = vmin.f32 %v7081, 6.0
        %v7098 = vmin.f32 %v7082, 6.0
        %v7099 = vmin.f32 %v7083, 6.0
        %v7100 = vmin.f32 %v7084, 6.0
        %v7101 = vmul.f32 %v7037, %v7085
        %v7102 = vmul.f32 %v7038, %v7086
        %v7103 = vmul.f32 %v7039, %v7087
        %v7104 = vmul.f32 %v7040, %v7088
        %v7105 = vmul.f32 %v7041, %v7089
        %v7106 = vmul.f32 %v7042, %v7090
        %v7107 = vmul.f32 %v7043, %v7091
        %v7108 = vmul.f32 %v7044, %v7092
        %v7109 = vmul.f32 %v7045, %v7093
        %v7110 = vmul.f32 %v7046, %v7094
        %v7111 = vmul.f32 %v7047, %v7095
        %v7112 = vmul.f32 %v7048, %v7096
        %v7113 = vmul.f32 %v7049, %v7097
        %v7114 = vmul.f32 %v7050, %v7098
        %v7115 = vmul.f32 %v7051, %v7099
        %v7116 = vmul.f32 %v7052, %v7100
        %v7117 = vmul.f32 %v7101, 0.16666667
        %v7118 = vmul.f32 %v7102, 0.16666667
        %v7119 = vmul.f32 %v7103, 0.16666667
        %v7120 = vmul.f32 %v7104, 0.16666667
        %v7121 = vmul.f32 %v7105, 0.16666667
        %v7122 = vmul.f32 %v7106, 0.16666667
        %v7123 = vmul.f32 %v7107, 0.16666667
        %v7124 = vmul.f32 %v7108, 0.16666667
        %v7125 = vmul.f32 %v7109, 0.16666667
        %v7126 = vmul.f32 %v7110, 0.16666667
        %v7127 = vmul.f32 %v7111, 0.16666667
        %v7128 = vmul.f32 %v7112, 0.16666667
        %v7129 = vmul.f32 %v7113, 0.16666667
        %v7130 = vmul.f32 %v7114, 0.16666667
        %v7131 = vmul.f32 %v7115, 0.16666667
        %v7132 = vmul.f32 %v7116, 0.16666667
        %7133 = vst [vmem:[%s285] sm:$0xff] %v7117
        %7134 = vst [vmem:[%s285 + $0x8] sm:$0xff] %v7118
        %7135 = vst [vmem:[%s285 + $0x10] sm:$0xff] %v7119
        %7136 = vst [vmem:[%s285 + $0x18] sm:$0xff] %v7120
        %7137 = vst [vmem:[%s285 + $0x20] sm:$0xff] %v7121
        %7138 = vst [vmem:[%s285 + $0x28] sm:$0xff] %v7122
        %7139 = vst [vmem:[%s285 + $0x30] sm:$0xff] %v7123
        %7140 = vst [vmem:[%s285 + $0x38] sm:$0xff] %v7124
        %7141 = vst [vmem:[%s285 + $0x40] sm:$0xff] %v7125
        %7142 = vst [vmem:[%s285 + $0x48] sm:$0xff] %v7126
        %7143 = vst [vmem:[%s285 + $0x50] sm:$0xff] %v7127
        %7144 = vst [vmem:[%s285 + $0x58] sm:$0xff] %v7128
        %7145 = vst [vmem:[%s285 + $0x60] sm:$0xff] %v7129
        %7146 = vst [vmem:[%s285 + $0x68] sm:$0xff] %v7130
        %7147 = vst [vmem:[%s285 + $0x70] sm:$0xff] %v7131
        %7148 = vst [vmem:[%s285 + $0x78] sm:$0xff] %v7132
        %s7149 = sand.u32 %s155, 1
        %s7150 = scalar_lea.sflag [#allocation6], %s7149
        %s7151 = sand.u32 %s155, 1
        %s7152 = smul.addr %s7151, 128
        %s7153 = scalar_lea.vmem [#allocation10], %s7152
        // Predicated region
        $region53: #{tpu_custom_call.1} parent=39 // pred_check
          %p7154 = pneg %p165
        $region54: #{tpu_custom_call.1} parent=39 // pred_check_branch
          %7156 = sbr.rel (%p7154) target = $region56
        $region55: #{tpu_custom_call.1} parent=39 // pred_region
          %s7157 = smul.u32 8, %s28
          %s7159 = ssub.s32 2048, 2048
          %7160 = vsyncadd %s7150, %s7159
          %s7161 = smul.addr %s7157, 2
          %s7162 = smul.addr %s27, 32
          %s7163 = sadd.s32 %s7161, %s7162
          %s7164 = smul.addr %s7163, 128
          %s7165 = scalar_lea.hbm %s5, %s7164
          %s7166 = sshll.u32 %s7153, 4
          %s7167 = int_to_ptr.vmem [resolvable:$true] %s7166
          %7172 = dma.vmem_to_hbm [thread:$0]  %s7167, 2048, %s7165, %s7150, 128, 128, 8
        $region56: #{tpu_custom_call.1} parent=39 // pred_fallthru
          _
      $region40: #{tpu_custom_call.1} parent=5 // pred_fallthru
        _
      %p7173 = scmp.le.s32.totalorder 2, %s18
      // Predicated region
      $region57: #{tpu_custom_call.1} parent=5 // pred_check
        %p7174 = pneg %p7173
      $region58: #{tpu_custom_call.1} parent=5 // pred_check_branch
        %7176 = sbr.rel (%p7174) target = $region60
      $region59: #{tpu_custom_call.1} parent=5 // pred_region
        %s7177 = ssub.s32 %s18, 2
        // Predicated region
        $region61: #{tpu_custom_call.1} parent=59 // pred_check
          %p7178 = pneg %p171
        $region62: #{tpu_custom_call.1} parent=59 // pred_check_branch
          %7180 = sbr.rel (%p7178) target = $region64
        $region63: #{tpu_custom_call.1} parent=59 // pred_region
          %s7181 = sand.u32 %s156, 1
          %s7182 = scalar_lea.sflag [#allocation6], %s7181
          %s7183 = sand.u32 %s156, 1
          %s7184 = smul.addr %s7183, 128
          %s7185 = scalar_lea.vmem [#allocation10], %s7184
          %7186 = dma.done %s7182, 2048
        $region64: #{tpu_custom_call.1} parent=59 // pred_fallthru
          _
      $region60: #{tpu_custom_call.1} parent=5 // pred_fallthru
        _
    $region6: #{tpu_custom_call.1} parent=1 // loop_footer
      %s22 = sadd.s32 1, %s18
    $region7: #{tpu_custom_call.1} parent=1 // loop_footer_branch
      %17 = sbr.rel target = $region3
    $region8: #{tpu_custom_call.1} parent=1 // loop_exit
      _
    %7187 = vsyncpa [#allocation5], 1
    %s7188 = scalar_lea.sflag [#allocation5], 1
    %7189 = vsyncpa %s7188, 1
    %7190 = vsyncpa [#allocation8], 1
    %7191 = vsyncpa [#allocation6], 1
    %s7192 = scalar_lea.sflag [#allocation6], 1
    %7193 = vsyncpa %s7192, 1

</llo_original>
